<compile_context>
chip_gen: v7x
topology: tpu7x:2x2x1
jax: 0.10.0
libtpu: 0.0.40
codegen_flags: <defaults>
</compile_context>

<pallas_src>
import jax
import jax.numpy as jnp
from jax.experimental import pallas as pl
from jax.experimental.pallas import tpu as pltpu  # noqa: F401  (TPU backend)

EMBED = 32
HEADS = 4
HEAD_DIM = EMBED // HEADS
SEQ = 8
BATCH = 2
NUM_LAYERS = 2
FWD_EXP = 4
HIDDEN = FWD_EXP * EMBED
LN_EPS = 1e-5                      # PyTorch nn.LayerNorm default

NL = BATCH * SEQ                   # all tokens handled in one grid step
LANES = 128
ROW_GROUPS = LANES // EMBED        # row blocks packed side-by-side along lanes
SLAB_ROWS = NL // ROW_GROUPS       # (4, 128) lane-dense output slab


def _layernorm(x, gamma, beta):
    mean = jnp.mean(x, axis=-1, keepdims=True)
    cent = x - mean
    var = jnp.mean(cent * cent, axis=-1, keepdims=True)
    return cent * jax.lax.rsqrt(var + LN_EPS) * gamma + beta


def encoder_kernel(x_ref, wq_ref, wk_ref, wv_ref, wo_ref, bo_ref,
                   g1_ref, be1_ref, g2_ref, be2_ref,
                   w1_ref, b1_ref, w2_ref, b2_ref, o_ref):
    """Whole encoder (all layers, all batches) in one invocation."""
    h = x_ref[...].astype(jnp.float32)                           # (NL, E)

    for layer in range(NUM_LAYERS):                              # static unroll
        # --- self-attention -------------------------------------------------
        # Single full-width projections against block-diagonal pre-transposed
        # weights (scale folded into Wq in the wrapper).
        q = jnp.dot(h, wq_ref[layer], preferred_element_type=jnp.float32)
        k = jnp.dot(h, wk_ref[layer], preferred_element_type=jnp.float32)
        v = jnp.dot(h, wv_ref[layer], preferred_element_type=jnp.float32)

        head_outs = []
        for hd in range(HEADS):                                  # static unroll
            lo = hd * HEAD_DIM
            qh = q[:, lo:lo + HEAD_DIM].reshape(BATCH, SEQ, HEAD_DIM)
            kh = k[:, lo:lo + HEAD_DIM].reshape(BATCH, SEQ, HEAD_DIM)
            vh = v[:, lo:lo + HEAD_DIM].reshape(BATCH, SEQ, HEAD_DIM)
            # mask is None in Encoder.forward -> no masking.
            s = jnp.einsum('bqd,bkd->bqk', qh, kh,
                           preferred_element_type=jnp.float32)   # (B, L, L)
            s = s - jnp.max(s, axis=-1, keepdims=True)
            p = jnp.exp(s)
            p = p * pl.reciprocal(jnp.sum(p, axis=-1, keepdims=True),
                                  approx=True)
            oh = jnp.einsum('bqk,bkd->bqd', p, vh,
                            preferred_element_type=jnp.float32)  # (B, L, Dh)
            head_outs.append(oh.reshape(NL, HEAD_DIM))
        attn = jnp.concatenate(head_outs, axis=-1)               # (NL, E)

        # output projection (weight pre-transposed in the wrapper)
        attn = jnp.dot(attn, wo_ref[layer],
                       preferred_element_type=jnp.float32) + bo_ref[layer]

        # residual + LayerNorm 1   (dropout == identity)
        x1 = _layernorm(attn + h, g1_ref[layer], be1_ref[layer])

        # --- feed-forward (Linear -> ReLU -> Linear) --------------------------
        ff = jnp.dot(x1, w1_ref[layer],
                     preferred_element_type=jnp.float32) + b1_ref[layer]
        ff = jnp.maximum(ff, 0.0)
        ff = jnp.dot(ff, w2_ref[layer],
                     preferred_element_type=jnp.float32) + b2_ref[layer]

        # residual + LayerNorm 2   (dropout == identity)
        h = _layernorm(ff + x1, g2_ref[layer], be2_ref[layer])

    # Lane-dense output: pack ROW_GROUPS contiguous blocks of SLAB_ROWS rows
    # side-by-side along lanes -> a full-width (SLAB_ROWS, 128) store instead
    # of masked 32-lane stores.  The wrapper inverts this packing.
    slab = jnp.concatenate(
        [h[j * SLAB_ROWS:(j + 1) * SLAB_ROWS, :] for j in range(ROW_GROUPS)],
        axis=-1)                                                  # (4, 128)
    o_ref[...] = slab.astype(o_ref.dtype)


def encoder_forward(x, packed_params):
    """x: (N, L, E); packed_params: 13 arrays with leading layer axis."""
    N, L, E = x.shape
    x2d = x.reshape(N * L, E)
    # Single invocation, no grid: whole arrays resident in VMEM (default specs).
    slab = pl.pallas_call(
        encoder_kernel,
        out_shape=jax.ShapeDtypeStruct((SLAB_ROWS, LANES), x.dtype),
    )(x2d, *packed_params)
    # Undo the lane-dense packing: slab[i, j*E+c] == out2d[j*SLAB_ROWS + i, c]
    out2d = (slab.reshape(SLAB_ROWS, ROW_GROUPS, E)
                 .transpose(1, 0, 2)
                 .reshape(N * L, E))
    return out2d.reshape(N, L, E)


def init_layer_params(key):
    """Per-layer parameters in the PyTorch convention (out_features, in_features)."""
    ks = jax.random.split(key, 8)
    std = 0.02
    return dict(
        wq=jax.random.normal(ks[0], (HEAD_DIM, HEAD_DIM), jnp.float32) * std,
        wk=jax.random.normal(ks[1], (HEAD_DIM, HEAD_DIM), jnp.float32) * std,
        wv=jax.random.normal(ks[2], (HEAD_DIM, HEAD_DIM), jnp.float32) * std,
        wo=jax.random.normal(ks[3], (EMBED, EMBED), jnp.float32) * std,
        bo=jax.random.normal(ks[4], (EMBED,), jnp.float32) * std,
        g1=jnp.ones((EMBED,), jnp.float32),
        be1=jnp.zeros((EMBED,), jnp.float32),
        g2=jnp.ones((EMBED,), jnp.float32),
        be2=jnp.zeros((EMBED,), jnp.float32),
        w1=jax.random.normal(ks[5], (HIDDEN, EMBED), jnp.float32) * std,
        b1=jax.random.normal(ks[6], (HIDDEN,), jnp.float32) * std,
        w2=jax.random.normal(ks[7], (EMBED, HIDDEN), jnp.float32) * std,
        b2=jnp.zeros((EMBED,), jnp.float32),
    )


def pack_params(layers):
    """Stack per-layer params with a leading layer axis; pre-transpose weights,
    expand shared per-head (Dh,Dh) Q/K/V weights to block-diagonal (E,E)
    matrices, and fold the 1/sqrt(embed_size) softmax scale into Wq."""
    eye = jnp.eye(HEADS, dtype=jnp.float32)
    scale = 1.0 / jnp.sqrt(jnp.float32(EMBED))  # PyTorch divides by embed_size**0.5

    def bd(w):  # block-diag of w.T so the kernel computes x @ W.T per head
        return jnp.kron(eye, w.T)

    wq = jnp.stack([bd(l['wq']) * scale for l in layers])
    wk = jnp.stack([bd(l['wk']) for l in layers])
    wv = jnp.stack([bd(l['wv']) for l in layers])
    wo = jnp.stack([l['wo'].T for l in layers])
    bo = jnp.stack([l['bo'].reshape(1, EMBED) for l in layers])
    g1 = jnp.stack([l['g1'].reshape(1, EMBED) for l in layers])
    be1 = jnp.stack([l['be1'].reshape(1, EMBED) for l in layers])
    g2 = jnp.stack([l['g2'].reshape(1, EMBED) for l in layers])
    be2 = jnp.stack([l['be2'].reshape(1, EMBED) for l in layers])
    w1 = jnp.stack([l['w1'].T for l in layers])
    b1 = jnp.stack([l['b1'].reshape(1, HIDDEN) for l in layers])
    w2 = jnp.stack([l['w2'].T for l in layers])
    b2 = jnp.stack([l['b2'].reshape(1, EMBED) for l in layers])
    return [wq, wk, wv, wo, bo, g1, be1, g2, be2, w1, b1, w2, b2]


if __name__ == "__main__":
    key = jax.random.PRNGKey(0)
    kx, *layer_keys = jax.random.split(key, NUM_LAYERS + 1)

    x = jax.random.normal(kx, (BATCH, SEQ, EMBED), jnp.float32)
    layers = [init_layer_params(k) for k in layer_keys]
    packed = pack_params(layers)

    out = jax.jit(encoder_forward)(x, packed)
    out = jax.block_until_ready(out)
    assert out.shape == (BATCH, SEQ, EMBED)
    print("KERNEL_OK")
</pallas_src>

<mosaic_0001>
module attributes {stable_mosaic.version = 11 : i64} {
  func.func @encoder_kernel(%arg0: memref<16x32xf32, #tpu.memory_space<vmem>>, %arg1: memref<2x32x32xf32, #tpu.memory_space<vmem>>, %arg2: memref<2x32x32xf32, #tpu.memory_space<vmem>>, %arg3: memref<2x32x32xf32, #tpu.memory_space<vmem>>, %arg4: memref<2x32x32xf32, #tpu.memory_space<vmem>>, %arg5: memref<2x1x32xf32, #tpu.memory_space<vmem>>, %arg6: memref<2x1x32xf32, #tpu.memory_space<vmem>>, %arg7: memref<2x1x32xf32, #tpu.memory_space<vmem>>, %arg8: memref<2x1x32xf32, #tpu.memory_space<vmem>>, %arg9: memref<2x1x32xf32, #tpu.memory_space<vmem>>, %arg10: memref<2x32x128xf32, #tpu.memory_space<vmem>>, %arg11: memref<2x1x128xf32, #tpu.memory_space<vmem>>, %arg12: memref<2x128x32xf32, #tpu.memory_space<vmem>>, %arg13: memref<2x1x32xf32, #tpu.memory_space<vmem>>, %arg14: memref<4x128xf32, #tpu.memory_space<vmem>>) attributes {dimension_semantics = [], scalar_prefetch = 0 : i64, scratch_operands = 0 : i64, tpu.core_type = #tpu.core_type<tc>} {
    %c0 = arith.constant 0 : index
    %c0_0 = arith.constant 0 : index
    %0 = vector.load %arg0[%c0, %c0_0] : memref<16x32xf32, #tpu.memory_space<vmem>>, vector<16x32xf32>
    %c0_1 = arith.constant 0 : index
    %c0_2 = arith.constant 0 : index
    %c0_3 = arith.constant 0 : index
    %1 = vector.load %arg1[%c0_1, %c0_2, %c0_3] : memref<2x32x32xf32, #tpu.memory_space<vmem>>, vector<1x32x32xf32>
    %2 = vector.shape_cast %1 : vector<1x32x32xf32> to vector<32x32xf32>
    %cst = arith.constant dense<0.000000e+00> : vector<16x32xf32>
    %3 = tpu.matmul %0, %2, %cst {dimension_numbers = #tpu.dot_dimension_numbers<[1], [0], [0], [1], [0, 0, 1, 1], [], []>} : vector<16x32xf32>, vector<32x32xf32>, vector<16x32xf32> -> vector<16x32xf32>
    %c0_4 = arith.constant 0 : index
    %c0_5 = arith.constant 0 : index
    %c0_6 = arith.constant 0 : index
    %4 = vector.load %arg2[%c0_4, %c0_5, %c0_6] : memref<2x32x32xf32, #tpu.memory_space<vmem>>, vector<1x32x32xf32>
    %5 = vector.shape_cast %4 : vector<1x32x32xf32> to vector<32x32xf32>
    %cst_7 = arith.constant dense<0.000000e+00> : vector<16x32xf32>
    %6 = tpu.matmul %0, %5, %cst_7 {dimension_numbers = #tpu.dot_dimension_numbers<[1], [0], [0], [1], [0, 0, 1, 1], [], []>} : vector<16x32xf32>, vector<32x32xf32>, vector<16x32xf32> -> vector<16x32xf32>
    %c0_8 = arith.constant 0 : index
    %c0_9 = arith.constant 0 : index
    %c0_10 = arith.constant 0 : index
    %7 = vector.load %arg3[%c0_8, %c0_9, %c0_10] : memref<2x32x32xf32, #tpu.memory_space<vmem>>, vector<1x32x32xf32>
    %8 = vector.shape_cast %7 : vector<1x32x32xf32> to vector<32x32xf32>
    %cst_11 = arith.constant dense<0.000000e+00> : vector<16x32xf32>
    %9 = tpu.matmul %0, %8, %cst_11 {dimension_numbers = #tpu.dot_dimension_numbers<[1], [0], [0], [1], [0, 0, 1, 1], [], []>} : vector<16x32xf32>, vector<32x32xf32>, vector<16x32xf32> -> vector<16x32xf32>
    %10 = vector.extract_strided_slice %3 {offsets = [0, 0], sizes = [16, 8], strides = [1, 1]} : vector<16x32xf32> to vector<16x8xf32>
    %11 = vector.shape_cast %10 : vector<16x8xf32> to vector<2x8x8xf32>
    %12 = vector.extract_strided_slice %6 {offsets = [0, 0], sizes = [16, 8], strides = [1, 1]} : vector<16x32xf32> to vector<16x8xf32>
    %13 = vector.shape_cast %12 : vector<16x8xf32> to vector<2x8x8xf32>
    %14 = vector.extract_strided_slice %9 {offsets = [0, 0], sizes = [16, 8], strides = [1, 1]} : vector<16x32xf32> to vector<16x8xf32>
    %15 = vector.shape_cast %14 : vector<16x8xf32> to vector<2x8x8xf32>
    "tpu.trace_start"() <{level = 10 : i32, message = "bqd,bkd->bqk"}> : () -> ()
    %cst_12 = arith.constant dense<0.000000e+00> : vector<2x8x8xf32>
    %16 = tpu.matmul %11, %13, %cst_12 {dimension_numbers = #tpu.dot_dimension_numbers<[2], [2], [1], [1], [0, 0, 0, 1, 1, 1], [0], [0]>} : vector<2x8x8xf32>, vector<2x8x8xf32>, vector<2x8x8xf32> -> vector<2x8x8xf32>
    "tpu.trace_stop"() : () -> ()
    %cst_13 = arith.constant dense<0xFF800000> : vector<2x8xf32>
    %17 = vector.multi_reduction <maximumf>, %16, %cst_13 [2] : vector<2x8x8xf32> to vector<2x8xf32>
    %18 = vector.shape_cast %17 : vector<2x8xf32> to vector<2x8x1xf32>
    %19 = vector.broadcast %18 : vector<2x8x1xf32> to vector<2x8x8xf32>
    %20 = arith.subf %16, %19 : vector<2x8x8xf32>
    %21 = math.exp %20 : vector<2x8x8xf32>
    %cst_14 = arith.constant dense<0.000000e+00> : vector<2x8xf32>
    %22 = vector.multi_reduction <add>, %21, %cst_14 [2] : vector<2x8x8xf32> to vector<2x8xf32>
    %23 = vector.shape_cast %22 : vector<2x8xf32> to vector<2x8x1xf32>
    %24 = tpu.reciprocal %23 {approx = true} : vector<2x8x1xf32> -> vector<2x8x1xf32>
    %25 = vector.broadcast %24 : vector<2x8x1xf32> to vector<2x8x8xf32>
    %26 = arith.mulf %21, %25 : vector<2x8x8xf32>
    "tpu.trace_start"() <{level = 10 : i32, message = "bqk,bkd->bqd"}> : () -> ()
    %cst_15 = arith.constant dense<0.000000e+00> : vector<2x8x8xf32>
    %27 = tpu.matmul %26, %15, %cst_15 {dimension_numbers = #tpu.dot_dimension_numbers<[2], [1], [1], [2], [0, 0, 0, 1, 1, 2], [0], [0]>} : vector<2x8x8xf32>, vector<2x8x8xf32>, vector<2x8x8xf32> -> vector<2x8x8xf32>
    "tpu.trace_stop"() : () -> ()
    %28 = vector.shape_cast %27 : vector<2x8x8xf32> to vector<16x8xf32>
    %29 = vector.extract_strided_slice %3 {offsets = [0, 8], sizes = [16, 8], strides = [1, 1]} : vector<16x32xf32> to vector<16x8xf32>
    %30 = vector.shape_cast %29 : vector<16x8xf32> to vector<2x8x8xf32>
    %31 = vector.extract_strided_slice %6 {offsets = [0, 8], sizes = [16, 8], strides = [1, 1]} : vector<16x32xf32> to vector<16x8xf32>
    %32 = vector.shape_cast %31 : vector<16x8xf32> to vector<2x8x8xf32>
    %33 = vector.extract_strided_slice %9 {offsets = [0, 8], sizes = [16, 8], strides = [1, 1]} : vector<16x32xf32> to vector<16x8xf32>
    %34 = vector.shape_cast %33 : vector<16x8xf32> to vector<2x8x8xf32>
    "tpu.trace_start"() <{level = 10 : i32, message = "bqd,bkd->bqk"}> : () -> ()
    %cst_16 = arith.constant dense<0.000000e+00> : vector<2x8x8xf32>
    %35 = tpu.matmul %30, %32, %cst_16 {dimension_numbers = #tpu.dot_dimension_numbers<[2], [2], [1], [1], [0, 0, 0, 1, 1, 1], [0], [0]>} : vector<2x8x8xf32>, vector<2x8x8xf32>, vector<2x8x8xf32> -> vector<2x8x8xf32>
    "tpu.trace_stop"() : () -> ()
    %cst_17 = arith.constant dense<0xFF800000> : vector<2x8xf32>
    %36 = vector.multi_reduction <maximumf>, %35, %cst_17 [2] : vector<2x8x8xf32> to vector<2x8xf32>
    %37 = vector.shape_cast %36 : vector<2x8xf32> to vector<2x8x1xf32>
    %38 = vector.broadcast %37 : vector<2x8x1xf32> to vector<2x8x8xf32>
    %39 = arith.subf %35, %38 : vector<2x8x8xf32>
    %40 = math.exp %39 : vector<2x8x8xf32>
    %cst_18 = arith.constant dense<0.000000e+00> : vector<2x8xf32>
    %41 = vector.multi_reduction <add>, %40, %cst_18 [2] : vector<2x8x8xf32> to vector<2x8xf32>
    %42 = vector.shape_cast %41 : vector<2x8xf32> to vector<2x8x1xf32>
    %43 = tpu.reciprocal %42 {approx = true} : vector<2x8x1xf32> -> vector<2x8x1xf32>
    %44 = vector.broadcast %43 : vector<2x8x1xf32> to vector<2x8x8xf32>
    %45 = arith.mulf %40, %44 : vector<2x8x8xf32>
    "tpu.trace_start"() <{level = 10 : i32, message = "bqk,bkd->bqd"}> : () -> ()
    %cst_19 = arith.constant dense<0.000000e+00> : vector<2x8x8xf32>
    %46 = tpu.matmul %45, %34, %cst_19 {dimension_numbers = #tpu.dot_dimension_numbers<[2], [1], [1], [2], [0, 0, 0, 1, 1, 2], [0], [0]>} : vector<2x8x8xf32>, vector<2x8x8xf32>, vector<2x8x8xf32> -> vector<2x8x8xf32>
    "tpu.trace_stop"() : () -> ()
    %47 = vector.shape_cast %46 : vector<2x8x8xf32> to vector<16x8xf32>
    %48 = vector.extract_strided_slice %3 {offsets = [0, 16], sizes = [16, 8], strides = [1, 1]} : vector<16x32xf32> to vector<16x8xf32>
    %49 = vector.shape_cast %48 : vector<16x8xf32> to vector<2x8x8xf32>
    %50 = vector.extract_strided_slice %6 {offsets = [0, 16], sizes = [16, 8], strides = [1, 1]} : vector<16x32xf32> to vector<16x8xf32>
    %51 = vector.shape_cast %50 : vector<16x8xf32> to vector<2x8x8xf32>
    %52 = vector.extract_strided_slice %9 {offsets = [0, 16], sizes = [16, 8], strides = [1, 1]} : vector<16x32xf32> to vector<16x8xf32>
    %53 = vector.shape_cast %52 : vector<16x8xf32> to vector<2x8x8xf32>
    "tpu.trace_start"() <{level = 10 : i32, message = "bqd,bkd->bqk"}> : () -> ()
    %cst_20 = arith.constant dense<0.000000e+00> : vector<2x8x8xf32>
    %54 = tpu.matmul %49, %51, %cst_20 {dimension_numbers = #tpu.dot_dimension_numbers<[2], [2], [1], [1], [0, 0, 0, 1, 1, 1], [0], [0]>} : vector<2x8x8xf32>, vector<2x8x8xf32>, vector<2x8x8xf32> -> vector<2x8x8xf32>
    "tpu.trace_stop"() : () -> ()
    %cst_21 = arith.constant dense<0xFF800000> : vector<2x8xf32>
    %55 = vector.multi_reduction <maximumf>, %54, %cst_21 [2] : vector<2x8x8xf32> to vector<2x8xf32>
    %56 = vector.shape_cast %55 : vector<2x8xf32> to vector<2x8x1xf32>
    %57 = vector.broadcast %56 : vector<2x8x1xf32> to vector<2x8x8xf32>
    %58 = arith.subf %54, %57 : vector<2x8x8xf32>
    %59 = math.exp %58 : vector<2x8x8xf32>
    %cst_22 = arith.constant dense<0.000000e+00> : vector<2x8xf32>
    %60 = vector.multi_reduction <add>, %59, %cst_22 [2] : vector<2x8x8xf32> to vector<2x8xf32>
    %61 = vector.shape_cast %60 : vector<2x8xf32> to vector<2x8x1xf32>
    %62 = tpu.reciprocal %61 {approx = true} : vector<2x8x1xf32> -> vector<2x8x1xf32>
    %63 = vector.broadcast %62 : vector<2x8x1xf32> to vector<2x8x8xf32>
    %64 = arith.mulf %59, %63 : vector<2x8x8xf32>
    "tpu.trace_start"() <{level = 10 : i32, message = "bqk,bkd->bqd"}> : () -> ()
    %cst_23 = arith.constant dense<0.000000e+00> : vector<2x8x8xf32>
    %65 = tpu.matmul %64, %53, %cst_23 {dimension_numbers = #tpu.dot_dimension_numbers<[2], [1], [1], [2], [0, 0, 0, 1, 1, 2], [0], [0]>} : vector<2x8x8xf32>, vector<2x8x8xf32>, vector<2x8x8xf32> -> vector<2x8x8xf32>
    "tpu.trace_stop"() : () -> ()
    %66 = vector.shape_cast %65 : vector<2x8x8xf32> to vector<16x8xf32>
    %67 = vector.extract_strided_slice %3 {offsets = [0, 24], sizes = [16, 8], strides = [1, 1]} : vector<16x32xf32> to vector<16x8xf32>
    %68 = vector.shape_cast %67 : vector<16x8xf32> to vector<2x8x8xf32>
    %69 = vector.extract_strided_slice %6 {offsets = [0, 24], sizes = [16, 8], strides = [1, 1]} : vector<16x32xf32> to vector<16x8xf32>
    %70 = vector.shape_cast %69 : vector<16x8xf32> to vector<2x8x8xf32>
    %71 = vector.extract_strided_slice %9 {offsets = [0, 24], sizes = [16, 8], strides = [1, 1]} : vector<16x32xf32> to vector<16x8xf32>
    %72 = vector.shape_cast %71 : vector<16x8xf32> to vector<2x8x8xf32>
    "tpu.trace_start"() <{level = 10 : i32, message = "bqd,bkd->bqk"}> : () -> ()
    %cst_24 = arith.constant dense<0.000000e+00> : vector<2x8x8xf32>
    %73 = tpu.matmul %68, %70, %cst_24 {dimension_numbers = #tpu.dot_dimension_numbers<[2], [2], [1], [1], [0, 0, 0, 1, 1, 1], [0], [0]>} : vector<2x8x8xf32>, vector<2x8x8xf32>, vector<2x8x8xf32> -> vector<2x8x8xf32>
    "tpu.trace_stop"() : () -> ()
    %cst_25 = arith.constant dense<0xFF800000> : vector<2x8xf32>
    %74 = vector.multi_reduction <maximumf>, %73, %cst_25 [2] : vector<2x8x8xf32> to vector<2x8xf32>
    %75 = vector.shape_cast %74 : vector<2x8xf32> to vector<2x8x1xf32>
    %76 = vector.broadcast %75 : vector<2x8x1xf32> to vector<2x8x8xf32>
    %77 = arith.subf %73, %76 : vector<2x8x8xf32>
    %78 = math.exp %77 : vector<2x8x8xf32>
    %cst_26 = arith.constant dense<0.000000e+00> : vector<2x8xf32>
    %79 = vector.multi_reduction <add>, %78, %cst_26 [2] : vector<2x8x8xf32> to vector<2x8xf32>
    %80 = vector.shape_cast %79 : vector<2x8xf32> to vector<2x8x1xf32>
    %81 = tpu.reciprocal %80 {approx = true} : vector<2x8x1xf32> -> vector<2x8x1xf32>
    %82 = vector.broadcast %81 : vector<2x8x1xf32> to vector<2x8x8xf32>
    %83 = arith.mulf %78, %82 : vector<2x8x8xf32>
    "tpu.trace_start"() <{level = 10 : i32, message = "bqk,bkd->bqd"}> : () -> ()
    %cst_27 = arith.constant dense<0.000000e+00> : vector<2x8x8xf32>
    %84 = tpu.matmul %83, %72, %cst_27 {dimension_numbers = #tpu.dot_dimension_numbers<[2], [1], [1], [2], [0, 0, 0, 1, 1, 2], [0], [0]>} : vector<2x8x8xf32>, vector<2x8x8xf32>, vector<2x8x8xf32> -> vector<2x8x8xf32>
    "tpu.trace_stop"() : () -> ()
    %85 = vector.shape_cast %84 : vector<2x8x8xf32> to vector<16x8xf32>
    %86 = tpu.concatenate %28, %47, %66, %85 in 1 : vector<16x8xf32>, vector<16x8xf32>, vector<16x8xf32>, vector<16x8xf32> -> vector<16x32xf32>
    %c0_28 = arith.constant 0 : index
    %c0_29 = arith.constant 0 : index
    %c0_30 = arith.constant 0 : index
    %87 = vector.load %arg4[%c0_28, %c0_29, %c0_30] : memref<2x32x32xf32, #tpu.memory_space<vmem>>, vector<1x32x32xf32>
    %88 = vector.shape_cast %87 : vector<1x32x32xf32> to vector<32x32xf32>
    %cst_31 = arith.constant dense<0.000000e+00> : vector<16x32xf32>
    %89 = tpu.matmul %86, %88, %cst_31 {dimension_numbers = #tpu.dot_dimension_numbers<[1], [0], [0], [1], [0, 0, 1, 1], [], []>} : vector<16x32xf32>, vector<32x32xf32>, vector<16x32xf32> -> vector<16x32xf32>
    %c0_32 = arith.constant 0 : index
    %c0_33 = arith.constant 0 : index
    %c0_34 = arith.constant 0 : index
    %90 = vector.load %arg5[%c0_32, %c0_33, %c0_34] : memref<2x1x32xf32, #tpu.memory_space<vmem>>, vector<1x1x32xf32>
    %91 = vector.shape_cast %90 : vector<1x1x32xf32> to vector<1x32xf32>
    %92 = vector.broadcast %91 : vector<1x32xf32> to vector<16x32xf32>
    %93 = arith.addf %89, %92 : vector<16x32xf32>
    %94 = arith.addf %93, %0 : vector<16x32xf32>
    %c0_35 = arith.constant 0 : index
    %c0_36 = arith.constant 0 : index
    %c0_37 = arith.constant 0 : index
    %95 = vector.load %arg6[%c0_35, %c0_36, %c0_37] : memref<2x1x32xf32, #tpu.memory_space<vmem>>, vector<1x1x32xf32>
    %96 = vector.shape_cast %95 : vector<1x1x32xf32> to vector<1x32xf32>
    %c0_38 = arith.constant 0 : index
    %c0_39 = arith.constant 0 : index
    %c0_40 = arith.constant 0 : index
    %97 = vector.load %arg7[%c0_38, %c0_39, %c0_40] : memref<2x1x32xf32, #tpu.memory_space<vmem>>, vector<1x1x32xf32>
    %98 = vector.shape_cast %97 : vector<1x1x32xf32> to vector<1x32xf32>
    %cst_41 = arith.constant dense<0.000000e+00> : vector<16xf32>
    %99 = vector.multi_reduction <add>, %94, %cst_41 [1] : vector<16x32xf32> to vector<16xf32>
    %100 = vector.shape_cast %99 : vector<16xf32> to vector<16x1xf32>
    %cst_42 = arith.constant 3.200000e+01 : f32
    %101 = vector.broadcast %cst_42 : f32 to vector<16x1xf32>
    %102 = arith.divf %100, %101 : vector<16x1xf32>
    %103 = vector.broadcast %102 : vector<16x1xf32> to vector<16x32xf32>
    %104 = arith.subf %94, %103 : vector<16x32xf32>
    %105 = arith.mulf %104, %104 : vector<16x32xf32>
    %cst_43 = arith.constant dense<0.000000e+00> : vector<16xf32>
    %106 = vector.multi_reduction <add>, %105, %cst_43 [1] : vector<16x32xf32> to vector<16xf32>
    %107 = vector.shape_cast %106 : vector<16xf32> to vector<16x1xf32>
    %cst_44 = arith.constant 3.200000e+01 : f32
    %108 = vector.broadcast %cst_44 : f32 to vector<16x1xf32>
    %109 = arith.divf %107, %108 : vector<16x1xf32>
    %cst_45 = arith.constant 9.99999974E-6 : f32
    %110 = vector.broadcast %cst_45 : f32 to vector<16x1xf32>
    %111 = arith.addf %109, %110 : vector<16x1xf32>
    %112 = math.rsqrt %111 : vector<16x1xf32>
    %113 = vector.broadcast %112 : vector<16x1xf32> to vector<16x32xf32>
    %114 = arith.mulf %104, %113 : vector<16x32xf32>
    %115 = vector.broadcast %96 : vector<1x32xf32> to vector<16x32xf32>
    %116 = arith.mulf %114, %115 : vector<16x32xf32>
    %117 = vector.broadcast %98 : vector<1x32xf32> to vector<16x32xf32>
    %118 = arith.addf %116, %117 : vector<16x32xf32>
    %c0_46 = arith.constant 0 : index
    %c0_47 = arith.constant 0 : index
    %c0_48 = arith.constant 0 : index
    %119 = vector.load %arg10[%c0_46, %c0_47, %c0_48] : memref<2x32x128xf32, #tpu.memory_space<vmem>>, vector<1x32x128xf32>
    %120 = vector.shape_cast %119 : vector<1x32x128xf32> to vector<32x128xf32>
    %cst_49 = arith.constant dense<0.000000e+00> : vector<16x128xf32>
    %121 = tpu.matmul %118, %120, %cst_49 {dimension_numbers = #tpu.dot_dimension_numbers<[1], [0], [0], [1], [0, 0, 1, 1], [], []>} : vector<16x32xf32>, vector<32x128xf32>, vector<16x128xf32> -> vector<16x128xf32>
    %c0_50 = arith.constant 0 : index
    %c0_51 = arith.constant 0 : index
    %c0_52 = arith.constant 0 : index
    %122 = vector.load %arg11[%c0_50, %c0_51, %c0_52] : memref<2x1x128xf32, #tpu.memory_space<vmem>>, vector<1x1x128xf32>
    %123 = vector.shape_cast %122 : vector<1x1x128xf32> to vector<1x128xf32>
    %124 = vector.broadcast %123 : vector<1x128xf32> to vector<16x128xf32>
    %125 = arith.addf %121, %124 : vector<16x128xf32>
    %cst_53 = arith.constant 0.000000e+00 : f32
    %126 = vector.broadcast %cst_53 : f32 to vector<16x128xf32>
    %127 = arith.maximumf %125, %126 : vector<16x128xf32>
    %c0_54 = arith.constant 0 : index
    %c0_55 = arith.constant 0 : index
    %c0_56 = arith.constant 0 : index
    %128 = vector.load %arg12[%c0_54, %c0_55, %c0_56] : memref<2x128x32xf32, #tpu.memory_space<vmem>>, vector<1x128x32xf32>
    %129 = vector.shape_cast %128 : vector<1x128x32xf32> to vector<128x32xf32>
    %cst_57 = arith.constant dense<0.000000e+00> : vector<16x32xf32>
    %130 = tpu.matmul %127, %129, %cst_57 {dimension_numbers = #tpu.dot_dimension_numbers<[1], [0], [0], [1], [0, 0, 1, 1], [], []>} : vector<16x128xf32>, vector<128x32xf32>, vector<16x32xf32> -> vector<16x32xf32>
    %c0_58 = arith.constant 0 : index
    %c0_59 = arith.constant 0 : index
    %c0_60 = arith.constant 0 : index
    %131 = vector.load %arg13[%c0_58, %c0_59, %c0_60] : memref<2x1x32xf32, #tpu.memory_space<vmem>>, vector<1x1x32xf32>
    %132 = vector.shape_cast %131 : vector<1x1x32xf32> to vector<1x32xf32>
    %133 = vector.broadcast %132 : vector<1x32xf32> to vector<16x32xf32>
    %134 = arith.addf %130, %133 : vector<16x32xf32>
    %135 = arith.addf %134, %118 : vector<16x32xf32>
    %c0_61 = arith.constant 0 : index
    %c0_62 = arith.constant 0 : index
    %c0_63 = arith.constant 0 : index
    %136 = vector.load %arg8[%c0_61, %c0_62, %c0_63] : memref<2x1x32xf32, #tpu.memory_space<vmem>>, vector<1x1x32xf32>
    %137 = vector.shape_cast %136 : vector<1x1x32xf32> to vector<1x32xf32>
    %c0_64 = arith.constant 0 : index
    %c0_65 = arith.constant 0 : index
    %c0_66 = arith.constant 0 : index
    %138 = vector.load %arg9[%c0_64, %c0_65, %c0_66] : memref<2x1x32xf32, #tpu.memory_space<vmem>>, vector<1x1x32xf32>
    %139 = vector.shape_cast %138 : vector<1x1x32xf32> to vector<1x32xf32>
    %cst_67 = arith.constant dense<0.000000e+00> : vector<16xf32>
    %140 = vector.multi_reduction <add>, %135, %cst_67 [1] : vector<16x32xf32> to vector<16xf32>
    %141 = vector.shape_cast %140 : vector<16xf32> to vector<16x1xf32>
    %cst_68 = arith.constant 3.200000e+01 : f32
    %142 = vector.broadcast %cst_68 : f32 to vector<16x1xf32>
    %143 = arith.divf %141, %142 : vector<16x1xf32>
    %144 = vector.broadcast %143 : vector<16x1xf32> to vector<16x32xf32>
    %145 = arith.subf %135, %144 : vector<16x32xf32>
    %146 = arith.mulf %145, %145 : vector<16x32xf32>
    %cst_69 = arith.constant dense<0.000000e+00> : vector<16xf32>
    %147 = vector.multi_reduction <add>, %146, %cst_69 [1] : vector<16x32xf32> to vector<16xf32>
    %148 = vector.shape_cast %147 : vector<16xf32> to vector<16x1xf32>
    %cst_70 = arith.constant 3.200000e+01 : f32
    %149 = vector.broadcast %cst_70 : f32 to vector<16x1xf32>
    %150 = arith.divf %148, %149 : vector<16x1xf32>
    %cst_71 = arith.constant 9.99999974E-6 : f32
    %151 = vector.broadcast %cst_71 : f32 to vector<16x1xf32>
    %152 = arith.addf %150, %151 : vector<16x1xf32>
    %153 = math.rsqrt %152 : vector<16x1xf32>
    %154 = vector.broadcast %153 : vector<16x1xf32> to vector<16x32xf32>
    %155 = arith.mulf %145, %154 : vector<16x32xf32>
    %156 = vector.broadcast %137 : vector<1x32xf32> to vector<16x32xf32>
    %157 = arith.mulf %155, %156 : vector<16x32xf32>
    %158 = vector.broadcast %139 : vector<1x32xf32> to vector<16x32xf32>
    %159 = arith.addf %157, %158 : vector<16x32xf32>
    %c1 = arith.constant 1 : index
    %c0_72 = arith.constant 0 : index
    %c0_73 = arith.constant 0 : index
    %160 = vector.load %arg1[%c1, %c0_72, %c0_73] : memref<2x32x32xf32, #tpu.memory_space<vmem>>, vector<1x32x32xf32>
    %161 = vector.shape_cast %160 : vector<1x32x32xf32> to vector<32x32xf32>
    %cst_74 = arith.constant dense<0.000000e+00> : vector<16x32xf32>
    %162 = tpu.matmul %159, %161, %cst_74 {dimension_numbers = #tpu.dot_dimension_numbers<[1], [0], [0], [1], [0, 0, 1, 1], [], []>} : vector<16x32xf32>, vector<32x32xf32>, vector<16x32xf32> -> vector<16x32xf32>
    %c1_75 = arith.constant 1 : index
    %c0_76 = arith.constant 0 : index
    %c0_77 = arith.constant 0 : index
    %163 = vector.load %arg2[%c1_75, %c0_76, %c0_77] : memref<2x32x32xf32, #tpu.memory_space<vmem>>, vector<1x32x32xf32>
    %164 = vector.shape_cast %163 : vector<1x32x32xf32> to vector<32x32xf32>
    %cst_78 = arith.constant dense<0.000000e+00> : vector<16x32xf32>
    %165 = tpu.matmul %159, %164, %cst_78 {dimension_numbers = #tpu.dot_dimension_numbers<[1], [0], [0], [1], [0, 0, 1, 1], [], []>} : vector<16x32xf32>, vector<32x32xf32>, vector<16x32xf32> -> vector<16x32xf32>
    %c1_79 = arith.constant 1 : index
    %c0_80 = arith.constant 0 : index
    %c0_81 = arith.constant 0 : index
    %166 = vector.load %arg3[%c1_79, %c0_80, %c0_81] : memref<2x32x32xf32, #tpu.memory_space<vmem>>, vector<1x32x32xf32>
    %167 = vector.shape_cast %166 : vector<1x32x32xf32> to vector<32x32xf32>
    %cst_82 = arith.constant dense<0.000000e+00> : vector<16x32xf32>
    %168 = tpu.matmul %159, %167, %cst_82 {dimension_numbers = #tpu.dot_dimension_numbers<[1], [0], [0], [1], [0, 0, 1, 1], [], []>} : vector<16x32xf32>, vector<32x32xf32>, vector<16x32xf32> -> vector<16x32xf32>
    %169 = vector.extract_strided_slice %162 {offsets = [0, 0], sizes = [16, 8], strides = [1, 1]} : vector<16x32xf32> to vector<16x8xf32>
    %170 = vector.shape_cast %169 : vector<16x8xf32> to vector<2x8x8xf32>
    %171 = vector.extract_strided_slice %165 {offsets = [0, 0], sizes = [16, 8], strides = [1, 1]} : vector<16x32xf32> to vector<16x8xf32>
    %172 = vector.shape_cast %171 : vector<16x8xf32> to vector<2x8x8xf32>
    %173 = vector.extract_strided_slice %168 {offsets = [0, 0], sizes = [16, 8], strides = [1, 1]} : vector<16x32xf32> to vector<16x8xf32>
    %174 = vector.shape_cast %173 : vector<16x8xf32> to vector<2x8x8xf32>
    "tpu.trace_start"() <{level = 10 : i32, message = "bqd,bkd->bqk"}> : () -> ()
    %cst_83 = arith.constant dense<0.000000e+00> : vector<2x8x8xf32>
    %175 = tpu.matmul %170, %172, %cst_83 {dimension_numbers = #tpu.dot_dimension_numbers<[2], [2], [1], [1], [0, 0, 0, 1, 1, 1], [0], [0]>} : vector<2x8x8xf32>, vector<2x8x8xf32>, vector<2x8x8xf32> -> vector<2x8x8xf32>
    "tpu.trace_stop"() : () -> ()
    %cst_84 = arith.constant dense<0xFF800000> : vector<2x8xf32>
    %176 = vector.multi_reduction <maximumf>, %175, %cst_84 [2] : vector<2x8x8xf32> to vector<2x8xf32>
    %177 = vector.shape_cast %176 : vector<2x8xf32> to vector<2x8x1xf32>
    %178 = vector.broadcast %177 : vector<2x8x1xf32> to vector<2x8x8xf32>
    %179 = arith.subf %175, %178 : vector<2x8x8xf32>
    %180 = math.exp %179 : vector<2x8x8xf32>
    %cst_85 = arith.constant dense<0.000000e+00> : vector<2x8xf32>
    %181 = vector.multi_reduction <add>, %180, %cst_85 [2] : vector<2x8x8xf32> to vector<2x8xf32>
    %182 = vector.shape_cast %181 : vector<2x8xf32> to vector<2x8x1xf32>
    %183 = tpu.reciprocal %182 {approx = true} : vector<2x8x1xf32> -> vector<2x8x1xf32>
    %184 = vector.broadcast %183 : vector<2x8x1xf32> to vector<2x8x8xf32>
    %185 = arith.mulf %180, %184 : vector<2x8x8xf32>
    "tpu.trace_start"() <{level = 10 : i32, message = "bqk,bkd->bqd"}> : () -> ()
    %cst_86 = arith.constant dense<0.000000e+00> : vector<2x8x8xf32>
    %186 = tpu.matmul %185, %174, %cst_86 {dimension_numbers = #tpu.dot_dimension_numbers<[2], [1], [1], [2], [0, 0, 0, 1, 1, 2], [0], [0]>} : vector<2x8x8xf32>, vector<2x8x8xf32>, vector<2x8x8xf32> -> vector<2x8x8xf32>
    "tpu.trace_stop"() : () -> ()
    %187 = vector.shape_cast %186 : vector<2x8x8xf32> to vector<16x8xf32>
    %188 = vector.extract_strided_slice %162 {offsets = [0, 8], sizes = [16, 8], strides = [1, 1]} : vector<16x32xf32> to vector<16x8xf32>
    %189 = vector.shape_cast %188 : vector<16x8xf32> to vector<2x8x8xf32>
    %190 = vector.extract_strided_slice %165 {offsets = [0, 8], sizes = [16, 8], strides = [1, 1]} : vector<16x32xf32> to vector<16x8xf32>
    %191 = vector.shape_cast %190 : vector<16x8xf32> to vector<2x8x8xf32>
    %192 = vector.extract_strided_slice %168 {offsets = [0, 8], sizes = [16, 8], strides = [1, 1]} : vector<16x32xf32> to vector<16x8xf32>
    %193 = vector.shape_cast %192 : vector<16x8xf32> to vector<2x8x8xf32>
    "tpu.trace_start"() <{level = 10 : i32, message = "bqd,bkd->bqk"}> : () -> ()
    %cst_87 = arith.constant dense<0.000000e+00> : vector<2x8x8xf32>
    %194 = tpu.matmul %189, %191, %cst_87 {dimension_numbers = #tpu.dot_dimension_numbers<[2], [2], [1], [1], [0, 0, 0, 1, 1, 1], [0], [0]>} : vector<2x8x8xf32>, vector<2x8x8xf32>, vector<2x8x8xf32> -> vector<2x8x8xf32>
    "tpu.trace_stop"() : () -> ()
    %cst_88 = arith.constant dense<0xFF800000> : vector<2x8xf32>
    %195 = vector.multi_reduction <maximumf>, %194, %cst_88 [2] : vector<2x8x8xf32> to vector<2x8xf32>
    %196 = vector.shape_cast %195 : vector<2x8xf32> to vector<2x8x1xf32>
    %197 = vector.broadcast %196 : vector<2x8x1xf32> to vector<2x8x8xf32>
    %198 = arith.subf %194, %197 : vector<2x8x8xf32>
    %199 = math.exp %198 : vector<2x8x8xf32>
    %cst_89 = arith.constant dense<0.000000e+00> : vector<2x8xf32>
    %200 = vector.multi_reduction <add>, %199, %cst_89 [2] : vector<2x8x8xf32> to vector<2x8xf32>
    %201 = vector.shape_cast %200 : vector<2x8xf32> to vector<2x8x1xf32>
    %202 = tpu.reciprocal %201 {approx = true} : vector<2x8x1xf32> -> vector<2x8x1xf32>
    %203 = vector.broadcast %202 : vector<2x8x1xf32> to vector<2x8x8xf32>
    %204 = arith.mulf %199, %203 : vector<2x8x8xf32>
    "tpu.trace_start"() <{level = 10 : i32, message = "bqk,bkd->bqd"}> : () -> ()
    %cst_90 = arith.constant dense<0.000000e+00> : vector<2x8x8xf32>
    %205 = tpu.matmul %204, %193, %cst_90 {dimension_numbers = #tpu.dot_dimension_numbers<[2], [1], [1], [2], [0, 0, 0, 1, 1, 2], [0], [0]>} : vector<2x8x8xf32>, vector<2x8x8xf32>, vector<2x8x8xf32> -> vector<2x8x8xf32>
    "tpu.trace_stop"() : () -> ()
    %206 = vector.shape_cast %205 : vector<2x8x8xf32> to vector<16x8xf32>
    %207 = vector.extract_strided_slice %162 {offsets = [0, 16], sizes = [16, 8], strides = [1, 1]} : vector<16x32xf32> to vector<16x8xf32>
    %208 = vector.shape_cast %207 : vector<16x8xf32> to vector<2x8x8xf32>
    %209 = vector.extract_strided_slice %165 {offsets = [0, 16], sizes = [16, 8], strides = [1, 1]} : vector<16x32xf32> to vector<16x8xf32>
    %210 = vector.shape_cast %209 : vector<16x8xf32> to vector<2x8x8xf32>
    %211 = vector.extract_strided_slice %168 {offsets = [0, 16], sizes = [16, 8], strides = [1, 1]} : vector<16x32xf32> to vector<16x8xf32>
    %212 = vector.shape_cast %211 : vector<16x8xf32> to vector<2x8x8xf32>
    "tpu.trace_start"() <{level = 10 : i32, message = "bqd,bkd->bqk"}> : () -> ()
    %cst_91 = arith.constant dense<0.000000e+00> : vector<2x8x8xf32>
    %213 = tpu.matmul %208, %210, %cst_91 {dimension_numbers = #tpu.dot_dimension_numbers<[2], [2], [1], [1], [0, 0, 0, 1, 1, 1], [0], [0]>} : vector<2x8x8xf32>, vector<2x8x8xf32>, vector<2x8x8xf32> -> vector<2x8x8xf32>
    "tpu.trace_stop"() : () -> ()
    %cst_92 = arith.constant dense<0xFF800000> : vector<2x8xf32>
    %214 = vector.multi_reduction <maximumf>, %213, %cst_92 [2] : vector<2x8x8xf32> to vector<2x8xf32>
    %215 = vector.shape_cast %214 : vector<2x8xf32> to vector<2x8x1xf32>
    %216 = vector.broadcast %215 : vector<2x8x1xf32> to vector<2x8x8xf32>
    %217 = arith.subf %213, %216 : vector<2x8x8xf32>
    %218 = math.exp %217 : vector<2x8x8xf32>
    %cst_93 = arith.constant dense<0.000000e+00> : vector<2x8xf32>
    %219 = vector.multi_reduction <add>, %218, %cst_93 [2] : vector<2x8x8xf32> to vector<2x8xf32>
    %220 = vector.shape_cast %219 : vector<2x8xf32> to vector<2x8x1xf32>
    %221 = tpu.reciprocal %220 {approx = true} : vector<2x8x1xf32> -> vector<2x8x1xf32>
    %222 = vector.broadcast %221 : vector<2x8x1xf32> to vector<2x8x8xf32>
    %223 = arith.mulf %218, %222 : vector<2x8x8xf32>
    "tpu.trace_start"() <{level = 10 : i32, message = "bqk,bkd->bqd"}> : () -> ()
    %cst_94 = arith.constant dense<0.000000e+00> : vector<2x8x8xf32>
    %224 = tpu.matmul %223, %212, %cst_94 {dimension_numbers = #tpu.dot_dimension_numbers<[2], [1], [1], [2], [0, 0, 0, 1, 1, 2], [0], [0]>} : vector<2x8x8xf32>, vector<2x8x8xf32>, vector<2x8x8xf32> -> vector<2x8x8xf32>
    "tpu.trace_stop"() : () -> ()
    %225 = vector.shape_cast %224 : vector<2x8x8xf32> to vector<16x8xf32>
    %226 = vector.extract_strided_slice %162 {offsets = [0, 24], sizes = [16, 8], strides = [1, 1]} : vector<16x32xf32> to vector<16x8xf32>
    %227 = vector.shape_cast %226 : vector<16x8xf32> to vector<2x8x8xf32>
    %228 = vector.extract_strided_slice %165 {offsets = [0, 24], sizes = [16, 8], strides = [1, 1]} : vector<16x32xf32> to vector<16x8xf32>
    %229 = vector.shape_cast %228 : vector<16x8xf32> to vector<2x8x8xf32>
    %230 = vector.extract_strided_slice %168 {offsets = [0, 24], sizes = [16, 8], strides = [1, 1]} : vector<16x32xf32> to vector<16x8xf32>
    %231 = vector.shape_cast %230 : vector<16x8xf32> to vector<2x8x8xf32>
    "tpu.trace_start"() <{level = 10 : i32, message = "bqd,bkd->bqk"}> : () -> ()
    %cst_95 = arith.constant dense<0.000000e+00> : vector<2x8x8xf32>
    %232 = tpu.matmul %227, %229, %cst_95 {dimension_numbers = #tpu.dot_dimension_numbers<[2], [2], [1], [1], [0, 0, 0, 1, 1, 1], [0], [0]>} : vector<2x8x8xf32>, vector<2x8x8xf32>, vector<2x8x8xf32> -> vector<2x8x8xf32>
    "tpu.trace_stop"() : () -> ()
    %cst_96 = arith.constant dense<0xFF800000> : vector<2x8xf32>
    %233 = vector.multi_reduction <maximumf>, %232, %cst_96 [2] : vector<2x8x8xf32> to vector<2x8xf32>
    %234 = vector.shape_cast %233 : vector<2x8xf32> to vector<2x8x1xf32>
    %235 = vector.broadcast %234 : vector<2x8x1xf32> to vector<2x8x8xf32>
    %236 = arith.subf %232, %235 : vector<2x8x8xf32>
    %237 = math.exp %236 : vector<2x8x8xf32>
    %cst_97 = arith.constant dense<0.000000e+00> : vector<2x8xf32>
    %238 = vector.multi_reduction <add>, %237, %cst_97 [2] : vector<2x8x8xf32> to vector<2x8xf32>
    %239 = vector.shape_cast %238 : vector<2x8xf32> to vector<2x8x1xf32>
    %240 = tpu.reciprocal %239 {approx = true} : vector<2x8x1xf32> -> vector<2x8x1xf32>
    %241 = vector.broadcast %240 : vector<2x8x1xf32> to vector<2x8x8xf32>
    %242 = arith.mulf %237, %241 : vector<2x8x8xf32>
    "tpu.trace_start"() <{level = 10 : i32, message = "bqk,bkd->bqd"}> : () -> ()
    %cst_98 = arith.constant dense<0.000000e+00> : vector<2x8x8xf32>
    %243 = tpu.matmul %242, %231, %cst_98 {dimension_numbers = #tpu.dot_dimension_numbers<[2], [1], [1], [2], [0, 0, 0, 1, 1, 2], [0], [0]>} : vector<2x8x8xf32>, vector<2x8x8xf32>, vector<2x8x8xf32> -> vector<2x8x8xf32>
    "tpu.trace_stop"() : () -> ()
    %244 = vector.shape_cast %243 : vector<2x8x8xf32> to vector<16x8xf32>
    %245 = tpu.concatenate %187, %206, %225, %244 in 1 : vector<16x8xf32>, vector<16x8xf32>, vector<16x8xf32>, vector<16x8xf32> -> vector<16x32xf32>
    %c1_99 = arith.constant 1 : index
    %c0_100 = arith.constant 0 : index
    %c0_101 = arith.constant 0 : index
    %246 = vector.load %arg4[%c1_99, %c0_100, %c0_101] : memref<2x32x32xf32, #tpu.memory_space<vmem>>, vector<1x32x32xf32>
    %247 = vector.shape_cast %246 : vector<1x32x32xf32> to vector<32x32xf32>
    %cst_102 = arith.constant dense<0.000000e+00> : vector<16x32xf32>
    %248 = tpu.matmul %245, %247, %cst_102 {dimension_numbers = #tpu.dot_dimension_numbers<[1], [0], [0], [1], [0, 0, 1, 1], [], []>} : vector<16x32xf32>, vector<32x32xf32>, vector<16x32xf32> -> vector<16x32xf32>
    %c1_103 = arith.constant 1 : index
    %c0_104 = arith.constant 0 : index
    %c0_105 = arith.constant 0 : index
    %249 = vector.load %arg5[%c1_103, %c0_104, %c0_105] : memref<2x1x32xf32, #tpu.memory_space<vmem>>, vector<1x1x32xf32>
    %250 = vector.shape_cast %249 : vector<1x1x32xf32> to vector<1x32xf32>
    %251 = vector.broadcast %250 : vector<1x32xf32> to vector<16x32xf32>
    %252 = arith.addf %248, %251 : vector<16x32xf32>
    %253 = arith.addf %252, %159 : vector<16x32xf32>
    %c1_106 = arith.constant 1 : index
    %c0_107 = arith.constant 0 : index
    %c0_108 = arith.constant 0 : index
    %254 = vector.load %arg6[%c1_106, %c0_107, %c0_108] : memref<2x1x32xf32, #tpu.memory_space<vmem>>, vector<1x1x32xf32>
    %255 = vector.shape_cast %254 : vector<1x1x32xf32> to vector<1x32xf32>
    %c1_109 = arith.constant 1 : index
    %c0_110 = arith.constant 0 : index
    %c0_111 = arith.constant 0 : index
    %256 = vector.load %arg7[%c1_109, %c0_110, %c0_111] : memref<2x1x32xf32, #tpu.memory_space<vmem>>, vector<1x1x32xf32>
    %257 = vector.shape_cast %256 : vector<1x1x32xf32> to vector<1x32xf32>
    %cst_112 = arith.constant dense<0.000000e+00> : vector<16xf32>
    %258 = vector.multi_reduction <add>, %253, %cst_112 [1] : vector<16x32xf32> to vector<16xf32>
    %259 = vector.shape_cast %258 : vector<16xf32> to vector<16x1xf32>
    %cst_113 = arith.constant 3.200000e+01 : f32
    %260 = vector.broadcast %cst_113 : f32 to vector<16x1xf32>
    %261 = arith.divf %259, %260 : vector<16x1xf32>
    %262 = vector.broadcast %261 : vector<16x1xf32> to vector<16x32xf32>
    %263 = arith.subf %253, %262 : vector<16x32xf32>
    %264 = arith.mulf %263, %263 : vector<16x32xf32>
    %cst_114 = arith.constant dense<0.000000e+00> : vector<16xf32>
    %265 = vector.multi_reduction <add>, %264, %cst_114 [1] : vector<16x32xf32> to vector<16xf32>
    %266 = vector.shape_cast %265 : vector<16xf32> to vector<16x1xf32>
    %cst_115 = arith.constant 3.200000e+01 : f32
    %267 = vector.broadcast %cst_115 : f32 to vector<16x1xf32>
    %268 = arith.divf %266, %267 : vector<16x1xf32>
    %cst_116 = arith.constant 9.99999974E-6 : f32
    %269 = vector.broadcast %cst_116 : f32 to vector<16x1xf32>
    %270 = arith.addf %268, %269 : vector<16x1xf32>
    %271 = math.rsqrt %270 : vector<16x1xf32>
    %272 = vector.broadcast %271 : vector<16x1xf32> to vector<16x32xf32>
    %273 = arith.mulf %263, %272 : vector<16x32xf32>
    %274 = vector.broadcast %255 : vector<1x32xf32> to vector<16x32xf32>
    %275 = arith.mulf %273, %274 : vector<16x32xf32>
    %276 = vector.broadcast %257 : vector<1x32xf32> to vector<16x32xf32>
    %277 = arith.addf %275, %276 : vector<16x32xf32>
    %c1_117 = arith.constant 1 : index
    %c0_118 = arith.constant 0 : index
    %c0_119 = arith.constant 0 : index
    %278 = vector.load %arg10[%c1_117, %c0_118, %c0_119] : memref<2x32x128xf32, #tpu.memory_space<vmem>>, vector<1x32x128xf32>
    %279 = vector.shape_cast %278 : vector<1x32x128xf32> to vector<32x128xf32>
    %cst_120 = arith.constant dense<0.000000e+00> : vector<16x128xf32>
    %280 = tpu.matmul %277, %279, %cst_120 {dimension_numbers = #tpu.dot_dimension_numbers<[1], [0], [0], [1], [0, 0, 1, 1], [], []>} : vector<16x32xf32>, vector<32x128xf32>, vector<16x128xf32> -> vector<16x128xf32>
    %c1_121 = arith.constant 1 : index
    %c0_122 = arith.constant 0 : index
    %c0_123 = arith.constant 0 : index
    %281 = vector.load %arg11[%c1_121, %c0_122, %c0_123] : memref<2x1x128xf32, #tpu.memory_space<vmem>>, vector<1x1x128xf32>
    %282 = vector.shape_cast %281 : vector<1x1x128xf32> to vector<1x128xf32>
    %283 = vector.broadcast %282 : vector<1x128xf32> to vector<16x128xf32>
    %284 = arith.addf %280, %283 : vector<16x128xf32>
    %cst_124 = arith.constant 0.000000e+00 : f32
    %285 = vector.broadcast %cst_124 : f32 to vector<16x128xf32>
    %286 = arith.maximumf %284, %285 : vector<16x128xf32>
    %c1_125 = arith.constant 1 : index
    %c0_126 = arith.constant 0 : index
    %c0_127 = arith.constant 0 : index
    %287 = vector.load %arg12[%c1_125, %c0_126, %c0_127] : memref<2x128x32xf32, #tpu.memory_space<vmem>>, vector<1x128x32xf32>
    %288 = vector.shape_cast %287 : vector<1x128x32xf32> to vector<128x32xf32>
    %cst_128 = arith.constant dense<0.000000e+00> : vector<16x32xf32>
    %289 = tpu.matmul %286, %288, %cst_128 {dimension_numbers = #tpu.dot_dimension_numbers<[1], [0], [0], [1], [0, 0, 1, 1], [], []>} : vector<16x128xf32>, vector<128x32xf32>, vector<16x32xf32> -> vector<16x32xf32>
    %c1_129 = arith.constant 1 : index
    %c0_130 = arith.constant 0 : index
    %c0_131 = arith.constant 0 : index
    %290 = vector.load %arg13[%c1_129, %c0_130, %c0_131] : memref<2x1x32xf32, #tpu.memory_space<vmem>>, vector<1x1x32xf32>
    %291 = vector.shape_cast %290 : vector<1x1x32xf32> to vector<1x32xf32>
    %292 = vector.broadcast %291 : vector<1x32xf32> to vector<16x32xf32>
    %293 = arith.addf %289, %292 : vector<16x32xf32>
    %294 = arith.addf %293, %277 : vector<16x32xf32>
    %c1_132 = arith.constant 1 : index
    %c0_133 = arith.constant 0 : index
    %c0_134 = arith.constant 0 : index
    %295 = vector.load %arg8[%c1_132, %c0_133, %c0_134] : memref<2x1x32xf32, #tpu.memory_space<vmem>>, vector<1x1x32xf32>
    %296 = vector.shape_cast %295 : vector<1x1x32xf32> to vector<1x32xf32>
    %c1_135 = arith.constant 1 : index
    %c0_136 = arith.constant 0 : index
    %c0_137 = arith.constant 0 : index
    %297 = vector.load %arg9[%c1_135, %c0_136, %c0_137] : memref<2x1x32xf32, #tpu.memory_space<vmem>>, vector<1x1x32xf32>
    %298 = vector.shape_cast %297 : vector<1x1x32xf32> to vector<1x32xf32>
    %cst_138 = arith.constant dense<0.000000e+00> : vector<16xf32>
    %299 = vector.multi_reduction <add>, %294, %cst_138 [1] : vector<16x32xf32> to vector<16xf32>
    %300 = vector.shape_cast %299 : vector<16xf32> to vector<16x1xf32>
    %cst_139 = arith.constant 3.200000e+01 : f32
    %301 = vector.broadcast %cst_139 : f32 to vector<16x1xf32>
    %302 = arith.divf %300, %301 : vector<16x1xf32>
    %303 = vector.broadcast %302 : vector<16x1xf32> to vector<16x32xf32>
    %304 = arith.subf %294, %303 : vector<16x32xf32>
    %305 = arith.mulf %304, %304 : vector<16x32xf32>
    %cst_140 = arith.constant dense<0.000000e+00> : vector<16xf32>
    %306 = vector.multi_reduction <add>, %305, %cst_140 [1] : vector<16x32xf32> to vector<16xf32>
    %307 = vector.shape_cast %306 : vector<16xf32> to vector<16x1xf32>
    %cst_141 = arith.constant 3.200000e+01 : f32
    %308 = vector.broadcast %cst_141 : f32 to vector<16x1xf32>
    %309 = arith.divf %307, %308 : vector<16x1xf32>
    %cst_142 = arith.constant 9.99999974E-6 : f32
    %310 = vector.broadcast %cst_142 : f32 to vector<16x1xf32>
    %311 = arith.addf %309, %310 : vector<16x1xf32>
    %312 = math.rsqrt %311 : vector<16x1xf32>
    %313 = vector.broadcast %312 : vector<16x1xf32> to vector<16x32xf32>
    %314 = arith.mulf %304, %313 : vector<16x32xf32>
    %315 = vector.broadcast %296 : vector<1x32xf32> to vector<16x32xf32>
    %316 = arith.mulf %314, %315 : vector<16x32xf32>
    %317 = vector.broadcast %298 : vector<1x32xf32> to vector<16x32xf32>
    %318 = arith.addf %316, %317 : vector<16x32xf32>
    %319 = vector.extract_strided_slice %318 {offsets = [0, 0], sizes = [4, 32], strides = [1, 1]} : vector<16x32xf32> to vector<4x32xf32>
    %320 = vector.extract_strided_slice %318 {offsets = [4, 0], sizes = [4, 32], strides = [1, 1]} : vector<16x32xf32> to vector<4x32xf32>
    %321 = vector.extract_strided_slice %318 {offsets = [8, 0], sizes = [4, 32], strides = [1, 1]} : vector<16x32xf32> to vector<4x32xf32>
    %322 = vector.extract_strided_slice %318 {offsets = [12, 0], sizes = [4, 32], strides = [1, 1]} : vector<16x32xf32> to vector<4x32xf32>
    %323 = tpu.concatenate %319, %320, %321, %322 in 1 : vector<4x32xf32>, vector<4x32xf32>, vector<4x32xf32>, vector<4x32xf32> -> vector<4x128xf32>
    %c0_143 = arith.constant 0 : index
    %c0_144 = arith.constant 0 : index
    %324 = vector.load %arg14[%c0_143, %c0_144] : memref<4x128xf32, #tpu.memory_space<vmem>>, vector<4x128xf32>
    tpu.vector_store %arg14[%c0_143, %c0_144], %323 {strides = array<i32>} : memref<4x128xf32, #tpu.memory_space<vmem>>, vector<4x128xf32>,
    return
  }
}

</mosaic_0001>

<llo_original>
// kernel: encoder_forward.1
$region0: #{encoder_forward.1}
  #allocation0 [shape = 'u32[]', space=smem, size = 0x4, offset = 0x4, fixed_abs, tag = 'smem constant byte address 0x4 - core index']
  #allocation1 [shape = 'u32[144,128]{1,0:T(1,128)}', space=vmem, size = 0x12000, scoped, tag = 'internal scratch']
  %s0 = inlined_call_operand.hbm [shape: f32[16,32], index: 0, kind: input, shape index: {}]
  %s1 = inlined_call_operand.vmem [shape: f32[2,32,32], index: 1, kind: input, shape index: {}]
  %s2 = inlined_call_operand.vmem [shape: f32[2,32,32], index: 2, kind: input, shape index: {}]
  %s3 = inlined_call_operand.vmem [shape: f32[2,32,32], index: 3, kind: input, shape index: {}]
  %s4 = inlined_call_operand.vmem [shape: f32[2,32,32], index: 4, kind: input, shape index: {}]
  %s5 = inlined_call_operand.vmem [shape: f32[2,1,32], index: 5, kind: input, shape index: {}]
  %s6 = inlined_call_operand.vmem [shape: f32[2,1,32], index: 6, kind: input, shape index: {}]
  %s7 = inlined_call_operand.vmem [shape: f32[2,1,32], index: 7, kind: input, shape index: {}]
  %s8 = inlined_call_operand.vmem [shape: f32[2,1,32], index: 8, kind: input, shape index: {}]
  %s9 = inlined_call_operand.vmem [shape: f32[2,1,32], index: 9, kind: input, shape index: {}]
  %s10 = inlined_call_operand.vmem [shape: f32[2,32,128], index: 10, kind: input, shape index: {}]
  %s11 = inlined_call_operand.vmem [shape: f32[2,1,128], index: 11, kind: input, shape index: {}]
  %s12 = inlined_call_operand.vmem [shape: f32[2,128,32], index: 12, kind: input, shape index: {}]
  %s13 = inlined_call_operand.vmem [shape: f32[2,1,32], index: 13, kind: input, shape index: {}]
  %s14 = inlined_call_operand.vmem [shape: f32[4,128], index: 14, kind: output, shape index: {}]
  %s15 = sld [smem:[#allocation0]]
  $region70: #{encoder_forward.1} parent=0
    _
  %s17 = ssub.s32 1, %s15
  %s18 = scalar_select 0, %s17, %s15
  $region1: #{encoder_forward.1} parent=0
    #allocation2 [shape = 'u8[8192]{0}', space=vmem, size = 0x2000, scoped, tag = 'input window, operand 0, single buffered']
    #allocation3 [shape = 's32[1]{0}', space=sflag, size = 0x4, scoped, tag = 'scoped memory for encoder_forward.1']
    %19 = vsyncpa [#allocation3], 0
    // Predicated region
    $region2: #{encoder_forward.1} parent=1 // pred_check
      _
    $region3: #{encoder_forward.1} parent=1 // pred_check_branch
      %21 = sbr.rel (0) target = $region5
    $region4: #{encoder_forward.1} parent=1 // pred_region
      %s23 = ssub.s32 256, 256
      %24 = vsyncadd [#allocation3], %s23
      %s25 = sshll.u32 [#allocation2], 4
      %s26 = int_to_ptr.vmem [resolvable:$true] %s25
      %31 = dma.hbm_to_vmem [thread:$0]  %s0, 256, %s26, [#allocation3], 128, 128, 8
    $region5: #{encoder_forward.1} parent=1 // pred_fallthru
      _
    // Predicated region
    $region6: #{encoder_forward.1} parent=1 // pred_check
      _
    $region7: #{encoder_forward.1} parent=1 // pred_check_branch
      %33 = sbr.rel (0) target = $region9
    $region8: #{encoder_forward.1} parent=1 // pred_region
      _
    $region9: #{encoder_forward.1} parent=1 // pred_fallthru
      _
    // Predicated region
    $region10: #{encoder_forward.1} parent=1 // pred_check
      _
    $region11: #{encoder_forward.1} parent=1 // pred_check_branch
      %35 = sbr.rel (0) target = $region13
    $region12: #{encoder_forward.1} parent=1 // pred_region
      _
    $region13: #{encoder_forward.1} parent=1 // pred_fallthru
      _
    // Predicated region
    $region14: #{encoder_forward.1} parent=1 // pred_check
      _
    $region15: #{encoder_forward.1} parent=1 // pred_check_branch
      %37 = sbr.rel (0) target = $region17
    $region16: #{encoder_forward.1} parent=1 // pred_region
      _
    $region17: #{encoder_forward.1} parent=1 // pred_fallthru
      _
    // Predicated region
    $region18: #{encoder_forward.1} parent=1 // pred_check
      _
    $region19: #{encoder_forward.1} parent=1 // pred_check_branch
      %39 = sbr.rel (0) target = $region21
    $region20: #{encoder_forward.1} parent=1 // pred_region
      _
    $region21: #{encoder_forward.1} parent=1 // pred_fallthru
      _
    // Predicated region
    $region22: #{encoder_forward.1} parent=1 // pred_check
      _
    $region23: #{encoder_forward.1} parent=1 // pred_check_branch
      %41 = sbr.rel (0) target = $region25
    $region24: #{encoder_forward.1} parent=1 // pred_region
      _
    $region25: #{encoder_forward.1} parent=1 // pred_fallthru
      _
    // Predicated region
    $region26: #{encoder_forward.1} parent=1 // pred_check
      _
    $region27: #{encoder_forward.1} parent=1 // pred_check_branch
      %43 = sbr.rel (0) target = $region29
    $region28: #{encoder_forward.1} parent=1 // pred_region
      _
    $region29: #{encoder_forward.1} parent=1 // pred_fallthru
      _
    // Predicated region
    $region30: #{encoder_forward.1} parent=1 // pred_check
      _
    $region31: #{encoder_forward.1} parent=1 // pred_check_branch
      %45 = sbr.rel (0) target = $region33
    $region32: #{encoder_forward.1} parent=1 // pred_region
      _
    $region33: #{encoder_forward.1} parent=1 // pred_fallthru
      _
    // Predicated region
    $region34: #{encoder_forward.1} parent=1 // pred_check
      _
    $region35: #{encoder_forward.1} parent=1 // pred_check_branch
      %47 = sbr.rel (0) target = $region37
    $region36: #{encoder_forward.1} parent=1 // pred_region
      _
    $region37: #{encoder_forward.1} parent=1 // pred_fallthru
      _
    // Predicated region
    $region38: #{encoder_forward.1} parent=1 // pred_check
      _
    $region39: #{encoder_forward.1} parent=1 // pred_check_branch
      %49 = sbr.rel (0) target = $region41
    $region40: #{encoder_forward.1} parent=1 // pred_region
      _
    $region41: #{encoder_forward.1} parent=1 // pred_fallthru
      _
    // Predicated region
    $region42: #{encoder_forward.1} parent=1 // pred_check
      _
    $region43: #{encoder_forward.1} parent=1 // pred_check_branch
      %51 = sbr.rel (0) target = $region45
    $region44: #{encoder_forward.1} parent=1 // pred_region
      _
    $region45: #{encoder_forward.1} parent=1 // pred_fallthru
      _
    // Predicated region
    $region46: #{encoder_forward.1} parent=1 // pred_check
      _
    $region47: #{encoder_forward.1} parent=1 // pred_check_branch
      %53 = sbr.rel (0) target = $region49
    $region48: #{encoder_forward.1} parent=1 // pred_region
      _
    $region49: #{encoder_forward.1} parent=1 // pred_fallthru
      _
    // Predicated region
    $region50: #{encoder_forward.1} parent=1 // pred_check
      _
    $region51: #{encoder_forward.1} parent=1 // pred_check_branch
      %55 = sbr.rel (0) target = $region53
    $region52: #{encoder_forward.1} parent=1 // pred_region
      _
    $region53: #{encoder_forward.1} parent=1 // pred_fallthru
      _
    // Predicated region
    $region54: #{encoder_forward.1} parent=1 // pred_check
      _
    $region55: #{encoder_forward.1} parent=1 // pred_check_branch
      %57 = sbr.rel (0) target = $region57
    $region56: #{encoder_forward.1} parent=1 // pred_region
      _
    $region57: #{encoder_forward.1} parent=1 // pred_fallthru
      _
    // Predicated region
    $region58: #{encoder_forward.1} parent=1 // pred_check
      _
    $region59: #{encoder_forward.1} parent=1 // pred_check_branch
      %59 = sbr.rel (0) target = $region61
    $region60: #{encoder_forward.1} parent=1 // pred_region
      %60 = dma.done [#allocation3], 256
    $region61: #{encoder_forward.1} parent=1 // pred_fallthru
      _
    %v61 = vld [vmem:[#allocation2] sm:$0xff]
    %v62 = vld [vmem:[#allocation2 + $0x8] sm:$0xff]
    %v63 = vld [vmem:[%s1] sm:$0xff]
    %v64 = vld [vmem:[%s1 + $0x8] sm:$0xff]
    %v65 = vld [vmem:[%s1 + $0x10] sm:$0xff]
    %v66 = vld [vmem:[%s1 + $0x18] sm:$0xff]
    %vm67 = vcmask 261120
    %v69 = vsel %vm67, %v61, 0
    %v72 = vsel %vm67, %v62, 0
    %74 = vmatprep.subr.mxu0 0.0
    %75 = vmatpush1.msra.mxu0 %v63
    %76 = vmatprep.subr.mxu0 0.0
    %77 = vmatpush1.msra.mxu0 %v64
    %78 = vmatprep.subr.mxu0 0.0
    %79 = vmatpush1.msra.mxu0 %v65
    %80 = vmatprep.subr.mxu0 0.0
    %81 = vmatpush1.msra.mxu0 %v66
    %82 = vmatprep.subr.mxu0 0.0
    %83 = vmatpush1.msra.mxu0 0.0
    %84 = vmatprep.subr.mxu0 0.0
    %85 = vmatpush1.msra.mxu0 0.0
    %86 = vmatprep.subr.mxu0 0.0
    %87 = vmatpush1.msra.mxu0 0.0
    %88 = vmatprep.subr.mxu0 0.0
    %89 = vmatpush1.msra.mxu0 0.0
    %90 = vmatprep.subr.mxu0 0.0
    %91 = vmatpush1.msra.mxu0 0.0
    %92 = vmatprep.subr.mxu0 0.0
    %93 = vmatpush1.msra.mxu0 0.0
    %94 = vmatprep.subr.mxu0 0.0
    %95 = vmatpush1.msra.mxu0 0.0
    %96 = vmatprep.subr.mxu0 0.0
    %97 = vmatpush1.msra.mxu0 0.0
    %98 = vmatprep.subr.mxu0 0.0
    %99 = vmatpush1.msra.mxu0 0.0
    %100 = vmatprep.subr.mxu0 0.0
    %101 = vmatpush1.msra.mxu0 0.0
    %102 = vmatprep.subr.mxu0 0.0
    %103 = vmatpush1.msra.mxu0 0.0
    %104 = vmatprep.subr.mxu0 0.0
    %105 = vmatpush1.msra.mxu0 0.0
    %106 = vmatprep.subr.mxu0 0.0
    %107 = vmatpush1.msra.mxu0 0.0
    %108 = vmatprep.subr.mxu0 0.0
    %109 = vmatpush1.msra.mxu0 0.0
    %110 = vmatprep.subr.mxu0 0.0
    %111 = vmatpush1.msra.mxu0 0.0
    %112 = vmatprep.subr.mxu0 0.0
    %113 = vmatpush1.msra.mxu0 0.0
    %114 = vmatprep.subr.mxu0 0.0
    %115 = vmatpush1.msra.mxu0 0.0
    %116 = vmatprep.subr.mxu0 0.0
    %117 = vmatpush1.msra.mxu0 0.0
    %118 = vmatprep.subr.mxu0 0.0
    %119 = vmatpush1.msra.mxu0 0.0
    %120 = vmatprep.subr.mxu0 0.0
    %121 = vmatpush1.msra.mxu0 0.0
    %122 = vmatprep.subr.mxu0 0.0
    %123 = vmatpush1.msra.mxu0 0.0
    %124 = vmatprep.subr.mxu0 0.0
    %125 = vmatpush1.msra.mxu0 0.0
    %126 = vmatprep.subr.mxu0 0.0
    %127 = vmatpush1.msra.mxu0 0.0
    %128 = vmatprep.subr.mxu0 0.0
    %129 = vmatpush1.msra.mxu0 0.0
    %130 = vmatprep.subr.mxu0 0.0
    %131 = vmatpush1.msra.mxu0 0.0
    %132 = vmatprep.subr.mxu0 0.0
    %133 = vmatpush1.msra.mxu0 0.0
    %134 = vmatprep.subr.mxu0 0.0
    %135 = vmatpush1.msra.mxu0 0.0
    %136 = vmatprep.subr.mxu0 0.0
    %137 = vmatpush1.msra.mxu0 0.0
    %138 = vmatprep.mubr.f32.mxu0 0.0
    %139 = vmatmul.mubr.f32.gmra.mrb[0].mxu0 %v69
    %v140 = vpop.f32.mrb[0].mxu0
    %v141 = vadd.f32 0.0, %v140
    %v142 = vpop.f32.mrb[0].mxu0
    %143 = vmatprep.mubr.f32.mxu0 0.0
    %144 = vmatmul.mubr.f32.gmra.mrb[0].mxu0 %v72
    %v145 = vpop.f32.mrb[0].mxu0
    %v146 = vadd.f32 0.0, %v145
    %v147 = vpop.f32.mrb[0].mxu0
    %148 = vdwg.mxu0
    %v149 = vld [vmem:[%s2] sm:$0xff]
    %v150 = vld [vmem:[%s2 + $0x8] sm:$0xff]
    %v151 = vld [vmem:[%s2 + $0x10] sm:$0xff]
    %v152 = vld [vmem:[%s2 + $0x18] sm:$0xff]
    %153 = vmatprep.subr.mxu0 0.0
    %154 = vmatpush1.msra.mxu0 %v149
    %155 = vmatprep.subr.mxu0 0.0
    %156 = vmatpush1.msra.mxu0 %v150
    %157 = vmatprep.subr.mxu0 0.0
    %158 = vmatpush1.msra.mxu0 %v151
    %159 = vmatprep.subr.mxu0 0.0
    %160 = vmatpush1.msra.mxu0 %v152
    %161 = vmatprep.subr.mxu0 0.0
    %162 = vmatpush1.msra.mxu0 0.0
    %163 = vmatprep.subr.mxu0 0.0
    %164 = vmatpush1.msra.mxu0 0.0
    %165 = vmatprep.subr.mxu0 0.0
    %166 = vmatpush1.msra.mxu0 0.0
    %167 = vmatprep.subr.mxu0 0.0
    %168 = vmatpush1.msra.mxu0 0.0
    %169 = vmatprep.subr.mxu0 0.0
    %170 = vmatpush1.msra.mxu0 0.0
    %171 = vmatprep.subr.mxu0 0.0
    %172 = vmatpush1.msra.mxu0 0.0
    %173 = vmatprep.subr.mxu0 0.0
    %174 = vmatpush1.msra.mxu0 0.0
    %175 = vmatprep.subr.mxu0 0.0
    %176 = vmatpush1.msra.mxu0 0.0
    %177 = vmatprep.subr.mxu0 0.0
    %178 = vmatpush1.msra.mxu0 0.0
    %179 = vmatprep.subr.mxu0 0.0
    %180 = vmatpush1.msra.mxu0 0.0
    %181 = vmatprep.subr.mxu0 0.0
    %182 = vmatpush1.msra.mxu0 0.0
    %183 = vmatprep.subr.mxu0 0.0
    %184 = vmatpush1.msra.mxu0 0.0
    %185 = vmatprep.subr.mxu0 0.0
    %186 = vmatpush1.msra.mxu0 0.0
    %187 = vmatprep.subr.mxu0 0.0
    %188 = vmatpush1.msra.mxu0 0.0
    %189 = vmatprep.subr.mxu0 0.0
    %190 = vmatpush1.msra.mxu0 0.0
    %191 = vmatprep.subr.mxu0 0.0
    %192 = vmatpush1.msra.mxu0 0.0
    %193 = vmatprep.subr.mxu0 0.0
    %194 = vmatpush1.msra.mxu0 0.0
    %195 = vmatprep.subr.mxu0 0.0
    %196 = vmatpush1.msra.mxu0 0.0
    %197 = vmatprep.subr.mxu0 0.0
    %198 = vmatpush1.msra.mxu0 0.0
    %199 = vmatprep.subr.mxu0 0.0
    %200 = vmatpush1.msra.mxu0 0.0
    %201 = vmatprep.subr.mxu0 0.0
    %202 = vmatpush1.msra.mxu0 0.0
    %203 = vmatprep.subr.mxu0 0.0
    %204 = vmatpush1.msra.mxu0 0.0
    %205 = vmatprep.subr.mxu0 0.0
    %206 = vmatpush1.msra.mxu0 0.0
    %207 = vmatprep.subr.mxu0 0.0
    %208 = vmatpush1.msra.mxu0 0.0
    %209 = vmatprep.subr.mxu0 0.0
    %210 = vmatpush1.msra.mxu0 0.0
    %211 = vmatprep.subr.mxu0 0.0
    %212 = vmatpush1.msra.mxu0 0.0
    %213 = vmatprep.subr.mxu0 0.0
    %214 = vmatpush1.msra.mxu0 0.0
    %215 = vmatprep.subr.mxu0 0.0
    %216 = vmatpush1.msra.mxu0 0.0
    %217 = vmatprep.mubr.f32.mxu0 0.0
    %218 = vmatmul.mubr.f32.gmra.mrb[0].mxu0 %v69
    %v219 = vpop.f32.mrb[0].mxu0
    %v220 = vadd.f32 0.0, %v219
    %v221 = vpop.f32.mrb[0].mxu0
    %222 = vmatprep.mubr.f32.mxu0 0.0
    %223 = vmatmul.mubr.f32.gmra.mrb[0].mxu0 %v72
    %v224 = vpop.f32.mrb[0].mxu0
    %v225 = vadd.f32 0.0, %v224
    %v226 = vpop.f32.mrb[0].mxu0
    %227 = vdwg.mxu0
    %v228 = vld [vmem:[%s3] sm:$0xff]
    %v229 = vld [vmem:[%s3 + $0x8] sm:$0xff]
    %v230 = vld [vmem:[%s3 + $0x10] sm:$0xff]
    %v231 = vld [vmem:[%s3 + $0x18] sm:$0xff]
    %232 = vmatprep.subr.mxu0 0.0
    %233 = vmatpush1.msra.mxu0 %v228
    %234 = vmatprep.subr.mxu0 0.0
    %235 = vmatpush1.msra.mxu0 %v229
    %236 = vmatprep.subr.mxu0 0.0
    %237 = vmatpush1.msra.mxu0 %v230
    %238 = vmatprep.subr.mxu0 0.0
    %239 = vmatpush1.msra.mxu0 %v231
    %240 = vmatprep.subr.mxu0 0.0
    %241 = vmatpush1.msra.mxu0 0.0
    %242 = vmatprep.subr.mxu0 0.0
    %243 = vmatpush1.msra.mxu0 0.0
    %244 = vmatprep.subr.mxu0 0.0
    %245 = vmatpush1.msra.mxu0 0.0
    %246 = vmatprep.subr.mxu0 0.0
    %247 = vmatpush1.msra.mxu0 0.0
    %248 = vmatprep.subr.mxu0 0.0
    %249 = vmatpush1.msra.mxu0 0.0
    %250 = vmatprep.subr.mxu0 0.0
    %251 = vmatpush1.msra.mxu0 0.0
    %252 = vmatprep.subr.mxu0 0.0
    %253 = vmatpush1.msra.mxu0 0.0
    %254 = vmatprep.subr.mxu0 0.0
    %255 = vmatpush1.msra.mxu0 0.0
    %256 = vmatprep.subr.mxu0 0.0
    %257 = vmatpush1.msra.mxu0 0.0
    %258 = vmatprep.subr.mxu0 0.0
    %259 = vmatpush1.msra.mxu0 0.0
    %260 = vmatprep.subr.mxu0 0.0
    %261 = vmatpush1.msra.mxu0 0.0
    %262 = vmatprep.subr.mxu0 0.0
    %263 = vmatpush1.msra.mxu0 0.0
    %264 = vmatprep.subr.mxu0 0.0
    %265 = vmatpush1.msra.mxu0 0.0
    %266 = vmatprep.subr.mxu0 0.0
    %267 = vmatpush1.msra.mxu0 0.0
    %268 = vmatprep.subr.mxu0 0.0
    %269 = vmatpush1.msra.mxu0 0.0
    %270 = vmatprep.subr.mxu0 0.0
    %271 = vmatpush1.msra.mxu0 0.0
    %272 = vmatprep.subr.mxu0 0.0
    %273 = vmatpush1.msra.mxu0 0.0
    %274 = vmatprep.subr.mxu0 0.0
    %275 = vmatpush1.msra.mxu0 0.0
    %276 = vmatprep.subr.mxu0 0.0
    %277 = vmatpush1.msra.mxu0 0.0
    %278 = vmatprep.subr.mxu0 0.0
    %279 = vmatpush1.msra.mxu0 0.0
    %280 = vmatprep.subr.mxu0 0.0
    %281 = vmatpush1.msra.mxu0 0.0
    %282 = vmatprep.subr.mxu0 0.0
    %283 = vmatpush1.msra.mxu0 0.0
    %284 = vmatprep.subr.mxu0 0.0
    %285 = vmatpush1.msra.mxu0 0.0
    %286 = vmatprep.subr.mxu0 0.0
    %287 = vmatpush1.msra.mxu0 0.0
    %288 = vmatprep.subr.mxu0 0.0
    %289 = vmatpush1.msra.mxu0 0.0
    %290 = vmatprep.subr.mxu0 0.0
    %291 = vmatpush1.msra.mxu0 0.0
    %292 = vmatprep.subr.mxu0 0.0
    %293 = vmatpush1.msra.mxu0 0.0
    %294 = vmatprep.subr.mxu0 0.0
    %295 = vmatpush1.msra.mxu0 0.0
    %296 = vmatprep.mubr.f32.mxu0 0.0
    %297 = vmatmul.mubr.f32.gmra.mrb[0].mxu0 %v69
    %v298 = vpop.f32.mrb[0].mxu0
    %v299 = vadd.f32 0.0, %v298
    %v300 = vpop.f32.mrb[0].mxu0
    %301 = vmatprep.mubr.f32.mxu0 0.0
    %302 = vmatmul.mubr.f32.gmra.mrb[0].mxu0 %v72
    %v303 = vpop.f32.mrb[0].mxu0
    %v304 = vadd.f32 0.0, %v303
    %v305 = vpop.f32.mrb[0].mxu0
    %306 = vdwg.mxu0
    %vm307 = vcmask 64512
    %v309 = vsel %vm307, %v141, 0
    %v312 = vsel %vm307, %v220, 0
    %314 = vmatprep.subr.mxu0 0.0
    %315 = vmatpush1.xpose.msra.mxu0 %v312
    %316 = vmatprep.subr.mxu0 0.0
    %317 = vmatpush1.xpose.msra.mxu0 0.0
    %318 = vmatprep.subr.mxu0 0.0
    %319 = vmatpush1.xpose.msra.mxu0 0.0
    %320 = vmatprep.subr.mxu0 0.0
    %321 = vmatpush1.xpose.msra.mxu0 0.0
    %322 = vmatprep.subr.mxu0 0.0
    %323 = vmatpush1.xpose.msra.mxu0 0.0
    %324 = vmatprep.subr.mxu0 0.0
    %325 = vmatpush1.xpose.msra.mxu0 0.0
    %326 = vmatprep.subr.mxu0 0.0
    %327 = vmatpush1.xpose.msra.mxu0 0.0
    %328 = vmatprep.subr.mxu0 0.0
    %329 = vmatpush1.xpose.msra.mxu0 0.0
    %330 = vmatprep.subr.mxu0 0.0
    %331 = vmatpush1.xpose.msra.mxu0 0.0
    %332 = vmatprep.subr.mxu0 0.0
    %333 = vmatpush1.xpose.msra.mxu0 0.0
    %334 = vmatprep.subr.mxu0 0.0
    %335 = vmatpush1.xpose.msra.mxu0 0.0
    %336 = vmatprep.subr.mxu0 0.0
    %337 = vmatpush1.xpose.msra.mxu0 0.0
    %338 = vmatprep.subr.mxu0 0.0
    %339 = vmatpush1.xpose.msra.mxu0 0.0
    %340 = vmatprep.subr.mxu0 0.0
    %341 = vmatpush1.xpose.msra.mxu0 0.0
    %342 = vmatprep.subr.mxu0 0.0
    %343 = vmatpush1.xpose.msra.mxu0 0.0
    %344 = vmatprep.subr.mxu0 0.0
    %345 = vmatpush1.xpose.msra.mxu0 0.0
    %346 = vmatprep.subr.mxu0 0.0
    %347 = vmatpush1.xpose.msra.mxu0 0.0
    %348 = vmatprep.subr.mxu0 0.0
    %349 = vmatpush1.xpose.msra.mxu0 0.0
    %350 = vmatprep.subr.mxu0 0.0
    %351 = vmatpush1.xpose.msra.mxu0 0.0
    %352 = vmatprep.subr.mxu0 0.0
    %353 = vmatpush1.xpose.msra.mxu0 0.0
    %354 = vmatprep.subr.mxu0 0.0
    %355 = vmatpush1.xpose.msra.mxu0 0.0
    %356 = vmatprep.subr.mxu0 0.0
    %357 = vmatpush1.xpose.msra.mxu0 0.0
    %358 = vmatprep.subr.mxu0 0.0
    %359 = vmatpush1.xpose.msra.mxu0 0.0
    %360 = vmatprep.subr.mxu0 0.0
    %361 = vmatpush1.xpose.msra.mxu0 0.0
    %362 = vmatprep.subr.mxu0 0.0
    %363 = vmatpush1.xpose.msra.mxu0 0.0
    %364 = vmatprep.subr.mxu0 0.0
    %365 = vmatpush1.xpose.msra.mxu0 0.0
    %366 = vmatprep.subr.mxu0 0.0
    %367 = vmatpush1.xpose.msra.mxu0 0.0
    %368 = vmatprep.subr.mxu0 0.0
    %369 = vmatpush1.xpose.msra.mxu0 0.0
    %370 = vmatprep.subr.mxu0 0.0
    %371 = vmatpush1.xpose.msra.mxu0 0.0
    %372 = vmatprep.subr.mxu0 0.0
    %373 = vmatpush1.xpose.msra.mxu0 0.0
    %374 = vmatprep.subr.mxu0 0.0
    %375 = vmatpush1.xpose.msra.mxu0 0.0
    %376 = vmatprep.subr.mxu0 0.0
    %377 = vmatpush1.xpose.msra.mxu0 0.0
    %378 = vmatprep.mubr.f32.mxu0 0.0
    %379 = vmatmul.mubr.f32.gmra.mrb[0].mxu0 %v309
    %v380 = vpop.f32.mrb[0].mxu0
    %v381 = vadd.f32 0.0, %v380
    %v382 = vpop.f32.mrb[0].mxu0
    %383 = vdwg.mxu0
    %v385 = vsel %vm307, %v146, 0
    %v388 = vsel %vm307, %v225, 0
    %390 = vmatprep.subr.mxu0 0.0
    %391 = vmatpush1.xpose.msra.mxu0 %v388
    %392 = vmatprep.subr.mxu0 0.0
    %393 = vmatpush1.xpose.msra.mxu0 0.0
    %394 = vmatprep.subr.mxu0 0.0
    %395 = vmatpush1.xpose.msra.mxu0 0.0
    %396 = vmatprep.subr.mxu0 0.0
    %397 = vmatpush1.xpose.msra.mxu0 0.0
    %398 = vmatprep.subr.mxu0 0.0
    %399 = vmatpush1.xpose.msra.mxu0 0.0
    %400 = vmatprep.subr.mxu0 0.0
    %401 = vmatpush1.xpose.msra.mxu0 0.0
    %402 = vmatprep.subr.mxu0 0.0
    %403 = vmatpush1.xpose.msra.mxu0 0.0
    %404 = vmatprep.subr.mxu0 0.0
    %405 = vmatpush1.xpose.msra.mxu0 0.0
    %406 = vmatprep.subr.mxu0 0.0
    %407 = vmatpush1.xpose.msra.mxu0 0.0
    %408 = vmatprep.subr.mxu0 0.0
    %409 = vmatpush1.xpose.msra.mxu0 0.0
    %410 = vmatprep.subr.mxu0 0.0
    %411 = vmatpush1.xpose.msra.mxu0 0.0
    %412 = vmatprep.subr.mxu0 0.0
    %413 = vmatpush1.xpose.msra.mxu0 0.0
    %414 = vmatprep.subr.mxu0 0.0
    %415 = vmatpush1.xpose.msra.mxu0 0.0
    %416 = vmatprep.subr.mxu0 0.0
    %417 = vmatpush1.xpose.msra.mxu0 0.0
    %418 = vmatprep.subr.mxu0 0.0
    %419 = vmatpush1.xpose.msra.mxu0 0.0
    %420 = vmatprep.subr.mxu0 0.0
    %421 = vmatpush1.xpose.msra.mxu0 0.0
    %422 = vmatprep.subr.mxu0 0.0
    %423 = vmatpush1.xpose.msra.mxu0 0.0
    %424 = vmatprep.subr.mxu0 0.0
    %425 = vmatpush1.xpose.msra.mxu0 0.0
    %426 = vmatprep.subr.mxu0 0.0
    %427 = vmatpush1.xpose.msra.mxu0 0.0
    %428 = vmatprep.subr.mxu0 0.0
    %429 = vmatpush1.xpose.msra.mxu0 0.0
    %430 = vmatprep.subr.mxu0 0.0
    %431 = vmatpush1.xpose.msra.mxu0 0.0
    %432 = vmatprep.subr.mxu0 0.0
    %433 = vmatpush1.xpose.msra.mxu0 0.0
    %434 = vmatprep.subr.mxu0 0.0
    %435 = vmatpush1.xpose.msra.mxu0 0.0
    %436 = vmatprep.subr.mxu0 0.0
    %437 = vmatpush1.xpose.msra.mxu0 0.0
    %438 = vmatprep.subr.mxu0 0.0
    %439 = vmatpush1.xpose.msra.mxu0 0.0
    %440 = vmatprep.subr.mxu0 0.0
    %441 = vmatpush1.xpose.msra.mxu0 0.0
    %442 = vmatprep.subr.mxu0 0.0
    %443 = vmatpush1.xpose.msra.mxu0 0.0
    %444 = vmatprep.subr.mxu0 0.0
    %445 = vmatpush1.xpose.msra.mxu0 0.0
    %446 = vmatprep.subr.mxu0 0.0
    %447 = vmatpush1.xpose.msra.mxu0 0.0
    %448 = vmatprep.subr.mxu0 0.0
    %449 = vmatpush1.xpose.msra.mxu0 0.0
    %450 = vmatprep.subr.mxu0 0.0
    %451 = vmatpush1.xpose.msra.mxu0 0.0
    %452 = vmatprep.subr.mxu0 0.0
    %453 = vmatpush1.xpose.msra.mxu0 0.0
    %454 = vmatprep.mubr.f32.mxu0 0.0
    %455 = vmatmul.mubr.f32.gmra.mrb[0].mxu0 %v385
    %v456 = vpop.f32.mrb[0].mxu0
    %v457 = vadd.f32 0.0, %v456
    %v458 = vpop.f32.mrb[0].mxu0
    %459 = vdwg.mxu0
    %v460 = vsel %vm307, %v381, -inf
    %461 = vmax.xlane.f32.xlu0 %v460
    %v462 = vpop.xlane.xlu0 %461
    %v463 = vsel %vm307, %v457, -inf
    %464 = vmax.xlane.f32.xlu0 %v463
    %v465 = vpop.xlane.xlu0 %464
    %v466 = vsub.f32 %v381, %v462
    %v467 = vsub.f32 %v457, %v465
    %v468 = vmul.f32 %v466, 1.442695
    %v469 = vpow.pop %v468
    %v470 = vmul.f32 %v467, 1.442695
    %v471 = vpow.pop %v470
    %v472 = vsel %vm307, %v469, 0.0
    %473 = vadd.xlane.f32.xlu0 %v472
    %v474 = vpop.xlane.xlu0 %473
    %v475 = vsel %vm307, %v471, 0.0
    %476 = vadd.xlane.f32.xlu0 %v475
    %v477 = vpop.xlane.xlu0 %476
    %v478 = vrcp.pop %v474
    %v479 = vrcp.pop %v477
    %v480 = vmul.f32 %v469, %v478
    %v481 = vmul.f32 %v471, %v479
    %v483 = vsel %vm307, %v480, 0
    %485 = vmatprep.subr.mxu0 0.0
    %486 = vmatpush1.msra.mxu0 %v299
    %487 = vmatprep.subr.mxu0 0.0
    %488 = vmatpush1.msra.mxu0 0.0
    %489 = vmatprep.subr.mxu0 0.0
    %490 = vmatpush1.msra.mxu0 0.0
    %491 = vmatprep.subr.mxu0 0.0
    %492 = vmatpush1.msra.mxu0 0.0
    %493 = vmatprep.subr.mxu0 0.0
    %494 = vmatpush1.msra.mxu0 0.0
    %495 = vmatprep.subr.mxu0 0.0
    %496 = vmatpush1.msra.mxu0 0.0
    %497 = vmatprep.subr.mxu0 0.0
    %498 = vmatpush1.msra.mxu0 0.0
    %499 = vmatprep.subr.mxu0 0.0
    %500 = vmatpush1.msra.mxu0 0.0
    %501 = vmatprep.subr.mxu0 0.0
    %502 = vmatpush1.msra.mxu0 0.0
    %503 = vmatprep.subr.mxu0 0.0
    %504 = vmatpush1.msra.mxu0 0.0
    %505 = vmatprep.subr.mxu0 0.0
    %506 = vmatpush1.msra.mxu0 0.0
    %507 = vmatprep.subr.mxu0 0.0
    %508 = vmatpush1.msra.mxu0 0.0
    %509 = vmatprep.subr.mxu0 0.0
    %510 = vmatpush1.msra.mxu0 0.0
    %511 = vmatprep.subr.mxu0 0.0
    %512 = vmatpush1.msra.mxu0 0.0
    %513 = vmatprep.subr.mxu0 0.0
    %514 = vmatpush1.msra.mxu0 0.0
    %515 = vmatprep.subr.mxu0 0.0
    %516 = vmatpush1.msra.mxu0 0.0
    %517 = vmatprep.subr.mxu0 0.0
    %518 = vmatpush1.msra.mxu0 0.0
    %519 = vmatprep.subr.mxu0 0.0
    %520 = vmatpush1.msra.mxu0 0.0
    %521 = vmatprep.subr.mxu0 0.0
    %522 = vmatpush1.msra.mxu0 0.0
    %523 = vmatprep.subr.mxu0 0.0
    %524 = vmatpush1.msra.mxu0 0.0
    %525 = vmatprep.subr.mxu0 0.0
    %526 = vmatpush1.msra.mxu0 0.0
    %527 = vmatprep.subr.mxu0 0.0
    %528 = vmatpush1.msra.mxu0 0.0
    %529 = vmatprep.subr.mxu0 0.0
    %530 = vmatpush1.msra.mxu0 0.0
    %531 = vmatprep.subr.mxu0 0.0
    %532 = vmatpush1.msra.mxu0 0.0
    %533 = vmatprep.subr.mxu0 0.0
    %534 = vmatpush1.msra.mxu0 0.0
    %535 = vmatprep.subr.mxu0 0.0
    %536 = vmatpush1.msra.mxu0 0.0
    %537 = vmatprep.subr.mxu0 0.0
    %538 = vmatpush1.msra.mxu0 0.0
    %539 = vmatprep.subr.mxu0 0.0
    %540 = vmatpush1.msra.mxu0 0.0
    %541 = vmatprep.subr.mxu0 0.0
    %542 = vmatpush1.msra.mxu0 0.0
    %543 = vmatprep.subr.mxu0 0.0
    %544 = vmatpush1.msra.mxu0 0.0
    %545 = vmatprep.subr.mxu0 0.0
    %546 = vmatpush1.msra.mxu0 0.0
    %547 = vmatprep.subr.mxu0 0.0
    %548 = vmatpush1.msra.mxu0 0.0
    %549 = vmatprep.mubr.f32.mxu0 0.0
    %550 = vmatmul.mubr.f32.gmra.mrb[0].mxu0 %v483
    %v551 = vpop.f32.mrb[0].mxu0
    %v552 = vadd.f32 0.0, %v551
    %v553 = vpop.f32.mrb[0].mxu0
    %554 = vdwg.mxu0
    %v556 = vsel %vm307, %v481, 0
    %558 = vmatprep.subr.mxu0 0.0
    %559 = vmatpush1.msra.mxu0 %v304
    %560 = vmatprep.subr.mxu0 0.0
    %561 = vmatpush1.msra.mxu0 0.0
    %562 = vmatprep.subr.mxu0 0.0
    %563 = vmatpush1.msra.mxu0 0.0
    %564 = vmatprep.subr.mxu0 0.0
    %565 = vmatpush1.msra.mxu0 0.0
    %566 = vmatprep.subr.mxu0 0.0
    %567 = vmatpush1.msra.mxu0 0.0
    %568 = vmatprep.subr.mxu0 0.0
    %569 = vmatpush1.msra.mxu0 0.0
    %570 = vmatprep.subr.mxu0 0.0
    %571 = vmatpush1.msra.mxu0 0.0
    %572 = vmatprep.subr.mxu0 0.0
    %573 = vmatpush1.msra.mxu0 0.0
    %574 = vmatprep.subr.mxu0 0.0
    %575 = vmatpush1.msra.mxu0 0.0
    %576 = vmatprep.subr.mxu0 0.0
    %577 = vmatpush1.msra.mxu0 0.0
    %578 = vmatprep.subr.mxu0 0.0
    %579 = vmatpush1.msra.mxu0 0.0
    %580 = vmatprep.subr.mxu0 0.0
    %581 = vmatpush1.msra.mxu0 0.0
    %582 = vmatprep.subr.mxu0 0.0
    %583 = vmatpush1.msra.mxu0 0.0
    %584 = vmatprep.subr.mxu0 0.0
    %585 = vmatpush1.msra.mxu0 0.0
    %586 = vmatprep.subr.mxu0 0.0
    %587 = vmatpush1.msra.mxu0 0.0
    %588 = vmatprep.subr.mxu0 0.0
    %589 = vmatpush1.msra.mxu0 0.0
    %590 = vmatprep.subr.mxu0 0.0
    %591 = vmatpush1.msra.mxu0 0.0
    %592 = vmatprep.subr.mxu0 0.0
    %593 = vmatpush1.msra.mxu0 0.0
    %594 = vmatprep.subr.mxu0 0.0
    %595 = vmatpush1.msra.mxu0 0.0
    %596 = vmatprep.subr.mxu0 0.0
    %597 = vmatpush1.msra.mxu0 0.0
    %598 = vmatprep.subr.mxu0 0.0
    %599 = vmatpush1.msra.mxu0 0.0
    %600 = vmatprep.subr.mxu0 0.0
    %601 = vmatpush1.msra.mxu0 0.0
    %602 = vmatprep.subr.mxu0 0.0
    %603 = vmatpush1.msra.mxu0 0.0
    %604 = vmatprep.subr.mxu0 0.0
    %605 = vmatpush1.msra.mxu0 0.0
    %606 = vmatprep.subr.mxu0 0.0
    %607 = vmatpush1.msra.mxu0 0.0
    %608 = vmatprep.subr.mxu0 0.0
    %609 = vmatpush1.msra.mxu0 0.0
    %610 = vmatprep.subr.mxu0 0.0
    %611 = vmatpush1.msra.mxu0 0.0
    %612 = vmatprep.subr.mxu0 0.0
    %613 = vmatpush1.msra.mxu0 0.0
    %614 = vmatprep.subr.mxu0 0.0
    %615 = vmatpush1.msra.mxu0 0.0
    %616 = vmatprep.subr.mxu0 0.0
    %617 = vmatpush1.msra.mxu0 0.0
    %618 = vmatprep.subr.mxu0 0.0
    %619 = vmatpush1.msra.mxu0 0.0
    %620 = vmatprep.subr.mxu0 0.0
    %621 = vmatpush1.msra.mxu0 0.0
    %622 = vmatprep.mubr.f32.mxu0 0.0
    %623 = vmatmul.mubr.f32.gmra.mrb[0].mxu0 %v556
    %v624 = vpop.f32.mrb[0].mxu0
    %v625 = vadd.f32 0.0, %v624
    %v626 = vpop.f32.mrb[0].mxu0
    %627 = vdwg.mxu0
    %628 = vrot.lane.b32.xlu0 %v141, 120
    %v629 = vpop.permute.xlu0 %628
    %630 = vrot.lane.b32.xlu0 %v220, 120
    %v631 = vpop.permute.xlu0 %630
    %v632 = vsel %vm307, %v629, 0
    %v634 = vsel %vm307, %v631, 0
    %636 = vmatprep.subr.mxu0 0.0
    %637 = vmatpush1.xpose.msra.mxu0 %v634
    %638 = vmatprep.subr.mxu0 0.0
    %639 = vmatpush1.xpose.msra.mxu0 0.0
    %640 = vmatprep.subr.mxu0 0.0
    %641 = vmatpush1.xpose.msra.mxu0 0.0
    %642 = vmatprep.subr.mxu0 0.0
    %643 = vmatpush1.xpose.msra.mxu0 0.0
    %644 = vmatprep.subr.mxu0 0.0
    %645 = vmatpush1.xpose.msra.mxu0 0.0
    %646 = vmatprep.subr.mxu0 0.0
    %647 = vmatpush1.xpose.msra.mxu0 0.0
    %648 = vmatprep.subr.mxu0 0.0
    %649 = vmatpush1.xpose.msra.mxu0 0.0
    %650 = vmatprep.subr.mxu0 0.0
    %651 = vmatpush1.xpose.msra.mxu0 0.0
    %652 = vmatprep.subr.mxu0 0.0
    %653 = vmatpush1.xpose.msra.mxu0 0.0
    %654 = vmatprep.subr.mxu0 0.0
    %655 = vmatpush1.xpose.msra.mxu0 0.0
    %656 = vmatprep.subr.mxu0 0.0
    %657 = vmatpush1.xpose.msra.mxu0 0.0
    %658 = vmatprep.subr.mxu0 0.0
    %659 = vmatpush1.xpose.msra.mxu0 0.0
    %660 = vmatprep.subr.mxu0 0.0
    %661 = vmatpush1.xpose.msra.mxu0 0.0
    %662 = vmatprep.subr.mxu0 0.0
    %663 = vmatpush1.xpose.msra.mxu0 0.0
    %664 = vmatprep.subr.mxu0 0.0
    %665 = vmatpush1.xpose.msra.mxu0 0.0
    %666 = vmatprep.subr.mxu0 0.0
    %667 = vmatpush1.xpose.msra.mxu0 0.0
    %668 = vmatprep.subr.mxu0 0.0
    %669 = vmatpush1.xpose.msra.mxu0 0.0
    %670 = vmatprep.subr.mxu0 0.0
    %671 = vmatpush1.xpose.msra.mxu0 0.0
    %672 = vmatprep.subr.mxu0 0.0
    %673 = vmatpush1.xpose.msra.mxu0 0.0
    %674 = vmatprep.subr.mxu0 0.0
    %675 = vmatpush1.xpose.msra.mxu0 0.0
    %676 = vmatprep.subr.mxu0 0.0
    %677 = vmatpush1.xpose.msra.mxu0 0.0
    %678 = vmatprep.subr.mxu0 0.0
    %679 = vmatpush1.xpose.msra.mxu0 0.0
    %680 = vmatprep.subr.mxu0 0.0
    %681 = vmatpush1.xpose.msra.mxu0 0.0
    %682 = vmatprep.subr.mxu0 0.0
    %683 = vmatpush1.xpose.msra.mxu0 0.0
    %684 = vmatprep.subr.mxu0 0.0
    %685 = vmatpush1.xpose.msra.mxu0 0.0
    %686 = vmatprep.subr.mxu0 0.0
    %687 = vmatpush1.xpose.msra.mxu0 0.0
    %688 = vmatprep.subr.mxu0 0.0
    %689 = vmatpush1.xpose.msra.mxu0 0.0
    %690 = vmatprep.subr.mxu0 0.0
    %691 = vmatpush1.xpose.msra.mxu0 0.0
    %692 = vmatprep.subr.mxu0 0.0
    %693 = vmatpush1.xpose.msra.mxu0 0.0
    %694 = vmatprep.subr.mxu0 0.0
    %695 = vmatpush1.xpose.msra.mxu0 0.0
    %696 = vmatprep.subr.mxu0 0.0
    %697 = vmatpush1.xpose.msra.mxu0 0.0
    %698 = vmatprep.subr.mxu0 0.0
    %699 = vmatpush1.xpose.msra.mxu0 0.0
    %700 = vmatprep.mubr.f32.mxu0 0.0
    %701 = vmatmul.mubr.f32.gmra.mrb[0].mxu0 %v632
    %v702 = vpop.f32.mrb[0].mxu0
    %v703 = vadd.f32 0.0, %v702
    %v704 = vpop.f32.mrb[0].mxu0
    %705 = vdwg.mxu0
    %706 = vrot.lane.b32.xlu0 %v146, 120
    %v707 = vpop.permute.xlu0 %706
    %708 = vrot.lane.b32.xlu0 %v225, 120
    %v709 = vpop.permute.xlu0 %708
    %v710 = vsel %vm307, %v707, 0
    %v712 = vsel %vm307, %v709, 0
    %714 = vmatprep.subr.mxu0 0.0
    %715 = vmatpush1.xpose.msra.mxu0 %v712
    %716 = vmatprep.subr.mxu0 0.0
    %717 = vmatpush1.xpose.msra.mxu0 0.0
    %718 = vmatprep.subr.mxu0 0.0
    %719 = vmatpush1.xpose.msra.mxu0 0.0
    %720 = vmatprep.subr.mxu0 0.0
    %721 = vmatpush1.xpose.msra.mxu0 0.0
    %722 = vmatprep.subr.mxu0 0.0
    %723 = vmatpush1.xpose.msra.mxu0 0.0
    %724 = vmatprep.subr.mxu0 0.0
    %725 = vmatpush1.xpose.msra.mxu0 0.0
    %726 = vmatprep.subr.mxu0 0.0
    %727 = vmatpush1.xpose.msra.mxu0 0.0
    %728 = vmatprep.subr.mxu0 0.0
    %729 = vmatpush1.xpose.msra.mxu0 0.0
    %730 = vmatprep.subr.mxu0 0.0
    %731 = vmatpush1.xpose.msra.mxu0 0.0
    %732 = vmatprep.subr.mxu0 0.0
    %733 = vmatpush1.xpose.msra.mxu0 0.0
    %734 = vmatprep.subr.mxu0 0.0
    %735 = vmatpush1.xpose.msra.mxu0 0.0
    %736 = vmatprep.subr.mxu0 0.0
    %737 = vmatpush1.xpose.msra.mxu0 0.0
    %738 = vmatprep.subr.mxu0 0.0
    %739 = vmatpush1.xpose.msra.mxu0 0.0
    %740 = vmatprep.subr.mxu0 0.0
    %741 = vmatpush1.xpose.msra.mxu0 0.0
    %742 = vmatprep.subr.mxu0 0.0
    %743 = vmatpush1.xpose.msra.mxu0 0.0
    %744 = vmatprep.subr.mxu0 0.0
    %745 = vmatpush1.xpose.msra.mxu0 0.0
    %746 = vmatprep.subr.mxu0 0.0
    %747 = vmatpush1.xpose.msra.mxu0 0.0
    %748 = vmatprep.subr.mxu0 0.0
    %749 = vmatpush1.xpose.msra.mxu0 0.0
    %750 = vmatprep.subr.mxu0 0.0
    %751 = vmatpush1.xpose.msra.mxu0 0.0
    %752 = vmatprep.subr.mxu0 0.0
    %753 = vmatpush1.xpose.msra.mxu0 0.0
    %754 = vmatprep.subr.mxu0 0.0
    %755 = vmatpush1.xpose.msra.mxu0 0.0
    %756 = vmatprep.subr.mxu0 0.0
    %757 = vmatpush1.xpose.msra.mxu0 0.0
    %758 = vmatprep.subr.mxu0 0.0
    %759 = vmatpush1.xpose.msra.mxu0 0.0
    %760 = vmatprep.subr.mxu0 0.0
    %761 = vmatpush1.xpose.msra.mxu0 0.0
    %762 = vmatprep.subr.mxu0 0.0
    %763 = vmatpush1.xpose.msra.mxu0 0.0
    %764 = vmatprep.subr.mxu0 0.0
    %765 = vmatpush1.xpose.msra.mxu0 0.0
    %766 = vmatprep.subr.mxu0 0.0
    %767 = vmatpush1.xpose.msra.mxu0 0.0
    %768 = vmatprep.subr.mxu0 0.0
    %769 = vmatpush1.xpose.msra.mxu0 0.0
    %770 = vmatprep.subr.mxu0 0.0
    %771 = vmatpush1.xpose.msra.mxu0 0.0
    %772 = vmatprep.subr.mxu0 0.0
    %773 = vmatpush1.xpose.msra.mxu0 0.0
    %774 = vmatprep.subr.mxu0 0.0
    %775 = vmatpush1.xpose.msra.mxu0 0.0
    %776 = vmatprep.subr.mxu0 0.0
    %777 = vmatpush1.xpose.msra.mxu0 0.0
    %778 = vmatprep.mubr.f32.mxu0 0.0
    %779 = vmatmul.mubr.f32.gmra.mrb[0].mxu0 %v710
    %v780 = vpop.f32.mrb[0].mxu0
    %v781 = vadd.f32 0.0, %v780
    %v782 = vpop.f32.mrb[0].mxu0
    %783 = vdwg.mxu0
    %v784 = vsel %vm307, %v703, -inf
    %785 = vmax.xlane.f32.xlu0 %v784
    %v786 = vpop.xlane.xlu0 %785
    %v787 = vsel %vm307, %v781, -inf
    %788 = vmax.xlane.f32.xlu0 %v787
    %v789 = vpop.xlane.xlu0 %788
    %v790 = vsub.f32 %v703, %v786
    %v791 = vsub.f32 %v781, %v789
    %v792 = vmul.f32 %v790, 1.442695
    %v793 = vpow.pop %v792
    %v794 = vmul.f32 %v791, 1.442695
    %v795 = vpow.pop %v794
    %v796 = vsel %vm307, %v793, 0.0
    %797 = vadd.xlane.f32.xlu0 %v796
    %v798 = vpop.xlane.xlu0 %797
    %v799 = vsel %vm307, %v795, 0.0
    %800 = vadd.xlane.f32.xlu0 %v799
    %v801 = vpop.xlane.xlu0 %800
    %v802 = vrcp.pop %v798
    %v803 = vrcp.pop %v801
    %v804 = vmul.f32 %v793, %v802
    %v805 = vmul.f32 %v795, %v803
    %807 = vrot.lane.b32.xlu0 %v299, 120
    %v808 = vpop.permute.xlu0 %807
    %v811 = vsel %vm307, %v804, 0
    %813 = vmatprep.subr.mxu0 0.0
    %814 = vmatpush1.msra.mxu0 %v808
    %815 = vmatprep.subr.mxu0 0.0
    %816 = vmatpush1.msra.mxu0 0.0
    %817 = vmatprep.subr.mxu0 0.0
    %818 = vmatpush1.msra.mxu0 0.0
    %819 = vmatprep.subr.mxu0 0.0
    %820 = vmatpush1.msra.mxu0 0.0
    %821 = vmatprep.subr.mxu0 0.0
    %822 = vmatpush1.msra.mxu0 0.0
    %823 = vmatprep.subr.mxu0 0.0
    %824 = vmatpush1.msra.mxu0 0.0
    %825 = vmatprep.subr.mxu0 0.0
    %826 = vmatpush1.msra.mxu0 0.0
    %827 = vmatprep.subr.mxu0 0.0
    %828 = vmatpush1.msra.mxu0 0.0
    %829 = vmatprep.subr.mxu0 0.0
    %830 = vmatpush1.msra.mxu0 0.0
    %831 = vmatprep.subr.mxu0 0.0
    %832 = vmatpush1.msra.mxu0 0.0
    %833 = vmatprep.subr.mxu0 0.0
    %834 = vmatpush1.msra.mxu0 0.0
    %835 = vmatprep.subr.mxu0 0.0
    %836 = vmatpush1.msra.mxu0 0.0
    %837 = vmatprep.subr.mxu0 0.0
    %838 = vmatpush1.msra.mxu0 0.0
    %839 = vmatprep.subr.mxu0 0.0
    %840 = vmatpush1.msra.mxu0 0.0
    %841 = vmatprep.subr.mxu0 0.0
    %842 = vmatpush1.msra.mxu0 0.0
    %843 = vmatprep.subr.mxu0 0.0
    %844 = vmatpush1.msra.mxu0 0.0
    %845 = vmatprep.subr.mxu0 0.0
    %846 = vmatpush1.msra.mxu0 0.0
    %847 = vmatprep.subr.mxu0 0.0
    %848 = vmatpush1.msra.mxu0 0.0
    %849 = vmatprep.subr.mxu0 0.0
    %850 = vmatpush1.msra.mxu0 0.0
    %851 = vmatprep.subr.mxu0 0.0
    %852 = vmatpush1.msra.mxu0 0.0
    %853 = vmatprep.subr.mxu0 0.0
    %854 = vmatpush1.msra.mxu0 0.0
    %855 = vmatprep.subr.mxu0 0.0
    %856 = vmatpush1.msra.mxu0 0.0
    %857 = vmatprep.subr.mxu0 0.0
    %858 = vmatpush1.msra.mxu0 0.0
    %859 = vmatprep.subr.mxu0 0.0
    %860 = vmatpush1.msra.mxu0 0.0
    %861 = vmatprep.subr.mxu0 0.0
    %862 = vmatpush1.msra.mxu0 0.0
    %863 = vmatprep.subr.mxu0 0.0
    %864 = vmatpush1.msra.mxu0 0.0
    %865 = vmatprep.subr.mxu0 0.0
    %866 = vmatpush1.msra.mxu0 0.0
    %867 = vmatprep.subr.mxu0 0.0
    %868 = vmatpush1.msra.mxu0 0.0
    %869 = vmatprep.subr.mxu0 0.0
    %870 = vmatpush1.msra.mxu0 0.0
    %871 = vmatprep.subr.mxu0 0.0
    %872 = vmatpush1.msra.mxu0 0.0
    %873 = vmatprep.subr.mxu0 0.0
    %874 = vmatpush1.msra.mxu0 0.0
    %875 = vmatprep.subr.mxu0 0.0
    %876 = vmatpush1.msra.mxu0 0.0
    %877 = vmatprep.mubr.f32.mxu0 0.0
    %878 = vmatmul.mubr.f32.gmra.mrb[0].mxu0 %v811
    %v879 = vpop.f32.mrb[0].mxu0
    %v880 = vadd.f32 0.0, %v879
    %v881 = vpop.f32.mrb[0].mxu0
    %882 = vdwg.mxu0
    %884 = vrot.lane.b32.xlu0 %v304, 120
    %v885 = vpop.permute.xlu0 %884
    %v888 = vsel %vm307, %v805, 0
    %890 = vmatprep.subr.mxu0 0.0
    %891 = vmatpush1.msra.mxu0 %v885
    %892 = vmatprep.subr.mxu0 0.0
    %893 = vmatpush1.msra.mxu0 0.0
    %894 = vmatprep.subr.mxu0 0.0
    %895 = vmatpush1.msra.mxu0 0.0
    %896 = vmatprep.subr.mxu0 0.0
    %897 = vmatpush1.msra.mxu0 0.0
    %898 = vmatprep.subr.mxu0 0.0
    %899 = vmatpush1.msra.mxu0 0.0
    %900 = vmatprep.subr.mxu0 0.0
    %901 = vmatpush1.msra.mxu0 0.0
    %902 = vmatprep.subr.mxu0 0.0
    %903 = vmatpush1.msra.mxu0 0.0
    %904 = vmatprep.subr.mxu0 0.0
    %905 = vmatpush1.msra.mxu0 0.0
    %906 = vmatprep.subr.mxu0 0.0
    %907 = vmatpush1.msra.mxu0 0.0
    %908 = vmatprep.subr.mxu0 0.0
    %909 = vmatpush1.msra.mxu0 0.0
    %910 = vmatprep.subr.mxu0 0.0
    %911 = vmatpush1.msra.mxu0 0.0
    %912 = vmatprep.subr.mxu0 0.0
    %913 = vmatpush1.msra.mxu0 0.0
    %914 = vmatprep.subr.mxu0 0.0
    %915 = vmatpush1.msra.mxu0 0.0
    %916 = vmatprep.subr.mxu0 0.0
    %917 = vmatpush1.msra.mxu0 0.0
    %918 = vmatprep.subr.mxu0 0.0
    %919 = vmatpush1.msra.mxu0 0.0
    %920 = vmatprep.subr.mxu0 0.0
    %921 = vmatpush1.msra.mxu0 0.0
    %922 = vmatprep.subr.mxu0 0.0
    %923 = vmatpush1.msra.mxu0 0.0
    %924 = vmatprep.subr.mxu0 0.0
    %925 = vmatpush1.msra.mxu0 0.0
    %926 = vmatprep.subr.mxu0 0.0
    %927 = vmatpush1.msra.mxu0 0.0
    %928 = vmatprep.subr.mxu0 0.0
    %929 = vmatpush1.msra.mxu0 0.0
    %930 = vmatprep.subr.mxu0 0.0
    %931 = vmatpush1.msra.mxu0 0.0
    %932 = vmatprep.subr.mxu0 0.0
    %933 = vmatpush1.msra.mxu0 0.0
    %934 = vmatprep.subr.mxu0 0.0
    %935 = vmatpush1.msra.mxu0 0.0
    %936 = vmatprep.subr.mxu0 0.0
    %937 = vmatpush1.msra.mxu0 0.0
    %938 = vmatprep.subr.mxu0 0.0
    %939 = vmatpush1.msra.mxu0 0.0
    %940 = vmatprep.subr.mxu0 0.0
    %941 = vmatpush1.msra.mxu0 0.0
    %942 = vmatprep.subr.mxu0 0.0
    %943 = vmatpush1.msra.mxu0 0.0
    %944 = vmatprep.subr.mxu0 0.0
    %945 = vmatpush1.msra.mxu0 0.0
    %946 = vmatprep.subr.mxu0 0.0
    %947 = vmatpush1.msra.mxu0 0.0
    %948 = vmatprep.subr.mxu0 0.0
    %949 = vmatpush1.msra.mxu0 0.0
    %950 = vmatprep.subr.mxu0 0.0
    %951 = vmatpush1.msra.mxu0 0.0
    %952 = vmatprep.subr.mxu0 0.0
    %953 = vmatpush1.msra.mxu0 0.0
    %954 = vmatprep.mubr.f32.mxu0 0.0
    %955 = vmatmul.mubr.f32.gmra.mrb[0].mxu0 %v888
    %v956 = vpop.f32.mrb[0].mxu0
    %v957 = vadd.f32 0.0, %v956
    %v958 = vpop.f32.mrb[0].mxu0
    %959 = vdwg.mxu0
    %960 = vrot.lane.b32.xlu0 %v141, 112
    %v961 = vpop.permute.xlu0 %960
    %962 = vrot.lane.b32.xlu0 %v220, 112
    %v963 = vpop.permute.xlu0 %962
    %v964 = vsel %vm307, %v961, 0
    %v966 = vsel %vm307, %v963, 0
    %968 = vmatprep.subr.mxu0 0.0
    %969 = vmatpush1.xpose.msra.mxu0 %v966
    %970 = vmatprep.subr.mxu0 0.0
    %971 = vmatpush1.xpose.msra.mxu0 0.0
    %972 = vmatprep.subr.mxu0 0.0
    %973 = vmatpush1.xpose.msra.mxu0 0.0
    %974 = vmatprep.subr.mxu0 0.0
    %975 = vmatpush1.xpose.msra.mxu0 0.0
    %976 = vmatprep.subr.mxu0 0.0
    %977 = vmatpush1.xpose.msra.mxu0 0.0
    %978 = vmatprep.subr.mxu0 0.0
    %979 = vmatpush1.xpose.msra.mxu0 0.0
    %980 = vmatprep.subr.mxu0 0.0
    %981 = vmatpush1.xpose.msra.mxu0 0.0
    %982 = vmatprep.subr.mxu0 0.0
    %983 = vmatpush1.xpose.msra.mxu0 0.0
    %984 = vmatprep.subr.mxu0 0.0
    %985 = vmatpush1.xpose.msra.mxu0 0.0
    %986 = vmatprep.subr.mxu0 0.0
    %987 = vmatpush1.xpose.msra.mxu0 0.0
    %988 = vmatprep.subr.mxu0 0.0
    %989 = vmatpush1.xpose.msra.mxu0 0.0
    %990 = vmatprep.subr.mxu0 0.0
    %991 = vmatpush1.xpose.msra.mxu0 0.0
    %992 = vmatprep.subr.mxu0 0.0
    %993 = vmatpush1.xpose.msra.mxu0 0.0
    %994 = vmatprep.subr.mxu0 0.0
    %995 = vmatpush1.xpose.msra.mxu0 0.0
    %996 = vmatprep.subr.mxu0 0.0
    %997 = vmatpush1.xpose.msra.mxu0 0.0
    %998 = vmatprep.subr.mxu0 0.0
    %999 = vmatpush1.xpose.msra.mxu0 0.0
    %1000 = vmatprep.subr.mxu0 0.0
    %1001 = vmatpush1.xpose.msra.mxu0 0.0
    %1002 = vmatprep.subr.mxu0 0.0
    %1003 = vmatpush1.xpose.msra.mxu0 0.0
    %1004 = vmatprep.subr.mxu0 0.0
    %1005 = vmatpush1.xpose.msra.mxu0 0.0
    %1006 = vmatprep.subr.mxu0 0.0
    %1007 = vmatpush1.xpose.msra.mxu0 0.0
    %1008 = vmatprep.subr.mxu0 0.0
    %1009 = vmatpush1.xpose.msra.mxu0 0.0
    %1010 = vmatprep.subr.mxu0 0.0
    %1011 = vmatpush1.xpose.msra.mxu0 0.0
    %1012 = vmatprep.subr.mxu0 0.0
    %1013 = vmatpush1.xpose.msra.mxu0 0.0
    %1014 = vmatprep.subr.mxu0 0.0
    %1015 = vmatpush1.xpose.msra.mxu0 0.0
    %1016 = vmatprep.subr.mxu0 0.0
    %1017 = vmatpush1.xpose.msra.mxu0 0.0
    %1018 = vmatprep.subr.mxu0 0.0
    %1019 = vmatpush1.xpose.msra.mxu0 0.0
    %1020 = vmatprep.subr.mxu0 0.0
    %1021 = vmatpush1.xpose.msra.mxu0 0.0
    %1022 = vmatprep.subr.mxu0 0.0
    %1023 = vmatpush1.xpose.msra.mxu0 0.0
    %1024 = vmatprep.subr.mxu0 0.0
    %1025 = vmatpush1.xpose.msra.mxu0 0.0
    %1026 = vmatprep.subr.mxu0 0.0
    %1027 = vmatpush1.xpose.msra.mxu0 0.0
    %1028 = vmatprep.subr.mxu0 0.0
    %1029 = vmatpush1.xpose.msra.mxu0 0.0
    %1030 = vmatprep.subr.mxu0 0.0
    %1031 = vmatpush1.xpose.msra.mxu0 0.0
    %1032 = vmatprep.mubr.f32.mxu0 0.0
    %1033 = vmatmul.mubr.f32.gmra.mrb[0].mxu0 %v964
    %v1034 = vpop.f32.mrb[0].mxu0
    %v1035 = vadd.f32 0.0, %v1034
    %v1036 = vpop.f32.mrb[0].mxu0
    %1037 = vdwg.mxu0
    %1038 = vrot.lane.b32.xlu0 %v146, 112
    %v1039 = vpop.permute.xlu0 %1038
    %1040 = vrot.lane.b32.xlu0 %v225, 112
    %v1041 = vpop.permute.xlu0 %1040
    %v1042 = vsel %vm307, %v1039, 0
    %v1044 = vsel %vm307, %v1041, 0
    %1046 = vmatprep.subr.mxu0 0.0
    %1047 = vmatpush1.xpose.msra.mxu0 %v1044
    %1048 = vmatprep.subr.mxu0 0.0
    %1049 = vmatpush1.xpose.msra.mxu0 0.0
    %1050 = vmatprep.subr.mxu0 0.0
    %1051 = vmatpush1.xpose.msra.mxu0 0.0
    %1052 = vmatprep.subr.mxu0 0.0
    %1053 = vmatpush1.xpose.msra.mxu0 0.0
    %1054 = vmatprep.subr.mxu0 0.0
    %1055 = vmatpush1.xpose.msra.mxu0 0.0
    %1056 = vmatprep.subr.mxu0 0.0
    %1057 = vmatpush1.xpose.msra.mxu0 0.0
    %1058 = vmatprep.subr.mxu0 0.0
    %1059 = vmatpush1.xpose.msra.mxu0 0.0
    %1060 = vmatprep.subr.mxu0 0.0
    %1061 = vmatpush1.xpose.msra.mxu0 0.0
    %1062 = vmatprep.subr.mxu0 0.0
    %1063 = vmatpush1.xpose.msra.mxu0 0.0
    %1064 = vmatprep.subr.mxu0 0.0
    %1065 = vmatpush1.xpose.msra.mxu0 0.0
    %1066 = vmatprep.subr.mxu0 0.0
    %1067 = vmatpush1.xpose.msra.mxu0 0.0
    %1068 = vmatprep.subr.mxu0 0.0
    %1069 = vmatpush1.xpose.msra.mxu0 0.0
    %1070 = vmatprep.subr.mxu0 0.0
    %1071 = vmatpush1.xpose.msra.mxu0 0.0
    %1072 = vmatprep.subr.mxu0 0.0
    %1073 = vmatpush1.xpose.msra.mxu0 0.0
    %1074 = vmatprep.subr.mxu0 0.0
    %1075 = vmatpush1.xpose.msra.mxu0 0.0
    %1076 = vmatprep.subr.mxu0 0.0
    %1077 = vmatpush1.xpose.msra.mxu0 0.0
    %1078 = vmatprep.subr.mxu0 0.0
    %1079 = vmatpush1.xpose.msra.mxu0 0.0
    %1080 = vmatprep.subr.mxu0 0.0
    %1081 = vmatpush1.xpose.msra.mxu0 0.0
    %1082 = vmatprep.subr.mxu0 0.0
    %1083 = vmatpush1.xpose.msra.mxu0 0.0
    %1084 = vmatprep.subr.mxu0 0.0
    %1085 = vmatpush1.xpose.msra.mxu0 0.0
    %1086 = vmatprep.subr.mxu0 0.0
    %1087 = vmatpush1.xpose.msra.mxu0 0.0
    %1088 = vmatprep.subr.mxu0 0.0
    %1089 = vmatpush1.xpose.msra.mxu0 0.0
    %1090 = vmatprep.subr.mxu0 0.0
    %1091 = vmatpush1.xpose.msra.mxu0 0.0
    %1092 = vmatprep.subr.mxu0 0.0
    %1093 = vmatpush1.xpose.msra.mxu0 0.0
    %1094 = vmatprep.subr.mxu0 0.0
    %1095 = vmatpush1.xpose.msra.mxu0 0.0
    %1096 = vmatprep.subr.mxu0 0.0
    %1097 = vmatpush1.xpose.msra.mxu0 0.0
    %1098 = vmatprep.subr.mxu0 0.0
    %1099 = vmatpush1.xpose.msra.mxu0 0.0
    %1100 = vmatprep.subr.mxu0 0.0
    %1101 = vmatpush1.xpose.msra.mxu0 0.0
    %1102 = vmatprep.subr.mxu0 0.0
    %1103 = vmatpush1.xpose.msra.mxu0 0.0
    %1104 = vmatprep.subr.mxu0 0.0
    %1105 = vmatpush1.xpose.msra.mxu0 0.0
    %1106 = vmatprep.subr.mxu0 0.0
    %1107 = vmatpush1.xpose.msra.mxu0 0.0
    %1108 = vmatprep.subr.mxu0 0.0
    %1109 = vmatpush1.xpose.msra.mxu0 0.0
    %1110 = vmatprep.mubr.f32.mxu0 0.0
    %1111 = vmatmul.mubr.f32.gmra.mrb[0].mxu0 %v1042
    %v1112 = vpop.f32.mrb[0].mxu0
    %v1113 = vadd.f32 0.0, %v1112
    %v1114 = vpop.f32.mrb[0].mxu0
    %1115 = vdwg.mxu0
    %v1116 = vsel %vm307, %v1035, -inf
    %1117 = vmax.xlane.f32.xlu0 %v1116
    %v1118 = vpop.xlane.xlu0 %1117
    %v1119 = vsel %vm307, %v1113, -inf
    %1120 = vmax.xlane.f32.xlu0 %v1119
    %v1121 = vpop.xlane.xlu0 %1120
    %v1122 = vsub.f32 %v1035, %v1118
    %v1123 = vsub.f32 %v1113, %v1121
    %v1124 = vmul.f32 %v1122, 1.442695
    %v1125 = vpow.pop %v1124
    %v1126 = vmul.f32 %v1123, 1.442695
    %v1127 = vpow.pop %v1126
    %v1128 = vsel %vm307, %v1125, 0.0
    %1129 = vadd.xlane.f32.xlu0 %v1128
    %v1130 = vpop.xlane.xlu0 %1129
    %v1131 = vsel %vm307, %v1127, 0.0
    %1132 = vadd.xlane.f32.xlu0 %v1131
    %v1133 = vpop.xlane.xlu0 %1132
    %v1134 = vrcp.pop %v1130
    %v1135 = vrcp.pop %v1133
    %v1136 = vmul.f32 %v1125, %v1134
    %v1137 = vmul.f32 %v1127, %v1135
    %1138 = vrot.lane.b32.xlu0 %v299, 112
    %v1139 = vpop.permute.xlu0 %1138
    %v1142 = vsel %vm307, %v1136, 0
    %1144 = vmatprep.subr.mxu0 0.0
    %1145 = vmatpush1.msra.mxu0 %v1139
    %1146 = vmatprep.subr.mxu0 0.0
    %1147 = vmatpush1.msra.mxu0 0.0
    %1148 = vmatprep.subr.mxu0 0.0
    %1149 = vmatpush1.msra.mxu0 0.0
    %1150 = vmatprep.subr.mxu0 0.0
    %1151 = vmatpush1.msra.mxu0 0.0
    %1152 = vmatprep.subr.mxu0 0.0
    %1153 = vmatpush1.msra.mxu0 0.0
    %1154 = vmatprep.subr.mxu0 0.0
    %1155 = vmatpush1.msra.mxu0 0.0
    %1156 = vmatprep.subr.mxu0 0.0
    %1157 = vmatpush1.msra.mxu0 0.0
    %1158 = vmatprep.subr.mxu0 0.0
    %1159 = vmatpush1.msra.mxu0 0.0
    %1160 = vmatprep.subr.mxu0 0.0
    %1161 = vmatpush1.msra.mxu0 0.0
    %1162 = vmatprep.subr.mxu0 0.0
    %1163 = vmatpush1.msra.mxu0 0.0
    %1164 = vmatprep.subr.mxu0 0.0
    %1165 = vmatpush1.msra.mxu0 0.0
    %1166 = vmatprep.subr.mxu0 0.0
    %1167 = vmatpush1.msra.mxu0 0.0
    %1168 = vmatprep.subr.mxu0 0.0
    %1169 = vmatpush1.msra.mxu0 0.0
    %1170 = vmatprep.subr.mxu0 0.0
    %1171 = vmatpush1.msra.mxu0 0.0
    %1172 = vmatprep.subr.mxu0 0.0
    %1173 = vmatpush1.msra.mxu0 0.0
    %1174 = vmatprep.subr.mxu0 0.0
    %1175 = vmatpush1.msra.mxu0 0.0
    %1176 = vmatprep.subr.mxu0 0.0
    %1177 = vmatpush1.msra.mxu0 0.0
    %1178 = vmatprep.subr.mxu0 0.0
    %1179 = vmatpush1.msra.mxu0 0.0
    %1180 = vmatprep.subr.mxu0 0.0
    %1181 = vmatpush1.msra.mxu0 0.0
    %1182 = vmatprep.subr.mxu0 0.0
    %1183 = vmatpush1.msra.mxu0 0.0
    %1184 = vmatprep.subr.mxu0 0.0
    %1185 = vmatpush1.msra.mxu0 0.0
    %1186 = vmatprep.subr.mxu0 0.0
    %1187 = vmatpush1.msra.mxu0 0.0
    %1188 = vmatprep.subr.mxu0 0.0
    %1189 = vmatpush1.msra.mxu0 0.0
    %1190 = vmatprep.subr.mxu0 0.0
    %1191 = vmatpush1.msra.mxu0 0.0
    %1192 = vmatprep.subr.mxu0 0.0
    %1193 = vmatpush1.msra.mxu0 0.0
    %1194 = vmatprep.subr.mxu0 0.0
    %1195 = vmatpush1.msra.mxu0 0.0
    %1196 = vmatprep.subr.mxu0 0.0
    %1197 = vmatpush1.msra.mxu0 0.0
    %1198 = vmatprep.subr.mxu0 0.0
    %1199 = vmatpush1.msra.mxu0 0.0
    %1200 = vmatprep.subr.mxu0 0.0
    %1201 = vmatpush1.msra.mxu0 0.0
    %1202 = vmatprep.subr.mxu0 0.0
    %1203 = vmatpush1.msra.mxu0 0.0
    %1204 = vmatprep.subr.mxu0 0.0
    %1205 = vmatpush1.msra.mxu0 0.0
    %1206 = vmatprep.subr.mxu0 0.0
    %1207 = vmatpush1.msra.mxu0 0.0
    %1208 = vmatprep.mubr.f32.mxu0 0.0
    %1209 = vmatmul.mubr.f32.gmra.mrb[0].mxu0 %v1142
    %v1210 = vpop.f32.mrb[0].mxu0
    %v1211 = vadd.f32 0.0, %v1210
    %v1212 = vpop.f32.mrb[0].mxu0
    %1213 = vdwg.mxu0
    %1214 = vrot.lane.b32.xlu0 %v304, 112
    %v1215 = vpop.permute.xlu0 %1214
    %v1218 = vsel %vm307, %v1137, 0
    %1220 = vmatprep.subr.mxu0 0.0
    %1221 = vmatpush1.msra.mxu0 %v1215
    %1222 = vmatprep.subr.mxu0 0.0
    %1223 = vmatpush1.msra.mxu0 0.0
    %1224 = vmatprep.subr.mxu0 0.0
    %1225 = vmatpush1.msra.mxu0 0.0
    %1226 = vmatprep.subr.mxu0 0.0
    %1227 = vmatpush1.msra.mxu0 0.0
    %1228 = vmatprep.subr.mxu0 0.0
    %1229 = vmatpush1.msra.mxu0 0.0
    %1230 = vmatprep.subr.mxu0 0.0
    %1231 = vmatpush1.msra.mxu0 0.0
    %1232 = vmatprep.subr.mxu0 0.0
    %1233 = vmatpush1.msra.mxu0 0.0
    %1234 = vmatprep.subr.mxu0 0.0
    %1235 = vmatpush1.msra.mxu0 0.0
    %1236 = vmatprep.subr.mxu0 0.0
    %1237 = vmatpush1.msra.mxu0 0.0
    %1238 = vmatprep.subr.mxu0 0.0
    %1239 = vmatpush1.msra.mxu0 0.0
    %1240 = vmatprep.subr.mxu0 0.0
    %1241 = vmatpush1.msra.mxu0 0.0
    %1242 = vmatprep.subr.mxu0 0.0
    %1243 = vmatpush1.msra.mxu0 0.0
    %1244 = vmatprep.subr.mxu0 0.0
    %1245 = vmatpush1.msra.mxu0 0.0
    %1246 = vmatprep.subr.mxu0 0.0
    %1247 = vmatpush1.msra.mxu0 0.0
    %1248 = vmatprep.subr.mxu0 0.0
    %1249 = vmatpush1.msra.mxu0 0.0
    %1250 = vmatprep.subr.mxu0 0.0
    %1251 = vmatpush1.msra.mxu0 0.0
    %1252 = vmatprep.subr.mxu0 0.0
    %1253 = vmatpush1.msra.mxu0 0.0
    %1254 = vmatprep.subr.mxu0 0.0
    %1255 = vmatpush1.msra.mxu0 0.0
    %1256 = vmatprep.subr.mxu0 0.0
    %1257 = vmatpush1.msra.mxu0 0.0
    %1258 = vmatprep.subr.mxu0 0.0
    %1259 = vmatpush1.msra.mxu0 0.0
    %1260 = vmatprep.subr.mxu0 0.0
    %1261 = vmatpush1.msra.mxu0 0.0
    %1262 = vmatprep.subr.mxu0 0.0
    %1263 = vmatpush1.msra.mxu0 0.0
    %1264 = vmatprep.subr.mxu0 0.0
    %1265 = vmatpush1.msra.mxu0 0.0
    %1266 = vmatprep.subr.mxu0 0.0
    %1267 = vmatpush1.msra.mxu0 0.0
    %1268 = vmatprep.subr.mxu0 0.0
    %1269 = vmatpush1.msra.mxu0 0.0
    %1270 = vmatprep.subr.mxu0 0.0
    %1271 = vmatpush1.msra.mxu0 0.0
    %1272 = vmatprep.subr.mxu0 0.0
    %1273 = vmatpush1.msra.mxu0 0.0
    %1274 = vmatprep.subr.mxu0 0.0
    %1275 = vmatpush1.msra.mxu0 0.0
    %1276 = vmatprep.subr.mxu0 0.0
    %1277 = vmatpush1.msra.mxu0 0.0
    %1278 = vmatprep.subr.mxu0 0.0
    %1279 = vmatpush1.msra.mxu0 0.0
    %1280 = vmatprep.subr.mxu0 0.0
    %1281 = vmatpush1.msra.mxu0 0.0
    %1282 = vmatprep.subr.mxu0 0.0
    %1283 = vmatpush1.msra.mxu0 0.0
    %1284 = vmatprep.mubr.f32.mxu0 0.0
    %1285 = vmatmul.mubr.f32.gmra.mrb[0].mxu0 %v1218
    %v1286 = vpop.f32.mrb[0].mxu0
    %v1287 = vadd.f32 0.0, %v1286
    %v1288 = vpop.f32.mrb[0].mxu0
    %1289 = vdwg.mxu0
    %1290 = vrot.lane.b32.xlu0 %v141, 104
    %v1291 = vpop.permute.xlu0 %1290
    %1292 = vrot.lane.b32.xlu0 %v220, 104
    %v1293 = vpop.permute.xlu0 %1292
    %v1294 = vsel %vm307, %v1291, 0
    %v1296 = vsel %vm307, %v1293, 0
    %1298 = vmatprep.subr.mxu0 0.0
    %1299 = vmatpush1.xpose.msra.mxu0 %v1296
    %1300 = vmatprep.subr.mxu0 0.0
    %1301 = vmatpush1.xpose.msra.mxu0 0.0
    %1302 = vmatprep.subr.mxu0 0.0
    %1303 = vmatpush1.xpose.msra.mxu0 0.0
    %1304 = vmatprep.subr.mxu0 0.0
    %1305 = vmatpush1.xpose.msra.mxu0 0.0
    %1306 = vmatprep.subr.mxu0 0.0
    %1307 = vmatpush1.xpose.msra.mxu0 0.0
    %1308 = vmatprep.subr.mxu0 0.0
    %1309 = vmatpush1.xpose.msra.mxu0 0.0
    %1310 = vmatprep.subr.mxu0 0.0
    %1311 = vmatpush1.xpose.msra.mxu0 0.0
    %1312 = vmatprep.subr.mxu0 0.0
    %1313 = vmatpush1.xpose.msra.mxu0 0.0
    %1314 = vmatprep.subr.mxu0 0.0
    %1315 = vmatpush1.xpose.msra.mxu0 0.0
    %1316 = vmatprep.subr.mxu0 0.0
    %1317 = vmatpush1.xpose.msra.mxu0 0.0
    %1318 = vmatprep.subr.mxu0 0.0
    %1319 = vmatpush1.xpose.msra.mxu0 0.0
    %1320 = vmatprep.subr.mxu0 0.0
    %1321 = vmatpush1.xpose.msra.mxu0 0.0
    %1322 = vmatprep.subr.mxu0 0.0
    %1323 = vmatpush1.xpose.msra.mxu0 0.0
    %1324 = vmatprep.subr.mxu0 0.0
    %1325 = vmatpush1.xpose.msra.mxu0 0.0
    %1326 = vmatprep.subr.mxu0 0.0
    %1327 = vmatpush1.xpose.msra.mxu0 0.0
    %1328 = vmatprep.subr.mxu0 0.0
    %1329 = vmatpush1.xpose.msra.mxu0 0.0
    %1330 = vmatprep.subr.mxu0 0.0
    %1331 = vmatpush1.xpose.msra.mxu0 0.0
    %1332 = vmatprep.subr.mxu0 0.0
    %1333 = vmatpush1.xpose.msra.mxu0 0.0
    %1334 = vmatprep.subr.mxu0 0.0
    %1335 = vmatpush1.xpose.msra.mxu0 0.0
    %1336 = vmatprep.subr.mxu0 0.0
    %1337 = vmatpush1.xpose.msra.mxu0 0.0
    %1338 = vmatprep.subr.mxu0 0.0
    %1339 = vmatpush1.xpose.msra.mxu0 0.0
    %1340 = vmatprep.subr.mxu0 0.0
    %1341 = vmatpush1.xpose.msra.mxu0 0.0
    %1342 = vmatprep.subr.mxu0 0.0
    %1343 = vmatpush1.xpose.msra.mxu0 0.0
    %1344 = vmatprep.subr.mxu0 0.0
    %1345 = vmatpush1.xpose.msra.mxu0 0.0
    %1346 = vmatprep.subr.mxu0 0.0
    %1347 = vmatpush1.xpose.msra.mxu0 0.0
    %1348 = vmatprep.subr.mxu0 0.0
    %1349 = vmatpush1.xpose.msra.mxu0 0.0
    %1350 = vmatprep.subr.mxu0 0.0
    %1351 = vmatpush1.xpose.msra.mxu0 0.0
    %1352 = vmatprep.subr.mxu0 0.0
    %1353 = vmatpush1.xpose.msra.mxu0 0.0
    %1354 = vmatprep.subr.mxu0 0.0
    %1355 = vmatpush1.xpose.msra.mxu0 0.0
    %1356 = vmatprep.subr.mxu0 0.0
    %1357 = vmatpush1.xpose.msra.mxu0 0.0
    %1358 = vmatprep.subr.mxu0 0.0
    %1359 = vmatpush1.xpose.msra.mxu0 0.0
    %1360 = vmatprep.subr.mxu0 0.0
    %1361 = vmatpush1.xpose.msra.mxu0 0.0
    %1362 = vmatprep.mubr.f32.mxu0 0.0
    %1363 = vmatmul.mubr.f32.gmra.mrb[0].mxu0 %v1294
    %v1364 = vpop.f32.mrb[0].mxu0
    %v1365 = vadd.f32 0.0, %v1364
    %v1366 = vpop.f32.mrb[0].mxu0
    %1367 = vdwg.mxu0
    %1368 = vrot.lane.b32.xlu0 %v146, 104
    %v1369 = vpop.permute.xlu0 %1368
    %1370 = vrot.lane.b32.xlu0 %v225, 104
    %v1371 = vpop.permute.xlu0 %1370
    %v1372 = vsel %vm307, %v1369, 0
    %v1374 = vsel %vm307, %v1371, 0
    %1376 = vmatprep.subr.mxu0 0.0
    %1377 = vmatpush1.xpose.msra.mxu0 %v1374
    %1378 = vmatprep.subr.mxu0 0.0
    %1379 = vmatpush1.xpose.msra.mxu0 0.0
    %1380 = vmatprep.subr.mxu0 0.0
    %1381 = vmatpush1.xpose.msra.mxu0 0.0
    %1382 = vmatprep.subr.mxu0 0.0
    %1383 = vmatpush1.xpose.msra.mxu0 0.0
    %1384 = vmatprep.subr.mxu0 0.0
    %1385 = vmatpush1.xpose.msra.mxu0 0.0
    %1386 = vmatprep.subr.mxu0 0.0
    %1387 = vmatpush1.xpose.msra.mxu0 0.0
    %1388 = vmatprep.subr.mxu0 0.0
    %1389 = vmatpush1.xpose.msra.mxu0 0.0
    %1390 = vmatprep.subr.mxu0 0.0
    %1391 = vmatpush1.xpose.msra.mxu0 0.0
    %1392 = vmatprep.subr.mxu0 0.0
    %1393 = vmatpush1.xpose.msra.mxu0 0.0
    %1394 = vmatprep.subr.mxu0 0.0
    %1395 = vmatpush1.xpose.msra.mxu0 0.0
    %1396 = vmatprep.subr.mxu0 0.0
    %1397 = vmatpush1.xpose.msra.mxu0 0.0
    %1398 = vmatprep.subr.mxu0 0.0
    %1399 = vmatpush1.xpose.msra.mxu0 0.0
    %1400 = vmatprep.subr.mxu0 0.0
    %1401 = vmatpush1.xpose.msra.mxu0 0.0
    %1402 = vmatprep.subr.mxu0 0.0
    %1403 = vmatpush1.xpose.msra.mxu0 0.0
    %1404 = vmatprep.subr.mxu0 0.0
    %1405 = vmatpush1.xpose.msra.mxu0 0.0
    %1406 = vmatprep.subr.mxu0 0.0
    %1407 = vmatpush1.xpose.msra.mxu0 0.0
    %1408 = vmatprep.subr.mxu0 0.0
    %1409 = vmatpush1.xpose.msra.mxu0 0.0
    %1410 = vmatprep.subr.mxu0 0.0
    %1411 = vmatpush1.xpose.msra.mxu0 0.0
    %1412 = vmatprep.subr.mxu0 0.0
    %1413 = vmatpush1.xpose.msra.mxu0 0.0
    %1414 = vmatprep.subr.mxu0 0.0
    %1415 = vmatpush1.xpose.msra.mxu0 0.0
    %1416 = vmatprep.subr.mxu0 0.0
    %1417 = vmatpush1.xpose.msra.mxu0 0.0
    %1418 = vmatprep.subr.mxu0 0.0
    %1419 = vmatpush1.xpose.msra.mxu0 0.0
    %1420 = vmatprep.subr.mxu0 0.0
    %1421 = vmatpush1.xpose.msra.mxu0 0.0
    %1422 = vmatprep.subr.mxu0 0.0
    %1423 = vmatpush1.xpose.msra.mxu0 0.0
    %1424 = vmatprep.subr.mxu0 0.0
    %1425 = vmatpush1.xpose.msra.mxu0 0.0
    %1426 = vmatprep.subr.mxu0 0.0
    %1427 = vmatpush1.xpose.msra.mxu0 0.0
    %1428 = vmatprep.subr.mxu0 0.0
    %1429 = vmatpush1.xpose.msra.mxu0 0.0
    %1430 = vmatprep.subr.mxu0 0.0
    %1431 = vmatpush1.xpose.msra.mxu0 0.0
    %1432 = vmatprep.subr.mxu0 0.0
    %1433 = vmatpush1.xpose.msra.mxu0 0.0
    %1434 = vmatprep.subr.mxu0 0.0
    %1435 = vmatpush1.xpose.msra.mxu0 0.0
    %1436 = vmatprep.subr.mxu0 0.0
    %1437 = vmatpush1.xpose.msra.mxu0 0.0
    %1438 = vmatprep.subr.mxu0 0.0
    %1439 = vmatpush1.xpose.msra.mxu0 0.0
    %1440 = vmatprep.mubr.f32.mxu0 0.0
    %1441 = vmatmul.mubr.f32.gmra.mrb[0].mxu0 %v1372
    %v1442 = vpop.f32.mrb[0].mxu0
    %v1443 = vadd.f32 0.0, %v1442
    %v1444 = vpop.f32.mrb[0].mxu0
    %1445 = vdwg.mxu0
    %v1446 = vsel %vm307, %v1365, -inf
    %1447 = vmax.xlane.f32.xlu0 %v1446
    %v1448 = vpop.xlane.xlu0 %1447
    %v1449 = vsel %vm307, %v1443, -inf
    %1450 = vmax.xlane.f32.xlu0 %v1449
    %v1451 = vpop.xlane.xlu0 %1450
    %v1452 = vsub.f32 %v1365, %v1448
    %v1453 = vsub.f32 %v1443, %v1451
    %v1454 = vmul.f32 %v1452, 1.442695
    %v1455 = vpow.pop %v1454
    %v1456 = vmul.f32 %v1453, 1.442695
    %v1457 = vpow.pop %v1456
    %v1458 = vsel %vm307, %v1455, 0.0
    %1459 = vadd.xlane.f32.xlu0 %v1458
    %v1460 = vpop.xlane.xlu0 %1459
    %v1461 = vsel %vm307, %v1457, 0.0
    %1462 = vadd.xlane.f32.xlu0 %v1461
    %v1463 = vpop.xlane.xlu0 %1462
    %v1464 = vrcp.pop %v1460
    %v1465 = vrcp.pop %v1463
    %v1466 = vmul.f32 %v1455, %v1464
    %v1467 = vmul.f32 %v1457, %v1465
    %1468 = vrot.lane.b32.xlu0 %v299, 104
    %v1469 = vpop.permute.xlu0 %1468
    %v1472 = vsel %vm307, %v1466, 0
    %1474 = vmatprep.subr.mxu0 0.0
    %1475 = vmatpush1.msra.mxu0 %v1469
    %1476 = vmatprep.subr.mxu0 0.0
    %1477 = vmatpush1.msra.mxu0 0.0
    %1478 = vmatprep.subr.mxu0 0.0
    %1479 = vmatpush1.msra.mxu0 0.0
    %1480 = vmatprep.subr.mxu0 0.0
    %1481 = vmatpush1.msra.mxu0 0.0
    %1482 = vmatprep.subr.mxu0 0.0
    %1483 = vmatpush1.msra.mxu0 0.0
    %1484 = vmatprep.subr.mxu0 0.0
    %1485 = vmatpush1.msra.mxu0 0.0
    %1486 = vmatprep.subr.mxu0 0.0
    %1487 = vmatpush1.msra.mxu0 0.0
    %1488 = vmatprep.subr.mxu0 0.0
    %1489 = vmatpush1.msra.mxu0 0.0
    %1490 = vmatprep.subr.mxu0 0.0
    %1491 = vmatpush1.msra.mxu0 0.0
    %1492 = vmatprep.subr.mxu0 0.0
    %1493 = vmatpush1.msra.mxu0 0.0
    %1494 = vmatprep.subr.mxu0 0.0
    %1495 = vmatpush1.msra.mxu0 0.0
    %1496 = vmatprep.subr.mxu0 0.0
    %1497 = vmatpush1.msra.mxu0 0.0
    %1498 = vmatprep.subr.mxu0 0.0
    %1499 = vmatpush1.msra.mxu0 0.0
    %1500 = vmatprep.subr.mxu0 0.0
    %1501 = vmatpush1.msra.mxu0 0.0
    %1502 = vmatprep.subr.mxu0 0.0
    %1503 = vmatpush1.msra.mxu0 0.0
    %1504 = vmatprep.subr.mxu0 0.0
    %1505 = vmatpush1.msra.mxu0 0.0
    %1506 = vmatprep.subr.mxu0 0.0
    %1507 = vmatpush1.msra.mxu0 0.0
    %1508 = vmatprep.subr.mxu0 0.0
    %1509 = vmatpush1.msra.mxu0 0.0
    %1510 = vmatprep.subr.mxu0 0.0
    %1511 = vmatpush1.msra.mxu0 0.0
    %1512 = vmatprep.subr.mxu0 0.0
    %1513 = vmatpush1.msra.mxu0 0.0
    %1514 = vmatprep.subr.mxu0 0.0
    %1515 = vmatpush1.msra.mxu0 0.0
    %1516 = vmatprep.subr.mxu0 0.0
    %1517 = vmatpush1.msra.mxu0 0.0
    %1518 = vmatprep.subr.mxu0 0.0
    %1519 = vmatpush1.msra.mxu0 0.0
    %1520 = vmatprep.subr.mxu0 0.0
    %1521 = vmatpush1.msra.mxu0 0.0
    %1522 = vmatprep.subr.mxu0 0.0
    %1523 = vmatpush1.msra.mxu0 0.0
    %1524 = vmatprep.subr.mxu0 0.0
    %1525 = vmatpush1.msra.mxu0 0.0
    %1526 = vmatprep.subr.mxu0 0.0
    %1527 = vmatpush1.msra.mxu0 0.0
    %1528 = vmatprep.subr.mxu0 0.0
    %1529 = vmatpush1.msra.mxu0 0.0
    %1530 = vmatprep.subr.mxu0 0.0
    %1531 = vmatpush1.msra.mxu0 0.0
    %1532 = vmatprep.subr.mxu0 0.0
    %1533 = vmatpush1.msra.mxu0 0.0
    %1534 = vmatprep.subr.mxu0 0.0
    %1535 = vmatpush1.msra.mxu0 0.0
    %1536 = vmatprep.subr.mxu0 0.0
    %1537 = vmatpush1.msra.mxu0 0.0
    %1538 = vmatprep.mubr.f32.mxu0 0.0
    %1539 = vmatmul.mubr.f32.gmra.mrb[0].mxu0 %v1472
    %v1540 = vpop.f32.mrb[0].mxu0
    %v1541 = vadd.f32 0.0, %v1540
    %v1542 = vpop.f32.mrb[0].mxu0
    %1543 = vdwg.mxu0
    %1544 = vrot.lane.b32.xlu0 %v304, 104
    %v1545 = vpop.permute.xlu0 %1544
    %v1548 = vsel %vm307, %v1467, 0
    %1550 = vmatprep.subr.mxu0 0.0
    %1551 = vmatpush1.msra.mxu0 %v1545
    %1552 = vmatprep.subr.mxu0 0.0
    %1553 = vmatpush1.msra.mxu0 0.0
    %1554 = vmatprep.subr.mxu0 0.0
    %1555 = vmatpush1.msra.mxu0 0.0
    %1556 = vmatprep.subr.mxu0 0.0
    %1557 = vmatpush1.msra.mxu0 0.0
    %1558 = vmatprep.subr.mxu0 0.0
    %1559 = vmatpush1.msra.mxu0 0.0
    %1560 = vmatprep.subr.mxu0 0.0
    %1561 = vmatpush1.msra.mxu0 0.0
    %1562 = vmatprep.subr.mxu0 0.0
    %1563 = vmatpush1.msra.mxu0 0.0
    %1564 = vmatprep.subr.mxu0 0.0
    %1565 = vmatpush1.msra.mxu0 0.0
    %1566 = vmatprep.subr.mxu0 0.0
    %1567 = vmatpush1.msra.mxu0 0.0
    %1568 = vmatprep.subr.mxu0 0.0
    %1569 = vmatpush1.msra.mxu0 0.0
    %1570 = vmatprep.subr.mxu0 0.0
    %1571 = vmatpush1.msra.mxu0 0.0
    %1572 = vmatprep.subr.mxu0 0.0
    %1573 = vmatpush1.msra.mxu0 0.0
    %1574 = vmatprep.subr.mxu0 0.0
    %1575 = vmatpush1.msra.mxu0 0.0
    %1576 = vmatprep.subr.mxu0 0.0
    %1577 = vmatpush1.msra.mxu0 0.0
    %1578 = vmatprep.subr.mxu0 0.0
    %1579 = vmatpush1.msra.mxu0 0.0
    %1580 = vmatprep.subr.mxu0 0.0
    %1581 = vmatpush1.msra.mxu0 0.0
    %1582 = vmatprep.subr.mxu0 0.0
    %1583 = vmatpush1.msra.mxu0 0.0
    %1584 = vmatprep.subr.mxu0 0.0
    %1585 = vmatpush1.msra.mxu0 0.0
    %1586 = vmatprep.subr.mxu0 0.0
    %1587 = vmatpush1.msra.mxu0 0.0
    %1588 = vmatprep.subr.mxu0 0.0
    %1589 = vmatpush1.msra.mxu0 0.0
    %1590 = vmatprep.subr.mxu0 0.0
    %1591 = vmatpush1.msra.mxu0 0.0
    %1592 = vmatprep.subr.mxu0 0.0
    %1593 = vmatpush1.msra.mxu0 0.0
    %1594 = vmatprep.subr.mxu0 0.0
    %1595 = vmatpush1.msra.mxu0 0.0
    %1596 = vmatprep.subr.mxu0 0.0
    %1597 = vmatpush1.msra.mxu0 0.0
    %1598 = vmatprep.subr.mxu0 0.0
    %1599 = vmatpush1.msra.mxu0 0.0
    %1600 = vmatprep.subr.mxu0 0.0
    %1601 = vmatpush1.msra.mxu0 0.0
    %1602 = vmatprep.subr.mxu0 0.0
    %1603 = vmatpush1.msra.mxu0 0.0
    %1604 = vmatprep.subr.mxu0 0.0
    %1605 = vmatpush1.msra.mxu0 0.0
    %1606 = vmatprep.subr.mxu0 0.0
    %1607 = vmatpush1.msra.mxu0 0.0
    %1608 = vmatprep.subr.mxu0 0.0
    %1609 = vmatpush1.msra.mxu0 0.0
    %1610 = vmatprep.subr.mxu0 0.0
    %1611 = vmatpush1.msra.mxu0 0.0
    %1612 = vmatprep.subr.mxu0 0.0
    %1613 = vmatpush1.msra.mxu0 0.0
    %1614 = vmatprep.mubr.f32.mxu0 0.0
    %1615 = vmatmul.mubr.f32.gmra.mrb[0].mxu0 %v1548
    %v1616 = vpop.f32.mrb[0].mxu0
    %v1617 = vadd.f32 0.0, %v1616
    %v1618 = vpop.f32.mrb[0].mxu0
    %1619 = vdwg.mxu0
    %1622 = vrot.lane.b32.xlu0 %v880, 8
    %v1623 = vpop.permute.xlu0 %1622
    %1624 = vrot.lane.b32.xlu0 %v957, 8
    %v1625 = vpop.permute.xlu0 %1624
    %1630 = vrot.lane.b32.xlu0 %v1211, 16
    %v1631 = vpop.permute.xlu0 %1630
    %1632 = vrot.lane.b32.xlu0 %v1287, 16
    %v1633 = vpop.permute.xlu0 %1632
    %1638 = vrot.lane.b32.xlu0 %v1541, 24
    %v1639 = vpop.permute.xlu0 %1638
    %1640 = vrot.lane.b32.xlu0 %v1617, 24
    %v1641 = vpop.permute.xlu0 %1640
    %v1644 = vsel %vm307, %v552, %v1623
    %v1645 = vsel %vm307, %v625, %v1625
    %vm1646 = vcmask 130048
    %v1647 = vsel %vm1646, %v1644, %v1631
    %v1648 = vsel %vm1646, %v1645, %v1633
    %vm1649 = vcmask 195584
    %v1650 = vsel %vm1649, %v1647, %v1639
    %v1651 = vsel %vm1649, %v1648, %v1641
    %v1652 = vld [vmem:[%s4] sm:$0xff]
    %v1653 = vld [vmem:[%s4 + $0x8] sm:$0xff]
    %v1654 = vld [vmem:[%s4 + $0x10] sm:$0xff]
    %v1655 = vld [vmem:[%s4 + $0x18] sm:$0xff]
    %v1656 = vld [vmem:[%s5] sm:$0x1]
    %v1658 = vlaneseq
    %v1659 = vshrl.u32 %v1658, 7
    %v1660 = vsub.s32 0, %v1659
    %v1661 = vrot.slane %v1656, %v1660
    %v1664 = vsel %vm67, %v1650, 0
    %v1667 = vsel %vm67, %v1651, 0
    %1669 = vmatprep.subr.mxu0 0.0
    %1670 = vmatpush1.msra.mxu0 %v1652
    %1671 = vmatprep.subr.mxu0 0.0
    %1672 = vmatpush1.msra.mxu0 %v1653
    %1673 = vmatprep.subr.mxu0 0.0
    %1674 = vmatpush1.msra.mxu0 %v1654
    %1675 = vmatprep.subr.mxu0 0.0
    %1676 = vmatpush1.msra.mxu0 %v1655
    %1677 = vmatprep.subr.mxu0 0.0
    %1678 = vmatpush1.msra.mxu0 0.0
    %1679 = vmatprep.subr.mxu0 0.0
    %1680 = vmatpush1.msra.mxu0 0.0
    %1681 = vmatprep.subr.mxu0 0.0
    %1682 = vmatpush1.msra.mxu0 0.0
    %1683 = vmatprep.subr.mxu0 0.0
    %1684 = vmatpush1.msra.mxu0 0.0
    %1685 = vmatprep.subr.mxu0 0.0
    %1686 = vmatpush1.msra.mxu0 0.0
    %1687 = vmatprep.subr.mxu0 0.0
    %1688 = vmatpush1.msra.mxu0 0.0
    %1689 = vmatprep.subr.mxu0 0.0
    %1690 = vmatpush1.msra.mxu0 0.0
    %1691 = vmatprep.subr.mxu0 0.0
    %1692 = vmatpush1.msra.mxu0 0.0
    %1693 = vmatprep.subr.mxu0 0.0
    %1694 = vmatpush1.msra.mxu0 0.0
    %1695 = vmatprep.subr.mxu0 0.0
    %1696 = vmatpush1.msra.mxu0 0.0
    %1697 = vmatprep.subr.mxu0 0.0
    %1698 = vmatpush1.msra.mxu0 0.0
    %1699 = vmatprep.subr.mxu0 0.0
    %1700 = vmatpush1.msra.mxu0 0.0
    %1701 = vmatprep.subr.mxu0 0.0
    %1702 = vmatpush1.msra.mxu0 0.0
    %1703 = vmatprep.subr.mxu0 0.0
    %1704 = vmatpush1.msra.mxu0 0.0
    %1705 = vmatprep.subr.mxu0 0.0
    %1706 = vmatpush1.msra.mxu0 0.0
    %1707 = vmatprep.subr.mxu0 0.0
    %1708 = vmatpush1.msra.mxu0 0.0
    %1709 = vmatprep.subr.mxu0 0.0
    %1710 = vmatpush1.msra.mxu0 0.0
    %1711 = vmatprep.subr.mxu0 0.0
    %1712 = vmatpush1.msra.mxu0 0.0
    %1713 = vmatprep.subr.mxu0 0.0
    %1714 = vmatpush1.msra.mxu0 0.0
    %1715 = vmatprep.subr.mxu0 0.0
    %1716 = vmatpush1.msra.mxu0 0.0
    %1717 = vmatprep.subr.mxu0 0.0
    %1718 = vmatpush1.msra.mxu0 0.0
    %1719 = vmatprep.subr.mxu0 0.0
    %1720 = vmatpush1.msra.mxu0 0.0
    %1721 = vmatprep.subr.mxu0 0.0
    %1722 = vmatpush1.msra.mxu0 0.0
    %1723 = vmatprep.subr.mxu0 0.0
    %1724 = vmatpush1.msra.mxu0 0.0
    %1725 = vmatprep.subr.mxu0 0.0
    %1726 = vmatpush1.msra.mxu0 0.0
    %1727 = vmatprep.subr.mxu0 0.0
    %1728 = vmatpush1.msra.mxu0 0.0
    %1729 = vmatprep.subr.mxu0 0.0
    %1730 = vmatpush1.msra.mxu0 0.0
    %1731 = vmatprep.subr.mxu0 0.0
    %1732 = vmatpush1.msra.mxu0 0.0
    %1733 = vmatprep.mubr.f32.mxu0 0.0
    %1734 = vmatmul.mubr.f32.gmra.mrb[0].mxu0 %v1664
    %v1735 = vpop.f32.mrb[0].mxu0
    %v1736 = vadd.f32 %v1661, %v1735
    %v1737 = vpop.f32.mrb[0].mxu0
    %1738 = vmatprep.mubr.f32.mxu0 0.0
    %1739 = vmatmul.mubr.f32.gmra.mrb[0].mxu0 %v1667
    %v1740 = vpop.f32.mrb[0].mxu0
    %v1741 = vadd.f32 %v1661, %v1740
    %v1742 = vpop.f32.mrb[0].mxu0
    %1743 = vdwg.mxu0
    %v1744 = vadd.f32 %v1736, %v61
    %v1745 = vadd.f32 %v1741, %v62
    %v1746 = vld [vmem:[%s6] sm:$0x1]
    %v1747 = vld [vmem:[%s7] sm:$0x1]
    %v1748 = vsel %vm67, %v1744, 0.0
    %1749 = vadd.xlane.f32.xlu0 %v1748
    %v1750 = vpop.xlane.xlu0 %1749
    %v1751 = vsel %vm67, %v1745, 0.0
    %1752 = vadd.xlane.f32.xlu0 %v1751
    %v1753 = vpop.xlane.xlu0 %1752
    %v1754 = vrcp.pop 32.0
    %v1755 = vmul.f32 %v1750, %v1754
    %v1756 = vmul.f32 %v1753, %v1754
    %v1757 = vsub.f32 %v1744, %v1755
    %v1758 = vsub.f32 %v1745, %v1756
    %v1759 = vmul.f32 %v1757, %v1757
    %v1760 = vmul.f32 %v1758, %v1758
    %v1761 = vsel %vm67, %v1759, 0.0
    %1762 = vadd.xlane.f32.xlu0 %v1761
    %v1763 = vpop.xlane.xlu0 %1762
    %v1764 = vsel %vm67, %v1760, 0.0
    %1765 = vadd.xlane.f32.xlu0 %v1764
    %v1766 = vpop.xlane.xlu0 %1765
    %v1767 = vmul.f32 %v1763, %v1754
    %v1768 = vmul.f32 %v1766, %v1754
    %v1769 = vadd.f32 %v1767, 1e-05
    %v1770 = vadd.f32 %v1768, 1e-05
    %v1771 = vrsqrt.pop %v1769
    %v1772 = vrsqrt.pop %v1770
    %v1773 = vmul.f32 %v1757, %v1771
    %v1774 = vmul.f32 %v1758, %v1772
    %v1776 = vlaneseq
    %v1777 = vshrl.u32 %v1776, 7
    %v1778 = vsub.s32 0, %v1777
    %v1779 = vrot.slane %v1746, %v1778
    %v1781 = vmul.f32 %v1773, %v1779
    %v1782 = vmul.f32 %v1774, %v1779
    %v1784 = vlaneseq
    %v1785 = vshrl.u32 %v1784, 7
    %v1786 = vsub.s32 0, %v1785
    %v1787 = vrot.slane %v1747, %v1786
    %v1789 = vadd.f32 %v1781, %v1787
    %v1790 = vadd.f32 %v1782, %v1787
    %v1791 = vld [vmem:[%s10] sm:$0xff]
    %v1792 = vld [vmem:[%s10 + $0x8] sm:$0xff]
    %v1793 = vld [vmem:[%s10 + $0x10] sm:$0xff]
    %v1794 = vld [vmem:[%s10 + $0x18] sm:$0xff]
    %v1795 = vld [vmem:[%s11] sm:$0x1]
    %v1797 = vlaneseq
    %v1798 = vshrl.u32 %v1797, 7
    %v1799 = vsub.s32 0, %v1798
    %v1800 = vrot.slane %v1795, %v1799
    %v1803 = vsel %vm67, %v1789, 0
    %v1806 = vsel %vm67, %v1790, 0
    %1808 = vmatprep.subr.mxu0 0.0
    %1809 = vmatpush1.msra.mxu0 %v1791
    %1810 = vmatprep.subr.mxu0 0.0
    %1811 = vmatpush1.msra.mxu0 %v1792
    %1812 = vmatprep.subr.mxu0 0.0
    %1813 = vmatpush1.msra.mxu0 %v1793
    %1814 = vmatprep.subr.mxu0 0.0
    %1815 = vmatpush1.msra.mxu0 %v1794
    %1816 = vmatprep.subr.mxu0 0.0
    %1817 = vmatpush1.msra.mxu0 0.0
    %1818 = vmatprep.subr.mxu0 0.0
    %1819 = vmatpush1.msra.mxu0 0.0
    %1820 = vmatprep.subr.mxu0 0.0
    %1821 = vmatpush1.msra.mxu0 0.0
    %1822 = vmatprep.subr.mxu0 0.0
    %1823 = vmatpush1.msra.mxu0 0.0
    %1824 = vmatprep.subr.mxu0 0.0
    %1825 = vmatpush1.msra.mxu0 0.0
    %1826 = vmatprep.subr.mxu0 0.0
    %1827 = vmatpush1.msra.mxu0 0.0
    %1828 = vmatprep.subr.mxu0 0.0
    %1829 = vmatpush1.msra.mxu0 0.0
    %1830 = vmatprep.subr.mxu0 0.0
    %1831 = vmatpush1.msra.mxu0 0.0
    %1832 = vmatprep.subr.mxu0 0.0
    %1833 = vmatpush1.msra.mxu0 0.0
    %1834 = vmatprep.subr.mxu0 0.0
    %1835 = vmatpush1.msra.mxu0 0.0
    %1836 = vmatprep.subr.mxu0 0.0
    %1837 = vmatpush1.msra.mxu0 0.0
    %1838 = vmatprep.subr.mxu0 0.0
    %1839 = vmatpush1.msra.mxu0 0.0
    %1840 = vmatprep.subr.mxu0 0.0
    %1841 = vmatpush1.msra.mxu0 0.0
    %1842 = vmatprep.subr.mxu0 0.0
    %1843 = vmatpush1.msra.mxu0 0.0
    %1844 = vmatprep.subr.mxu0 0.0
    %1845 = vmatpush1.msra.mxu0 0.0
    %1846 = vmatprep.subr.mxu0 0.0
    %1847 = vmatpush1.msra.mxu0 0.0
    %1848 = vmatprep.subr.mxu0 0.0
    %1849 = vmatpush1.msra.mxu0 0.0
    %1850 = vmatprep.subr.mxu0 0.0
    %1851 = vmatpush1.msra.mxu0 0.0
    %1852 = vmatprep.subr.mxu0 0.0
    %1853 = vmatpush1.msra.mxu0 0.0
    %1854 = vmatprep.subr.mxu0 0.0
    %1855 = vmatpush1.msra.mxu0 0.0
    %1856 = vmatprep.subr.mxu0 0.0
    %1857 = vmatpush1.msra.mxu0 0.0
    %1858 = vmatprep.subr.mxu0 0.0
    %1859 = vmatpush1.msra.mxu0 0.0
    %1860 = vmatprep.subr.mxu0 0.0
    %1861 = vmatpush1.msra.mxu0 0.0
    %1862 = vmatprep.subr.mxu0 0.0
    %1863 = vmatpush1.msra.mxu0 0.0
    %1864 = vmatprep.subr.mxu0 0.0
    %1865 = vmatpush1.msra.mxu0 0.0
    %1866 = vmatprep.subr.mxu0 0.0
    %1867 = vmatpush1.msra.mxu0 0.0
    %1868 = vmatprep.subr.mxu0 0.0
    %1869 = vmatpush1.msra.mxu0 0.0
    %1870 = vmatprep.subr.mxu0 0.0
    %1871 = vmatpush1.msra.mxu0 0.0
    %1872 = vmatprep.mubr.f32.mxu0 0.0
    %1873 = vmatmul.mubr.f32.gmra.mrb[0].mxu0 %v1803
    %v1874 = vpop.f32.mrb[0].mxu0
    %v1875 = vadd.f32 %v1800, %v1874
    %v1876 = vpop.f32.mrb[0].mxu0
    %1877 = vmatprep.mubr.f32.mxu0 0.0
    %1878 = vmatmul.mubr.f32.gmra.mrb[0].mxu0 %v1806
    %v1879 = vpop.f32.mrb[0].mxu0
    %v1880 = vadd.f32 %v1800, %v1879
    %v1881 = vpop.f32.mrb[0].mxu0
    %1882 = vdwg.mxu0
    %v1883 = vmax.f32 %v1875, 0.0
    %v1884 = vmax.f32 %v1880, 0.0
    %v1885 = vld [vmem:[%s12] sm:$0xff]
    %v1886 = vld [vmem:[%s12 + $0x8] sm:$0xff]
    %v1887 = vld [vmem:[%s12 + $0x10] sm:$0xff]
    %v1888 = vld [vmem:[%s12 + $0x18] sm:$0xff]
    %v1889 = vld [vmem:[%s12 + $0x20] sm:$0xff]
    %v1890 = vld [vmem:[%s12 + $0x28] sm:$0xff]
    %v1891 = vld [vmem:[%s12 + $0x30] sm:$0xff]
    %v1892 = vld [vmem:[%s12 + $0x38] sm:$0xff]
    %v1893 = vld [vmem:[%s12 + $0x40] sm:$0xff]
    %v1894 = vld [vmem:[%s12 + $0x48] sm:$0xff]
    %v1895 = vld [vmem:[%s12 + $0x50] sm:$0xff]
    %v1896 = vld [vmem:[%s12 + $0x58] sm:$0xff]
    %v1897 = vld [vmem:[%s12 + $0x60] sm:$0xff]
    %v1898 = vld [vmem:[%s12 + $0x68] sm:$0xff]
    %v1899 = vld [vmem:[%s12 + $0x70] sm:$0xff]
    %v1900 = vld [vmem:[%s12 + $0x78] sm:$0xff]
    %v1901 = vld [vmem:[%s13] sm:$0x1]
    %v1903 = vlaneseq
    %v1904 = vshrl.u32 %v1903, 7
    %v1905 = vsub.s32 0, %v1904
    %v1906 = vrot.slane %v1901, %v1905
    %1908 = vmatprep.subr.mxu0 0.0
    %1909 = vmatpush1.msra.mxu0 %v1885
    %1910 = vmatprep.subr.mxu0 0.0
    %1911 = vmatpush1.msra.mxu0 %v1886
    %1912 = vmatprep.subr.mxu0 0.0
    %1913 = vmatpush1.msra.mxu0 %v1887
    %1914 = vmatprep.subr.mxu0 0.0
    %1915 = vmatpush1.msra.mxu0 %v1888
    %1916 = vmatprep.subr.mxu0 0.0
    %1917 = vmatpush1.msra.mxu0 %v1889
    %1918 = vmatprep.subr.mxu0 0.0
    %1919 = vmatpush1.msra.mxu0 %v1890
    %1920 = vmatprep.subr.mxu0 0.0
    %1921 = vmatpush1.msra.mxu0 %v1891
    %1922 = vmatprep.subr.mxu0 0.0
    %1923 = vmatpush1.msra.mxu0 %v1892
    %1924 = vmatprep.subr.mxu0 0.0
    %1925 = vmatpush1.msra.mxu0 %v1893
    %1926 = vmatprep.subr.mxu0 0.0
    %1927 = vmatpush1.msra.mxu0 %v1894
    %1928 = vmatprep.subr.mxu0 0.0
    %1929 = vmatpush1.msra.mxu0 %v1895
    %1930 = vmatprep.subr.mxu0 0.0
    %1931 = vmatpush1.msra.mxu0 %v1896
    %1932 = vmatprep.subr.mxu0 0.0
    %1933 = vmatpush1.msra.mxu0 %v1897
    %1934 = vmatprep.subr.mxu0 0.0
    %1935 = vmatpush1.msra.mxu0 %v1898
    %1936 = vmatprep.subr.mxu0 0.0
    %1937 = vmatpush1.msra.mxu0 %v1899
    %1938 = vmatprep.subr.mxu0 0.0
    %1939 = vmatpush1.msra.mxu0 %v1900
    %1940 = vmatprep.subr.mxu0 0.0
    %1941 = vmatpush1.msra.mxu0 0.0
    %1942 = vmatprep.subr.mxu0 0.0
    %1943 = vmatpush1.msra.mxu0 0.0
    %1944 = vmatprep.subr.mxu0 0.0
    %1945 = vmatpush1.msra.mxu0 0.0
    %1946 = vmatprep.subr.mxu0 0.0
    %1947 = vmatpush1.msra.mxu0 0.0
    %1948 = vmatprep.subr.mxu0 0.0
    %1949 = vmatpush1.msra.mxu0 0.0
    %1950 = vmatprep.subr.mxu0 0.0
    %1951 = vmatpush1.msra.mxu0 0.0
    %1952 = vmatprep.subr.mxu0 0.0
    %1953 = vmatpush1.msra.mxu0 0.0
    %1954 = vmatprep.subr.mxu0 0.0
    %1955 = vmatpush1.msra.mxu0 0.0
    %1956 = vmatprep.subr.mxu0 0.0
    %1957 = vmatpush1.msra.mxu0 0.0
    %1958 = vmatprep.subr.mxu0 0.0
    %1959 = vmatpush1.msra.mxu0 0.0
    %1960 = vmatprep.subr.mxu0 0.0
    %1961 = vmatpush1.msra.mxu0 0.0
    %1962 = vmatprep.subr.mxu0 0.0
    %1963 = vmatpush1.msra.mxu0 0.0
    %1964 = vmatprep.subr.mxu0 0.0
    %1965 = vmatpush1.msra.mxu0 0.0
    %1966 = vmatprep.subr.mxu0 0.0
    %1967 = vmatpush1.msra.mxu0 0.0
    %1968 = vmatprep.subr.mxu0 0.0
    %1969 = vmatpush1.msra.mxu0 0.0
    %1970 = vmatprep.subr.mxu0 0.0
    %1971 = vmatpush1.msra.mxu0 0.0
    %1972 = vmatprep.mubr.f32.mxu0 0.0
    %1973 = vmatmul.mubr.f32.gmra.mrb[0].mxu0 %v1883
    %v1974 = vpop.f32.mrb[0].mxu0
    %v1975 = vadd.f32 %v1906, %v1974
    %v1976 = vpop.f32.mrb[0].mxu0
    %1977 = vmatprep.mubr.f32.mxu0 0.0
    %1978 = vmatmul.mubr.f32.gmra.mrb[0].mxu0 %v1884
    %v1979 = vpop.f32.mrb[0].mxu0
    %v1980 = vadd.f32 %v1906, %v1979
    %v1981 = vpop.f32.mrb[0].mxu0
    %1982 = vdwg.mxu0
    %v1983 = vadd.f32 %v1975, %v1789
    %v1984 = vadd.f32 %v1980, %v1790
    %v1985 = vld [vmem:[%s8] sm:$0x1]
    %v1986 = vld [vmem:[%s9] sm:$0x1]
    %v1987 = vsel %vm67, %v1983, 0.0
    %1988 = vadd.xlane.f32.xlu0 %v1987
    %v1989 = vpop.xlane.xlu0 %1988
    %v1990 = vsel %vm67, %v1984, 0.0
    %1991 = vadd.xlane.f32.xlu0 %v1990
    %v1992 = vpop.xlane.xlu0 %1991
    %v1993 = vmul.f32 %v1989, %v1754
    %v1994 = vmul.f32 %v1992, %v1754
    %v1995 = vsub.f32 %v1983, %v1993
    %v1996 = vsub.f32 %v1984, %v1994
    %v1997 = vmul.f32 %v1995, %v1995
    %v1998 = vmul.f32 %v1996, %v1996
    %v1999 = vsel %vm67, %v1997, 0.0
    %2000 = vadd.xlane.f32.xlu0 %v1999
    %v2001 = vpop.xlane.xlu0 %2000
    %v2002 = vsel %vm67, %v1998, 0.0
    %2003 = vadd.xlane.f32.xlu0 %v2002
    %v2004 = vpop.xlane.xlu0 %2003
    %v2005 = vmul.f32 %v2001, %v1754
    %v2006 = vmul.f32 %v2004, %v1754
    %v2007 = vadd.f32 %v2005, 1e-05
    %v2008 = vadd.f32 %v2006, 1e-05
    %v2009 = vrsqrt.pop %v2007
    %v2010 = vrsqrt.pop %v2008
    %v2011 = vmul.f32 %v1995, %v2009
    %v2012 = vmul.f32 %v1996, %v2010
    %v2014 = vlaneseq
    %v2015 = vshrl.u32 %v2014, 7
    %v2016 = vsub.s32 0, %v2015
    %v2017 = vrot.slane %v1985, %v2016
    %v2019 = vmul.f32 %v2011, %v2017
    %v2020 = vmul.f32 %v2012, %v2017
    %v2022 = vlaneseq
    %v2023 = vshrl.u32 %v2022, 7
    %v2024 = vsub.s32 0, %v2023
    %v2025 = vrot.slane %v1986, %v2024
    %v2027 = vadd.f32 %v2019, %v2025
    %v2028 = vadd.f32 %v2020, %v2025
    %s2029 = scalar_lea.vmem %s1, 32
    %v2030 = vld [vmem:[%s2029] sm:$0xff]
    %v2031 = vld [vmem:[%s2029 + $0x8] sm:$0xff]
    %v2032 = vld [vmem:[%s2029 + $0x10] sm:$0xff]
    %v2033 = vld [vmem:[%s2029 + $0x18] sm:$0xff]
    %v2035 = vsel %vm67, %v2027, 0
    %v2038 = vsel %vm67, %v2028, 0
    %2040 = vmatprep.subr.mxu0 0.0
    %2041 = vmatpush1.msra.mxu0 %v2030
    %2042 = vmatprep.subr.mxu0 0.0
    %2043 = vmatpush1.msra.mxu0 %v2031
    %2044 = vmatprep.subr.mxu0 0.0
    %2045 = vmatpush1.msra.mxu0 %v2032
    %2046 = vmatprep.subr.mxu0 0.0
    %2047 = vmatpush1.msra.mxu0 %v2033
    %2048 = vmatprep.subr.mxu0 0.0
    %2049 = vmatpush1.msra.mxu0 0.0
    %2050 = vmatprep.subr.mxu0 0.0
    %2051 = vmatpush1.msra.mxu0 0.0
    %2052 = vmatprep.subr.mxu0 0.0
    %2053 = vmatpush1.msra.mxu0 0.0
    %2054 = vmatprep.subr.mxu0 0.0
    %2055 = vmatpush1.msra.mxu0 0.0
    %2056 = vmatprep.subr.mxu0 0.0
    %2057 = vmatpush1.msra.mxu0 0.0
    %2058 = vmatprep.subr.mxu0 0.0
    %2059 = vmatpush1.msra.mxu0 0.0
    %2060 = vmatprep.subr.mxu0 0.0
    %2061 = vmatpush1.msra.mxu0 0.0
    %2062 = vmatprep.subr.mxu0 0.0
    %2063 = vmatpush1.msra.mxu0 0.0
    %2064 = vmatprep.subr.mxu0 0.0
    %2065 = vmatpush1.msra.mxu0 0.0
    %2066 = vmatprep.subr.mxu0 0.0
    %2067 = vmatpush1.msra.mxu0 0.0
    %2068 = vmatprep.subr.mxu0 0.0
    %2069 = vmatpush1.msra.mxu0 0.0
    %2070 = vmatprep.subr.mxu0 0.0
    %2071 = vmatpush1.msra.mxu0 0.0
    %2072 = vmatprep.subr.mxu0 0.0
    %2073 = vmatpush1.msra.mxu0 0.0
    %2074 = vmatprep.subr.mxu0 0.0
    %2075 = vmatpush1.msra.mxu0 0.0
    %2076 = vmatprep.subr.mxu0 0.0
    %2077 = vmatpush1.msra.mxu0 0.0
    %2078 = vmatprep.subr.mxu0 0.0
    %2079 = vmatpush1.msra.mxu0 0.0
    %2080 = vmatprep.subr.mxu0 0.0
    %2081 = vmatpush1.msra.mxu0 0.0
    %2082 = vmatprep.subr.mxu0 0.0
    %2083 = vmatpush1.msra.mxu0 0.0
    %2084 = vmatprep.subr.mxu0 0.0
    %2085 = vmatpush1.msra.mxu0 0.0
    %2086 = vmatprep.subr.mxu0 0.0
    %2087 = vmatpush1.msra.mxu0 0.0
    %2088 = vmatprep.subr.mxu0 0.0
    %2089 = vmatpush1.msra.mxu0 0.0
    %2090 = vmatprep.subr.mxu0 0.0
    %2091 = vmatpush1.msra.mxu0 0.0
    %2092 = vmatprep.subr.mxu0 0.0
    %2093 = vmatpush1.msra.mxu0 0.0
    %2094 = vmatprep.subr.mxu0 0.0
    %2095 = vmatpush1.msra.mxu0 0.0
    %2096 = vmatprep.subr.mxu0 0.0
    %2097 = vmatpush1.msra.mxu0 0.0
    %2098 = vmatprep.subr.mxu0 0.0
    %2099 = vmatpush1.msra.mxu0 0.0
    %2100 = vmatprep.subr.mxu0 0.0
    %2101 = vmatpush1.msra.mxu0 0.0
    %2102 = vmatprep.subr.mxu0 0.0
    %2103 = vmatpush1.msra.mxu0 0.0
    %2104 = vmatprep.mubr.f32.mxu0 0.0
    %2105 = vmatmul.mubr.f32.gmra.mrb[0].mxu0 %v2035
    %v2106 = vpop.f32.mrb[0].mxu0
    %v2107 = vadd.f32 0.0, %v2106
    %v2108 = vpop.f32.mrb[0].mxu0
    %2109 = vmatprep.mubr.f32.mxu0 0.0
    %2110 = vmatmul.mubr.f32.gmra.mrb[0].mxu0 %v2038
    %v2111 = vpop.f32.mrb[0].mxu0
    %v2112 = vadd.f32 0.0, %v2111
    %v2113 = vpop.f32.mrb[0].mxu0
    %2114 = vdwg.mxu0
    %s2115 = scalar_lea.vmem %s2, 32
    %v2116 = vld [vmem:[%s2115] sm:$0xff]
    %v2117 = vld [vmem:[%s2115 + $0x8] sm:$0xff]
    %v2118 = vld [vmem:[%s2115 + $0x10] sm:$0xff]
    %v2119 = vld [vmem:[%s2115 + $0x18] sm:$0xff]
    %2120 = vmatprep.subr.mxu0 0.0
    %2121 = vmatpush1.msra.mxu0 %v2116
    %2122 = vmatprep.subr.mxu0 0.0
    %2123 = vmatpush1.msra.mxu0 %v2117
    %2124 = vmatprep.subr.mxu0 0.0
    %2125 = vmatpush1.msra.mxu0 %v2118
    %2126 = vmatprep.subr.mxu0 0.0
    %2127 = vmatpush1.msra.mxu0 %v2119
    %2128 = vmatprep.subr.mxu0 0.0
    %2129 = vmatpush1.msra.mxu0 0.0
    %2130 = vmatprep.subr.mxu0 0.0
    %2131 = vmatpush1.msra.mxu0 0.0
    %2132 = vmatprep.subr.mxu0 0.0
    %2133 = vmatpush1.msra.mxu0 0.0
    %2134 = vmatprep.subr.mxu0 0.0
    %2135 = vmatpush1.msra.mxu0 0.0
    %2136 = vmatprep.subr.mxu0 0.0
    %2137 = vmatpush1.msra.mxu0 0.0
    %2138 = vmatprep.subr.mxu0 0.0
    %2139 = vmatpush1.msra.mxu0 0.0
    %2140 = vmatprep.subr.mxu0 0.0
    %2141 = vmatpush1.msra.mxu0 0.0
    %2142 = vmatprep.subr.mxu0 0.0
    %2143 = vmatpush1.msra.mxu0 0.0
    %2144 = vmatprep.subr.mxu0 0.0
    %2145 = vmatpush1.msra.mxu0 0.0
    %2146 = vmatprep.subr.mxu0 0.0
    %2147 = vmatpush1.msra.mxu0 0.0
    %2148 = vmatprep.subr.mxu0 0.0
    %2149 = vmatpush1.msra.mxu0 0.0
    %2150 = vmatprep.subr.mxu0 0.0
    %2151 = vmatpush1.msra.mxu0 0.0
    %2152 = vmatprep.subr.mxu0 0.0
    %2153 = vmatpush1.msra.mxu0 0.0
    %2154 = vmatprep.subr.mxu0 0.0
    %2155 = vmatpush1.msra.mxu0 0.0
    %2156 = vmatprep.subr.mxu0 0.0
    %2157 = vmatpush1.msra.mxu0 0.0
    %2158 = vmatprep.subr.mxu0 0.0
    %2159 = vmatpush1.msra.mxu0 0.0
    %2160 = vmatprep.subr.mxu0 0.0
    %2161 = vmatpush1.msra.mxu0 0.0
    %2162 = vmatprep.subr.mxu0 0.0
    %2163 = vmatpush1.msra.mxu0 0.0
    %2164 = vmatprep.subr.mxu0 0.0
    %2165 = vmatpush1.msra.mxu0 0.0
    %2166 = vmatprep.subr.mxu0 0.0
    %2167 = vmatpush1.msra.mxu0 0.0
    %2168 = vmatprep.subr.mxu0 0.0
    %2169 = vmatpush1.msra.mxu0 0.0
    %2170 = vmatprep.subr.mxu0 0.0
    %2171 = vmatpush1.msra.mxu0 0.0
    %2172 = vmatprep.subr.mxu0 0.0
    %2173 = vmatpush1.msra.mxu0 0.0
    %2174 = vmatprep.subr.mxu0 0.0
    %2175 = vmatpush1.msra.mxu0 0.0
    %2176 = vmatprep.subr.mxu0 0.0
    %2177 = vmatpush1.msra.mxu0 0.0
    %2178 = vmatprep.subr.mxu0 0.0
    %2179 = vmatpush1.msra.mxu0 0.0
    %2180 = vmatprep.subr.mxu0 0.0
    %2181 = vmatpush1.msra.mxu0 0.0
    %2182 = vmatprep.subr.mxu0 0.0
    %2183 = vmatpush1.msra.mxu0 0.0
    %2184 = vmatprep.mubr.f32.mxu0 0.0
    %2185 = vmatmul.mubr.f32.gmra.mrb[0].mxu0 %v2035
    %v2186 = vpop.f32.mrb[0].mxu0
    %v2187 = vadd.f32 0.0, %v2186
    %v2188 = vpop.f32.mrb[0].mxu0
    %2189 = vmatprep.mubr.f32.mxu0 0.0
    %2190 = vmatmul.mubr.f32.gmra.mrb[0].mxu0 %v2038
    %v2191 = vpop.f32.mrb[0].mxu0
    %v2192 = vadd.f32 0.0, %v2191
    %v2193 = vpop.f32.mrb[0].mxu0
    %2194 = vdwg.mxu0
    %s2195 = scalar_lea.vmem %s3, 32
    %v2196 = vld [vmem:[%s2195] sm:$0xff]
    %v2197 = vld [vmem:[%s2195 + $0x8] sm:$0xff]
    %v2198 = vld [vmem:[%s2195 + $0x10] sm:$0xff]
    %v2199 = vld [vmem:[%s2195 + $0x18] sm:$0xff]
    %2200 = vmatprep.subr.mxu0 0.0
    %2201 = vmatpush1.msra.mxu0 %v2196
    %2202 = vmatprep.subr.mxu0 0.0
    %2203 = vmatpush1.msra.mxu0 %v2197
    %2204 = vmatprep.subr.mxu0 0.0
    %2205 = vmatpush1.msra.mxu0 %v2198
    %2206 = vmatprep.subr.mxu0 0.0
    %2207 = vmatpush1.msra.mxu0 %v2199
    %2208 = vmatprep.subr.mxu0 0.0
    %2209 = vmatpush1.msra.mxu0 0.0
    %2210 = vmatprep.subr.mxu0 0.0
    %2211 = vmatpush1.msra.mxu0 0.0
    %2212 = vmatprep.subr.mxu0 0.0
    %2213 = vmatpush1.msra.mxu0 0.0
    %2214 = vmatprep.subr.mxu0 0.0
    %2215 = vmatpush1.msra.mxu0 0.0
    %2216 = vmatprep.subr.mxu0 0.0
    %2217 = vmatpush1.msra.mxu0 0.0
    %2218 = vmatprep.subr.mxu0 0.0
    %2219 = vmatpush1.msra.mxu0 0.0
    %2220 = vmatprep.subr.mxu0 0.0
    %2221 = vmatpush1.msra.mxu0 0.0
    %2222 = vmatprep.subr.mxu0 0.0
    %2223 = vmatpush1.msra.mxu0 0.0
    %2224 = vmatprep.subr.mxu0 0.0
    %2225 = vmatpush1.msra.mxu0 0.0
    %2226 = vmatprep.subr.mxu0 0.0
    %2227 = vmatpush1.msra.mxu0 0.0
    %2228 = vmatprep.subr.mxu0 0.0
    %2229 = vmatpush1.msra.mxu0 0.0
    %2230 = vmatprep.subr.mxu0 0.0
    %2231 = vmatpush1.msra.mxu0 0.0
    %2232 = vmatprep.subr.mxu0 0.0
    %2233 = vmatpush1.msra.mxu0 0.0
    %2234 = vmatprep.subr.mxu0 0.0
    %2235 = vmatpush1.msra.mxu0 0.0
    %2236 = vmatprep.subr.mxu0 0.0
    %2237 = vmatpush1.msra.mxu0 0.0
    %2238 = vmatprep.subr.mxu0 0.0
    %2239 = vmatpush1.msra.mxu0 0.0
    %2240 = vmatprep.subr.mxu0 0.0
    %2241 = vmatpush1.msra.mxu0 0.0
    %2242 = vmatprep.subr.mxu0 0.0
    %2243 = vmatpush1.msra.mxu0 0.0
    %2244 = vmatprep.subr.mxu0 0.0
    %2245 = vmatpush1.msra.mxu0 0.0
    %2246 = vmatprep.subr.mxu0 0.0
    %2247 = vmatpush1.msra.mxu0 0.0
    %2248 = vmatprep.subr.mxu0 0.0
    %2249 = vmatpush1.msra.mxu0 0.0
    %2250 = vmatprep.subr.mxu0 0.0
    %2251 = vmatpush1.msra.mxu0 0.0
    %2252 = vmatprep.subr.mxu0 0.0
    %2253 = vmatpush1.msra.mxu0 0.0
    %2254 = vmatprep.subr.mxu0 0.0
    %2255 = vmatpush1.msra.mxu0 0.0
    %2256 = vmatprep.subr.mxu0 0.0
    %2257 = vmatpush1.msra.mxu0 0.0
    %2258 = vmatprep.subr.mxu0 0.0
    %2259 = vmatpush1.msra.mxu0 0.0
    %2260 = vmatprep.subr.mxu0 0.0
    %2261 = vmatpush1.msra.mxu0 0.0
    %2262 = vmatprep.subr.mxu0 0.0
    %2263 = vmatpush1.msra.mxu0 0.0
    %2264 = vmatprep.mubr.f32.mxu0 0.0
    %2265 = vmatmul.mubr.f32.gmra.mrb[0].mxu0 %v2035
    %v2266 = vpop.f32.mrb[0].mxu0
    %v2267 = vadd.f32 0.0, %v2266
    %v2268 = vpop.f32.mrb[0].mxu0
    %2269 = vmatprep.mubr.f32.mxu0 0.0
    %2270 = vmatmul.mubr.f32.gmra.mrb[0].mxu0 %v2038
    %v2271 = vpop.f32.mrb[0].mxu0
    %v2272 = vadd.f32 0.0, %v2271
    %v2273 = vpop.f32.mrb[0].mxu0
    %2274 = vdwg.mxu0
    %v2276 = vsel %vm307, %v2107, 0
    %v2279 = vsel %vm307, %v2187, 0
    %2281 = vmatprep.subr.mxu0 0.0
    %2282 = vmatpush1.xpose.msra.mxu0 %v2279
    %2283 = vmatprep.subr.mxu0 0.0
    %2284 = vmatpush1.xpose.msra.mxu0 0.0
    %2285 = vmatprep.subr.mxu0 0.0
    %2286 = vmatpush1.xpose.msra.mxu0 0.0
    %2287 = vmatprep.subr.mxu0 0.0
    %2288 = vmatpush1.xpose.msra.mxu0 0.0
    %2289 = vmatprep.subr.mxu0 0.0
    %2290 = vmatpush1.xpose.msra.mxu0 0.0
    %2291 = vmatprep.subr.mxu0 0.0
    %2292 = vmatpush1.xpose.msra.mxu0 0.0
    %2293 = vmatprep.subr.mxu0 0.0
    %2294 = vmatpush1.xpose.msra.mxu0 0.0
    %2295 = vmatprep.subr.mxu0 0.0
    %2296 = vmatpush1.xpose.msra.mxu0 0.0
    %2297 = vmatprep.subr.mxu0 0.0
    %2298 = vmatpush1.xpose.msra.mxu0 0.0
    %2299 = vmatprep.subr.mxu0 0.0
    %2300 = vmatpush1.xpose.msra.mxu0 0.0
    %2301 = vmatprep.subr.mxu0 0.0
    %2302 = vmatpush1.xpose.msra.mxu0 0.0
    %2303 = vmatprep.subr.mxu0 0.0
    %2304 = vmatpush1.xpose.msra.mxu0 0.0
    %2305 = vmatprep.subr.mxu0 0.0
    %2306 = vmatpush1.xpose.msra.mxu0 0.0
    %2307 = vmatprep.subr.mxu0 0.0
    %2308 = vmatpush1.xpose.msra.mxu0 0.0
    %2309 = vmatprep.subr.mxu0 0.0
    %2310 = vmatpush1.xpose.msra.mxu0 0.0
    %2311 = vmatprep.subr.mxu0 0.0
    %2312 = vmatpush1.xpose.msra.mxu0 0.0
    %2313 = vmatprep.subr.mxu0 0.0
    %2314 = vmatpush1.xpose.msra.mxu0 0.0
    %2315 = vmatprep.subr.mxu0 0.0
    %2316 = vmatpush1.xpose.msra.mxu0 0.0
    %2317 = vmatprep.subr.mxu0 0.0
    %2318 = vmatpush1.xpose.msra.mxu0 0.0
    %2319 = vmatprep.subr.mxu0 0.0
    %2320 = vmatpush1.xpose.msra.mxu0 0.0
    %2321 = vmatprep.subr.mxu0 0.0
    %2322 = vmatpush1.xpose.msra.mxu0 0.0
    %2323 = vmatprep.subr.mxu0 0.0
    %2324 = vmatpush1.xpose.msra.mxu0 0.0
    %2325 = vmatprep.subr.mxu0 0.0
    %2326 = vmatpush1.xpose.msra.mxu0 0.0
    %2327 = vmatprep.subr.mxu0 0.0
    %2328 = vmatpush1.xpose.msra.mxu0 0.0
    %2329 = vmatprep.subr.mxu0 0.0
    %2330 = vmatpush1.xpose.msra.mxu0 0.0
    %2331 = vmatprep.subr.mxu0 0.0
    %2332 = vmatpush1.xpose.msra.mxu0 0.0
    %2333 = vmatprep.subr.mxu0 0.0
    %2334 = vmatpush1.xpose.msra.mxu0 0.0
    %2335 = vmatprep.subr.mxu0 0.0
    %2336 = vmatpush1.xpose.msra.mxu0 0.0
    %2337 = vmatprep.subr.mxu0 0.0
    %2338 = vmatpush1.xpose.msra.mxu0 0.0
    %2339 = vmatprep.subr.mxu0 0.0
    %2340 = vmatpush1.xpose.msra.mxu0 0.0
    %2341 = vmatprep.subr.mxu0 0.0
    %2342 = vmatpush1.xpose.msra.mxu0 0.0
    %2343 = vmatprep.subr.mxu0 0.0
    %2344 = vmatpush1.xpose.msra.mxu0 0.0
    %2345 = vmatprep.mubr.f32.mxu0 0.0
    %2346 = vmatmul.mubr.f32.gmra.mrb[0].mxu0 %v2276
    %v2347 = vpop.f32.mrb[0].mxu0
    %v2348 = vadd.f32 0.0, %v2347
    %v2349 = vpop.f32.mrb[0].mxu0
    %2350 = vdwg.mxu0
    %v2352 = vsel %vm307, %v2112, 0
    %v2355 = vsel %vm307, %v2192, 0
    %2357 = vmatprep.subr.mxu0 0.0
    %2358 = vmatpush1.xpose.msra.mxu0 %v2355
    %2359 = vmatprep.subr.mxu0 0.0
    %2360 = vmatpush1.xpose.msra.mxu0 0.0
    %2361 = vmatprep.subr.mxu0 0.0
    %2362 = vmatpush1.xpose.msra.mxu0 0.0
    %2363 = vmatprep.subr.mxu0 0.0
    %2364 = vmatpush1.xpose.msra.mxu0 0.0
    %2365 = vmatprep.subr.mxu0 0.0
    %2366 = vmatpush1.xpose.msra.mxu0 0.0
    %2367 = vmatprep.subr.mxu0 0.0
    %2368 = vmatpush1.xpose.msra.mxu0 0.0
    %2369 = vmatprep.subr.mxu0 0.0
    %2370 = vmatpush1.xpose.msra.mxu0 0.0
    %2371 = vmatprep.subr.mxu0 0.0
    %2372 = vmatpush1.xpose.msra.mxu0 0.0
    %2373 = vmatprep.subr.mxu0 0.0
    %2374 = vmatpush1.xpose.msra.mxu0 0.0
    %2375 = vmatprep.subr.mxu0 0.0
    %2376 = vmatpush1.xpose.msra.mxu0 0.0
    %2377 = vmatprep.subr.mxu0 0.0
    %2378 = vmatpush1.xpose.msra.mxu0 0.0
    %2379 = vmatprep.subr.mxu0 0.0
    %2380 = vmatpush1.xpose.msra.mxu0 0.0
    %2381 = vmatprep.subr.mxu0 0.0
    %2382 = vmatpush1.xpose.msra.mxu0 0.0
    %2383 = vmatprep.subr.mxu0 0.0
    %2384 = vmatpush1.xpose.msra.mxu0 0.0
    %2385 = vmatprep.subr.mxu0 0.0
    %2386 = vmatpush1.xpose.msra.mxu0 0.0
    %2387 = vmatprep.subr.mxu0 0.0
    %2388 = vmatpush1.xpose.msra.mxu0 0.0
    %2389 = vmatprep.subr.mxu0 0.0
    %2390 = vmatpush1.xpose.msra.mxu0 0.0
    %2391 = vmatprep.subr.mxu0 0.0
    %2392 = vmatpush1.xpose.msra.mxu0 0.0
    %2393 = vmatprep.subr.mxu0 0.0
    %2394 = vmatpush1.xpose.msra.mxu0 0.0
    %2395 = vmatprep.subr.mxu0 0.0
    %2396 = vmatpush1.xpose.msra.mxu0 0.0
    %2397 = vmatprep.subr.mxu0 0.0
    %2398 = vmatpush1.xpose.msra.mxu0 0.0
    %2399 = vmatprep.subr.mxu0 0.0
    %2400 = vmatpush1.xpose.msra.mxu0 0.0
    %2401 = vmatprep.subr.mxu0 0.0
    %2402 = vmatpush1.xpose.msra.mxu0 0.0
    %2403 = vmatprep.subr.mxu0 0.0
    %2404 = vmatpush1.xpose.msra.mxu0 0.0
    %2405 = vmatprep.subr.mxu0 0.0
    %2406 = vmatpush1.xpose.msra.mxu0 0.0
    %2407 = vmatprep.subr.mxu0 0.0
    %2408 = vmatpush1.xpose.msra.mxu0 0.0
    %2409 = vmatprep.subr.mxu0 0.0
    %2410 = vmatpush1.xpose.msra.mxu0 0.0
    %2411 = vmatprep.subr.mxu0 0.0
    %2412 = vmatpush1.xpose.msra.mxu0 0.0
    %2413 = vmatprep.subr.mxu0 0.0
    %2414 = vmatpush1.xpose.msra.mxu0 0.0
    %2415 = vmatprep.subr.mxu0 0.0
    %2416 = vmatpush1.xpose.msra.mxu0 0.0
    %2417 = vmatprep.subr.mxu0 0.0
    %2418 = vmatpush1.xpose.msra.mxu0 0.0
    %2419 = vmatprep.subr.mxu0 0.0
    %2420 = vmatpush1.xpose.msra.mxu0 0.0
    %2421 = vmatprep.mubr.f32.mxu0 0.0
    %2422 = vmatmul.mubr.f32.gmra.mrb[0].mxu0 %v2352
    %v2423 = vpop.f32.mrb[0].mxu0
    %v2424 = vadd.f32 0.0, %v2423
    %v2425 = vpop.f32.mrb[0].mxu0
    %2426 = vdwg.mxu0
    %v2427 = vsel %vm307, %v2348, -inf
    %2428 = vmax.xlane.f32.xlu0 %v2427
    %v2429 = vpop.xlane.xlu0 %2428
    %v2430 = vsel %vm307, %v2424, -inf
    %2431 = vmax.xlane.f32.xlu0 %v2430
    %v2432 = vpop.xlane.xlu0 %2431
    %v2433 = vsub.f32 %v2348, %v2429
    %v2434 = vsub.f32 %v2424, %v2432
    %v2435 = vmul.f32 %v2433, 1.442695
    %v2436 = vpow.pop %v2435
    %v2437 = vmul.f32 %v2434, 1.442695
    %v2438 = vpow.pop %v2437
    %v2439 = vsel %vm307, %v2436, 0.0
    %2440 = vadd.xlane.f32.xlu0 %v2439
    %v2441 = vpop.xlane.xlu0 %2440
    %v2442 = vsel %vm307, %v2438, 0.0
    %2443 = vadd.xlane.f32.xlu0 %v2442
    %v2444 = vpop.xlane.xlu0 %2443
    %v2445 = vrcp.pop %v2441
    %v2446 = vrcp.pop %v2444
    %v2447 = vmul.f32 %v2436, %v2445
    %v2448 = vmul.f32 %v2438, %v2446
    %v2450 = vsel %vm307, %v2447, 0
    %2452 = vmatprep.subr.mxu0 0.0
    %2453 = vmatpush1.msra.mxu0 %v2267
    %2454 = vmatprep.subr.mxu0 0.0
    %2455 = vmatpush1.msra.mxu0 0.0
    %2456 = vmatprep.subr.mxu0 0.0
    %2457 = vmatpush1.msra.mxu0 0.0
    %2458 = vmatprep.subr.mxu0 0.0
    %2459 = vmatpush1.msra.mxu0 0.0
    %2460 = vmatprep.subr.mxu0 0.0
    %2461 = vmatpush1.msra.mxu0 0.0
    %2462 = vmatprep.subr.mxu0 0.0
    %2463 = vmatpush1.msra.mxu0 0.0
    %2464 = vmatprep.subr.mxu0 0.0
    %2465 = vmatpush1.msra.mxu0 0.0
    %2466 = vmatprep.subr.mxu0 0.0
    %2467 = vmatpush1.msra.mxu0 0.0
    %2468 = vmatprep.subr.mxu0 0.0
    %2469 = vmatpush1.msra.mxu0 0.0
    %2470 = vmatprep.subr.mxu0 0.0
    %2471 = vmatpush1.msra.mxu0 0.0
    %2472 = vmatprep.subr.mxu0 0.0
    %2473 = vmatpush1.msra.mxu0 0.0
    %2474 = vmatprep.subr.mxu0 0.0
    %2475 = vmatpush1.msra.mxu0 0.0
    %2476 = vmatprep.subr.mxu0 0.0
    %2477 = vmatpush1.msra.mxu0 0.0
    %2478 = vmatprep.subr.mxu0 0.0
    %2479 = vmatpush1.msra.mxu0 0.0
    %2480 = vmatprep.subr.mxu0 0.0
    %2481 = vmatpush1.msra.mxu0 0.0
    %2482 = vmatprep.subr.mxu0 0.0
    %2483 = vmatpush1.msra.mxu0 0.0
    %2484 = vmatprep.subr.mxu0 0.0
    %2485 = vmatpush1.msra.mxu0 0.0
    %2486 = vmatprep.subr.mxu0 0.0
    %2487 = vmatpush1.msra.mxu0 0.0
    %2488 = vmatprep.subr.mxu0 0.0
    %2489 = vmatpush1.msra.mxu0 0.0
    %2490 = vmatprep.subr.mxu0 0.0
    %2491 = vmatpush1.msra.mxu0 0.0
    %2492 = vmatprep.subr.mxu0 0.0
    %2493 = vmatpush1.msra.mxu0 0.0
    %2494 = vmatprep.subr.mxu0 0.0
    %2495 = vmatpush1.msra.mxu0 0.0
    %2496 = vmatprep.subr.mxu0 0.0
    %2497 = vmatpush1.msra.mxu0 0.0
    %2498 = vmatprep.subr.mxu0 0.0
    %2499 = vmatpush1.msra.mxu0 0.0
    %2500 = vmatprep.subr.mxu0 0.0
    %2501 = vmatpush1.msra.mxu0 0.0
    %2502 = vmatprep.subr.mxu0 0.0
    %2503 = vmatpush1.msra.mxu0 0.0
    %2504 = vmatprep.subr.mxu0 0.0
    %2505 = vmatpush1.msra.mxu0 0.0
    %2506 = vmatprep.subr.mxu0 0.0
    %2507 = vmatpush1.msra.mxu0 0.0
    %2508 = vmatprep.subr.mxu0 0.0
    %2509 = vmatpush1.msra.mxu0 0.0
    %2510 = vmatprep.subr.mxu0 0.0
    %2511 = vmatpush1.msra.mxu0 0.0
    %2512 = vmatprep.subr.mxu0 0.0
    %2513 = vmatpush1.msra.mxu0 0.0
    %2514 = vmatprep.subr.mxu0 0.0
    %2515 = vmatpush1.msra.mxu0 0.0
    %2516 = vmatprep.mubr.f32.mxu0 0.0
    %2517 = vmatmul.mubr.f32.gmra.mrb[0].mxu0 %v2450
    %v2518 = vpop.f32.mrb[0].mxu0
    %v2519 = vadd.f32 0.0, %v2518
    %v2520 = vpop.f32.mrb[0].mxu0
    %2521 = vdwg.mxu0
    %v2523 = vsel %vm307, %v2448, 0
    %2525 = vmatprep.subr.mxu0 0.0
    %2526 = vmatpush1.msra.mxu0 %v2272
    %2527 = vmatprep.subr.mxu0 0.0
    %2528 = vmatpush1.msra.mxu0 0.0
    %2529 = vmatprep.subr.mxu0 0.0
    %2530 = vmatpush1.msra.mxu0 0.0
    %2531 = vmatprep.subr.mxu0 0.0
    %2532 = vmatpush1.msra.mxu0 0.0
    %2533 = vmatprep.subr.mxu0 0.0
    %2534 = vmatpush1.msra.mxu0 0.0
    %2535 = vmatprep.subr.mxu0 0.0
    %2536 = vmatpush1.msra.mxu0 0.0
    %2537 = vmatprep.subr.mxu0 0.0
    %2538 = vmatpush1.msra.mxu0 0.0
    %2539 = vmatprep.subr.mxu0 0.0
    %2540 = vmatpush1.msra.mxu0 0.0
    %2541 = vmatprep.subr.mxu0 0.0
    %2542 = vmatpush1.msra.mxu0 0.0
    %2543 = vmatprep.subr.mxu0 0.0
    %2544 = vmatpush1.msra.mxu0 0.0
    %2545 = vmatprep.subr.mxu0 0.0
    %2546 = vmatpush1.msra.mxu0 0.0
    %2547 = vmatprep.subr.mxu0 0.0
    %2548 = vmatpush1.msra.mxu0 0.0
    %2549 = vmatprep.subr.mxu0 0.0
    %2550 = vmatpush1.msra.mxu0 0.0
    %2551 = vmatprep.subr.mxu0 0.0
    %2552 = vmatpush1.msra.mxu0 0.0
    %2553 = vmatprep.subr.mxu0 0.0
    %2554 = vmatpush1.msra.mxu0 0.0
    %2555 = vmatprep.subr.mxu0 0.0
    %2556 = vmatpush1.msra.mxu0 0.0
    %2557 = vmatprep.subr.mxu0 0.0
    %2558 = vmatpush1.msra.mxu0 0.0
    %2559 = vmatprep.subr.mxu0 0.0
    %2560 = vmatpush1.msra.mxu0 0.0
    %2561 = vmatprep.subr.mxu0 0.0
    %2562 = vmatpush1.msra.mxu0 0.0
    %2563 = vmatprep.subr.mxu0 0.0
    %2564 = vmatpush1.msra.mxu0 0.0
    %2565 = vmatprep.subr.mxu0 0.0
    %2566 = vmatpush1.msra.mxu0 0.0
    %2567 = vmatprep.subr.mxu0 0.0
    %2568 = vmatpush1.msra.mxu0 0.0
    %2569 = vmatprep.subr.mxu0 0.0
    %2570 = vmatpush1.msra.mxu0 0.0
    %2571 = vmatprep.subr.mxu0 0.0
    %2572 = vmatpush1.msra.mxu0 0.0
    %2573 = vmatprep.subr.mxu0 0.0
    %2574 = vmatpush1.msra.mxu0 0.0
    %2575 = vmatprep.subr.mxu0 0.0
    %2576 = vmatpush1.msra.mxu0 0.0
    %2577 = vmatprep.subr.mxu0 0.0
    %2578 = vmatpush1.msra.mxu0 0.0
    %2579 = vmatprep.subr.mxu0 0.0
    %2580 = vmatpush1.msra.mxu0 0.0
    %2581 = vmatprep.subr.mxu0 0.0
    %2582 = vmatpush1.msra.mxu0 0.0
    %2583 = vmatprep.subr.mxu0 0.0
    %2584 = vmatpush1.msra.mxu0 0.0
    %2585 = vmatprep.subr.mxu0 0.0
    %2586 = vmatpush1.msra.mxu0 0.0
    %2587 = vmatprep.subr.mxu0 0.0
    %2588 = vmatpush1.msra.mxu0 0.0
    %2589 = vmatprep.mubr.f32.mxu0 0.0
    %2590 = vmatmul.mubr.f32.gmra.mrb[0].mxu0 %v2523
    %v2591 = vpop.f32.mrb[0].mxu0
    %v2592 = vadd.f32 0.0, %v2591
    %v2593 = vpop.f32.mrb[0].mxu0
    %2594 = vdwg.mxu0
    %2595 = vrot.lane.b32.xlu0 %v2107, 120
    %v2596 = vpop.permute.xlu0 %2595
    %2597 = vrot.lane.b32.xlu0 %v2187, 120
    %v2598 = vpop.permute.xlu0 %2597
    %v2599 = vsel %vm307, %v2596, 0
    %v2601 = vsel %vm307, %v2598, 0
    %2603 = vmatprep.subr.mxu0 0.0
    %2604 = vmatpush1.xpose.msra.mxu0 %v2601
    %2605 = vmatprep.subr.mxu0 0.0
    %2606 = vmatpush1.xpose.msra.mxu0 0.0
    %2607 = vmatprep.subr.mxu0 0.0
    %2608 = vmatpush1.xpose.msra.mxu0 0.0
    %2609 = vmatprep.subr.mxu0 0.0
    %2610 = vmatpush1.xpose.msra.mxu0 0.0
    %2611 = vmatprep.subr.mxu0 0.0
    %2612 = vmatpush1.xpose.msra.mxu0 0.0
    %2613 = vmatprep.subr.mxu0 0.0
    %2614 = vmatpush1.xpose.msra.mxu0 0.0
    %2615 = vmatprep.subr.mxu0 0.0
    %2616 = vmatpush1.xpose.msra.mxu0 0.0
    %2617 = vmatprep.subr.mxu0 0.0
    %2618 = vmatpush1.xpose.msra.mxu0 0.0
    %2619 = vmatprep.subr.mxu0 0.0
    %2620 = vmatpush1.xpose.msra.mxu0 0.0
    %2621 = vmatprep.subr.mxu0 0.0
    %2622 = vmatpush1.xpose.msra.mxu0 0.0
    %2623 = vmatprep.subr.mxu0 0.0
    %2624 = vmatpush1.xpose.msra.mxu0 0.0
    %2625 = vmatprep.subr.mxu0 0.0
    %2626 = vmatpush1.xpose.msra.mxu0 0.0
    %2627 = vmatprep.subr.mxu0 0.0
    %2628 = vmatpush1.xpose.msra.mxu0 0.0
    %2629 = vmatprep.subr.mxu0 0.0
    %2630 = vmatpush1.xpose.msra.mxu0 0.0
    %2631 = vmatprep.subr.mxu0 0.0
    %2632 = vmatpush1.xpose.msra.mxu0 0.0
    %2633 = vmatprep.subr.mxu0 0.0
    %2634 = vmatpush1.xpose.msra.mxu0 0.0
    %2635 = vmatprep.subr.mxu0 0.0
    %2636 = vmatpush1.xpose.msra.mxu0 0.0
    %2637 = vmatprep.subr.mxu0 0.0
    %2638 = vmatpush1.xpose.msra.mxu0 0.0
    %2639 = vmatprep.subr.mxu0 0.0
    %2640 = vmatpush1.xpose.msra.mxu0 0.0
    %2641 = vmatprep.subr.mxu0 0.0
    %2642 = vmatpush1.xpose.msra.mxu0 0.0
    %2643 = vmatprep.subr.mxu0 0.0
    %2644 = vmatpush1.xpose.msra.mxu0 0.0
    %2645 = vmatprep.subr.mxu0 0.0
    %2646 = vmatpush1.xpose.msra.mxu0 0.0
    %2647 = vmatprep.subr.mxu0 0.0
    %2648 = vmatpush1.xpose.msra.mxu0 0.0
    %2649 = vmatprep.subr.mxu0 0.0
    %2650 = vmatpush1.xpose.msra.mxu0 0.0
    %2651 = vmatprep.subr.mxu0 0.0
    %2652 = vmatpush1.xpose.msra.mxu0 0.0
    %2653 = vmatprep.subr.mxu0 0.0
    %2654 = vmatpush1.xpose.msra.mxu0 0.0
    %2655 = vmatprep.subr.mxu0 0.0
    %2656 = vmatpush1.xpose.msra.mxu0 0.0
    %2657 = vmatprep.subr.mxu0 0.0
    %2658 = vmatpush1.xpose.msra.mxu0 0.0
    %2659 = vmatprep.subr.mxu0 0.0
    %2660 = vmatpush1.xpose.msra.mxu0 0.0
    %2661 = vmatprep.subr.mxu0 0.0
    %2662 = vmatpush1.xpose.msra.mxu0 0.0
    %2663 = vmatprep.subr.mxu0 0.0
    %2664 = vmatpush1.xpose.msra.mxu0 0.0
    %2665 = vmatprep.subr.mxu0 0.0
    %2666 = vmatpush1.xpose.msra.mxu0 0.0
    %2667 = vmatprep.mubr.f32.mxu0 0.0
    %2668 = vmatmul.mubr.f32.gmra.mrb[0].mxu0 %v2599
    %v2669 = vpop.f32.mrb[0].mxu0
    %v2670 = vadd.f32 0.0, %v2669
    %v2671 = vpop.f32.mrb[0].mxu0
    %2672 = vdwg.mxu0
    %2673 = vrot.lane.b32.xlu0 %v2112, 120
    %v2674 = vpop.permute.xlu0 %2673
    %2675 = vrot.lane.b32.xlu0 %v2192, 120
    %v2676 = vpop.permute.xlu0 %2675
    %v2677 = vsel %vm307, %v2674, 0
    %v2679 = vsel %vm307, %v2676, 0
    %2681 = vmatprep.subr.mxu0 0.0
    %2682 = vmatpush1.xpose.msra.mxu0 %v2679
    %2683 = vmatprep.subr.mxu0 0.0
    %2684 = vmatpush1.xpose.msra.mxu0 0.0
    %2685 = vmatprep.subr.mxu0 0.0
    %2686 = vmatpush1.xpose.msra.mxu0 0.0
    %2687 = vmatprep.subr.mxu0 0.0
    %2688 = vmatpush1.xpose.msra.mxu0 0.0
    %2689 = vmatprep.subr.mxu0 0.0
    %2690 = vmatpush1.xpose.msra.mxu0 0.0
    %2691 = vmatprep.subr.mxu0 0.0
    %2692 = vmatpush1.xpose.msra.mxu0 0.0
    %2693 = vmatprep.subr.mxu0 0.0
    %2694 = vmatpush1.xpose.msra.mxu0 0.0
    %2695 = vmatprep.subr.mxu0 0.0
    %2696 = vmatpush1.xpose.msra.mxu0 0.0
    %2697 = vmatprep.subr.mxu0 0.0
    %2698 = vmatpush1.xpose.msra.mxu0 0.0
    %2699 = vmatprep.subr.mxu0 0.0
    %2700 = vmatpush1.xpose.msra.mxu0 0.0
    %2701 = vmatprep.subr.mxu0 0.0
    %2702 = vmatpush1.xpose.msra.mxu0 0.0
    %2703 = vmatprep.subr.mxu0 0.0
    %2704 = vmatpush1.xpose.msra.mxu0 0.0
    %2705 = vmatprep.subr.mxu0 0.0
    %2706 = vmatpush1.xpose.msra.mxu0 0.0
    %2707 = vmatprep.subr.mxu0 0.0
    %2708 = vmatpush1.xpose.msra.mxu0 0.0
    %2709 = vmatprep.subr.mxu0 0.0
    %2710 = vmatpush1.xpose.msra.mxu0 0.0
    %2711 = vmatprep.subr.mxu0 0.0
    %2712 = vmatpush1.xpose.msra.mxu0 0.0
    %2713 = vmatprep.subr.mxu0 0.0
    %2714 = vmatpush1.xpose.msra.mxu0 0.0
    %2715 = vmatprep.subr.mxu0 0.0
    %2716 = vmatpush1.xpose.msra.mxu0 0.0
    %2717 = vmatprep.subr.mxu0 0.0
    %2718 = vmatpush1.xpose.msra.mxu0 0.0
    %2719 = vmatprep.subr.mxu0 0.0
    %2720 = vmatpush1.xpose.msra.mxu0 0.0
    %2721 = vmatprep.subr.mxu0 0.0
    %2722 = vmatpush1.xpose.msra.mxu0 0.0
    %2723 = vmatprep.subr.mxu0 0.0
    %2724 = vmatpush1.xpose.msra.mxu0 0.0
    %2725 = vmatprep.subr.mxu0 0.0
    %2726 = vmatpush1.xpose.msra.mxu0 0.0
    %2727 = vmatprep.subr.mxu0 0.0
    %2728 = vmatpush1.xpose.msra.mxu0 0.0
    %2729 = vmatprep.subr.mxu0 0.0
    %2730 = vmatpush1.xpose.msra.mxu0 0.0
    %2731 = vmatprep.subr.mxu0 0.0
    %2732 = vmatpush1.xpose.msra.mxu0 0.0
    %2733 = vmatprep.subr.mxu0 0.0
    %2734 = vmatpush1.xpose.msra.mxu0 0.0
    %2735 = vmatprep.subr.mxu0 0.0
    %2736 = vmatpush1.xpose.msra.mxu0 0.0
    %2737 = vmatprep.subr.mxu0 0.0
    %2738 = vmatpush1.xpose.msra.mxu0 0.0
    %2739 = vmatprep.subr.mxu0 0.0
    %2740 = vmatpush1.xpose.msra.mxu0 0.0
    %2741 = vmatprep.subr.mxu0 0.0
    %2742 = vmatpush1.xpose.msra.mxu0 0.0
    %2743 = vmatprep.subr.mxu0 0.0
    %2744 = vmatpush1.xpose.msra.mxu0 0.0
    %2745 = vmatprep.mubr.f32.mxu0 0.0
    %2746 = vmatmul.mubr.f32.gmra.mrb[0].mxu0 %v2677
    %v2747 = vpop.f32.mrb[0].mxu0
    %v2748 = vadd.f32 0.0, %v2747
    %v2749 = vpop.f32.mrb[0].mxu0
    %2750 = vdwg.mxu0
    %v2751 = vsel %vm307, %v2670, -inf
    %2752 = vmax.xlane.f32.xlu0 %v2751
    %v2753 = vpop.xlane.xlu0 %2752
    %v2754 = vsel %vm307, %v2748, -inf
    %2755 = vmax.xlane.f32.xlu0 %v2754
    %v2756 = vpop.xlane.xlu0 %2755
    %v2757 = vsub.f32 %v2670, %v2753
    %v2758 = vsub.f32 %v2748, %v2756
    %v2759 = vmul.f32 %v2757, 1.442695
    %v2760 = vpow.pop %v2759
    %v2761 = vmul.f32 %v2758, 1.442695
    %v2762 = vpow.pop %v2761
    %v2763 = vsel %vm307, %v2760, 0.0
    %2764 = vadd.xlane.f32.xlu0 %v2763
    %v2765 = vpop.xlane.xlu0 %2764
    %v2766 = vsel %vm307, %v2762, 0.0
    %2767 = vadd.xlane.f32.xlu0 %v2766
    %v2768 = vpop.xlane.xlu0 %2767
    %v2769 = vrcp.pop %v2765
    %v2770 = vrcp.pop %v2768
    %v2771 = vmul.f32 %v2760, %v2769
    %v2772 = vmul.f32 %v2762, %v2770
    %2774 = vrot.lane.b32.xlu0 %v2267, 120
    %v2775 = vpop.permute.xlu0 %2774
    %v2778 = vsel %vm307, %v2771, 0
    %2780 = vmatprep.subr.mxu0 0.0
    %2781 = vmatpush1.msra.mxu0 %v2775
    %2782 = vmatprep.subr.mxu0 0.0
    %2783 = vmatpush1.msra.mxu0 0.0
    %2784 = vmatprep.subr.mxu0 0.0
    %2785 = vmatpush1.msra.mxu0 0.0
    %2786 = vmatprep.subr.mxu0 0.0
    %2787 = vmatpush1.msra.mxu0 0.0
    %2788 = vmatprep.subr.mxu0 0.0
    %2789 = vmatpush1.msra.mxu0 0.0
    %2790 = vmatprep.subr.mxu0 0.0
    %2791 = vmatpush1.msra.mxu0 0.0
    %2792 = vmatprep.subr.mxu0 0.0
    %2793 = vmatpush1.msra.mxu0 0.0
    %2794 = vmatprep.subr.mxu0 0.0
    %2795 = vmatpush1.msra.mxu0 0.0
    %2796 = vmatprep.subr.mxu0 0.0
    %2797 = vmatpush1.msra.mxu0 0.0
    %2798 = vmatprep.subr.mxu0 0.0
    %2799 = vmatpush1.msra.mxu0 0.0
    %2800 = vmatprep.subr.mxu0 0.0
    %2801 = vmatpush1.msra.mxu0 0.0
    %2802 = vmatprep.subr.mxu0 0.0
    %2803 = vmatpush1.msra.mxu0 0.0
    %2804 = vmatprep.subr.mxu0 0.0
    %2805 = vmatpush1.msra.mxu0 0.0
    %2806 = vmatprep.subr.mxu0 0.0
    %2807 = vmatpush1.msra.mxu0 0.0
    %2808 = vmatprep.subr.mxu0 0.0
    %2809 = vmatpush1.msra.mxu0 0.0
    %2810 = vmatprep.subr.mxu0 0.0
    %2811 = vmatpush1.msra.mxu0 0.0
    %2812 = vmatprep.subr.mxu0 0.0
    %2813 = vmatpush1.msra.mxu0 0.0
    %2814 = vmatprep.subr.mxu0 0.0
    %2815 = vmatpush1.msra.mxu0 0.0
    %2816 = vmatprep.subr.mxu0 0.0
    %2817 = vmatpush1.msra.mxu0 0.0
    %2818 = vmatprep.subr.mxu0 0.0
    %2819 = vmatpush1.msra.mxu0 0.0
    %2820 = vmatprep.subr.mxu0 0.0
    %2821 = vmatpush1.msra.mxu0 0.0
    %2822 = vmatprep.subr.mxu0 0.0
    %2823 = vmatpush1.msra.mxu0 0.0
    %2824 = vmatprep.subr.mxu0 0.0
    %2825 = vmatpush1.msra.mxu0 0.0
    %2826 = vmatprep.subr.mxu0 0.0
    %2827 = vmatpush1.msra.mxu0 0.0
    %2828 = vmatprep.subr.mxu0 0.0
    %2829 = vmatpush1.msra.mxu0 0.0
    %2830 = vmatprep.subr.mxu0 0.0
    %2831 = vmatpush1.msra.mxu0 0.0
    %2832 = vmatprep.subr.mxu0 0.0
    %2833 = vmatpush1.msra.mxu0 0.0
    %2834 = vmatprep.subr.mxu0 0.0
    %2835 = vmatpush1.msra.mxu0 0.0
    %2836 = vmatprep.subr.mxu0 0.0
    %2837 = vmatpush1.msra.mxu0 0.0
    %2838 = vmatprep.subr.mxu0 0.0
    %2839 = vmatpush1.msra.mxu0 0.0
    %2840 = vmatprep.subr.mxu0 0.0
    %2841 = vmatpush1.msra.mxu0 0.0
    %2842 = vmatprep.subr.mxu0 0.0
    %2843 = vmatpush1.msra.mxu0 0.0
    %2844 = vmatprep.mubr.f32.mxu0 0.0
    %2845 = vmatmul.mubr.f32.gmra.mrb[0].mxu0 %v2778
    %v2846 = vpop.f32.mrb[0].mxu0
    %v2847 = vadd.f32 0.0, %v2846
    %v2848 = vpop.f32.mrb[0].mxu0
    %2849 = vdwg.mxu0
    %2851 = vrot.lane.b32.xlu0 %v2272, 120
    %v2852 = vpop.permute.xlu0 %2851
    %v2855 = vsel %vm307, %v2772, 0
    %2857 = vmatprep.subr.mxu0 0.0
    %2858 = vmatpush1.msra.mxu0 %v2852
    %2859 = vmatprep.subr.mxu0 0.0
    %2860 = vmatpush1.msra.mxu0 0.0
    %2861 = vmatprep.subr.mxu0 0.0
    %2862 = vmatpush1.msra.mxu0 0.0
    %2863 = vmatprep.subr.mxu0 0.0
    %2864 = vmatpush1.msra.mxu0 0.0
    %2865 = vmatprep.subr.mxu0 0.0
    %2866 = vmatpush1.msra.mxu0 0.0
    %2867 = vmatprep.subr.mxu0 0.0
    %2868 = vmatpush1.msra.mxu0 0.0
    %2869 = vmatprep.subr.mxu0 0.0
    %2870 = vmatpush1.msra.mxu0 0.0
    %2871 = vmatprep.subr.mxu0 0.0
    %2872 = vmatpush1.msra.mxu0 0.0
    %2873 = vmatprep.subr.mxu0 0.0
    %2874 = vmatpush1.msra.mxu0 0.0
    %2875 = vmatprep.subr.mxu0 0.0
    %2876 = vmatpush1.msra.mxu0 0.0
    %2877 = vmatprep.subr.mxu0 0.0
    %2878 = vmatpush1.msra.mxu0 0.0
    %2879 = vmatprep.subr.mxu0 0.0
    %2880 = vmatpush1.msra.mxu0 0.0
    %2881 = vmatprep.subr.mxu0 0.0
    %2882 = vmatpush1.msra.mxu0 0.0
    %2883 = vmatprep.subr.mxu0 0.0
    %2884 = vmatpush1.msra.mxu0 0.0
    %2885 = vmatprep.subr.mxu0 0.0
    %2886 = vmatpush1.msra.mxu0 0.0
    %2887 = vmatprep.subr.mxu0 0.0
    %2888 = vmatpush1.msra.mxu0 0.0
    %2889 = vmatprep.subr.mxu0 0.0
    %2890 = vmatpush1.msra.mxu0 0.0
    %2891 = vmatprep.subr.mxu0 0.0
    %2892 = vmatpush1.msra.mxu0 0.0
    %2893 = vmatprep.subr.mxu0 0.0
    %2894 = vmatpush1.msra.mxu0 0.0
    %2895 = vmatprep.subr.mxu0 0.0
    %2896 = vmatpush1.msra.mxu0 0.0
    %2897 = vmatprep.subr.mxu0 0.0
    %2898 = vmatpush1.msra.mxu0 0.0
    %2899 = vmatprep.subr.mxu0 0.0
    %2900 = vmatpush1.msra.mxu0 0.0
    %2901 = vmatprep.subr.mxu0 0.0
    %2902 = vmatpush1.msra.mxu0 0.0
    %2903 = vmatprep.subr.mxu0 0.0
    %2904 = vmatpush1.msra.mxu0 0.0
    %2905 = vmatprep.subr.mxu0 0.0
    %2906 = vmatpush1.msra.mxu0 0.0
    %2907 = vmatprep.subr.mxu0 0.0
    %2908 = vmatpush1.msra.mxu0 0.0
    %2909 = vmatprep.subr.mxu0 0.0
    %2910 = vmatpush1.msra.mxu0 0.0
    %2911 = vmatprep.subr.mxu0 0.0
    %2912 = vmatpush1.msra.mxu0 0.0
    %2913 = vmatprep.subr.mxu0 0.0
    %2914 = vmatpush1.msra.mxu0 0.0
    %2915 = vmatprep.subr.mxu0 0.0
    %2916 = vmatpush1.msra.mxu0 0.0
    %2917 = vmatprep.subr.mxu0 0.0
    %2918 = vmatpush1.msra.mxu0 0.0
    %2919 = vmatprep.subr.mxu0 0.0
    %2920 = vmatpush1.msra.mxu0 0.0
    %2921 = vmatprep.mubr.f32.mxu0 0.0
    %2922 = vmatmul.mubr.f32.gmra.mrb[0].mxu0 %v2855
    %v2923 = vpop.f32.mrb[0].mxu0
    %v2924 = vadd.f32 0.0, %v2923
    %v2925 = vpop.f32.mrb[0].mxu0
    %2926 = vdwg.mxu0
    %2927 = vrot.lane.b32.xlu0 %v2107, 112
    %v2928 = vpop.permute.xlu0 %2927
    %2929 = vrot.lane.b32.xlu0 %v2187, 112
    %v2930 = vpop.permute.xlu0 %2929
    %v2931 = vsel %vm307, %v2928, 0
    %v2933 = vsel %vm307, %v2930, 0
    %2935 = vmatprep.subr.mxu0 0.0
    %2936 = vmatpush1.xpose.msra.mxu0 %v2933
    %2937 = vmatprep.subr.mxu0 0.0
    %2938 = vmatpush1.xpose.msra.mxu0 0.0
    %2939 = vmatprep.subr.mxu0 0.0
    %2940 = vmatpush1.xpose.msra.mxu0 0.0
    %2941 = vmatprep.subr.mxu0 0.0
    %2942 = vmatpush1.xpose.msra.mxu0 0.0
    %2943 = vmatprep.subr.mxu0 0.0
    %2944 = vmatpush1.xpose.msra.mxu0 0.0
    %2945 = vmatprep.subr.mxu0 0.0
    %2946 = vmatpush1.xpose.msra.mxu0 0.0
    %2947 = vmatprep.subr.mxu0 0.0
    %2948 = vmatpush1.xpose.msra.mxu0 0.0
    %2949 = vmatprep.subr.mxu0 0.0
    %2950 = vmatpush1.xpose.msra.mxu0 0.0
    %2951 = vmatprep.subr.mxu0 0.0
    %2952 = vmatpush1.xpose.msra.mxu0 0.0
    %2953 = vmatprep.subr.mxu0 0.0
    %2954 = vmatpush1.xpose.msra.mxu0 0.0
    %2955 = vmatprep.subr.mxu0 0.0
    %2956 = vmatpush1.xpose.msra.mxu0 0.0
    %2957 = vmatprep.subr.mxu0 0.0
    %2958 = vmatpush1.xpose.msra.mxu0 0.0
    %2959 = vmatprep.subr.mxu0 0.0
    %2960 = vmatpush1.xpose.msra.mxu0 0.0
    %2961 = vmatprep.subr.mxu0 0.0
    %2962 = vmatpush1.xpose.msra.mxu0 0.0
    %2963 = vmatprep.subr.mxu0 0.0
    %2964 = vmatpush1.xpose.msra.mxu0 0.0
    %2965 = vmatprep.subr.mxu0 0.0
    %2966 = vmatpush1.xpose.msra.mxu0 0.0
    %2967 = vmatprep.subr.mxu0 0.0
    %2968 = vmatpush1.xpose.msra.mxu0 0.0
    %2969 = vmatprep.subr.mxu0 0.0
    %2970 = vmatpush1.xpose.msra.mxu0 0.0
    %2971 = vmatprep.subr.mxu0 0.0
    %2972 = vmatpush1.xpose.msra.mxu0 0.0
    %2973 = vmatprep.subr.mxu0 0.0
    %2974 = vmatpush1.xpose.msra.mxu0 0.0
    %2975 = vmatprep.subr.mxu0 0.0
    %2976 = vmatpush1.xpose.msra.mxu0 0.0
    %2977 = vmatprep.subr.mxu0 0.0
    %2978 = vmatpush1.xpose.msra.mxu0 0.0
    %2979 = vmatprep.subr.mxu0 0.0
    %2980 = vmatpush1.xpose.msra.mxu0 0.0
    %2981 = vmatprep.subr.mxu0 0.0
    %2982 = vmatpush1.xpose.msra.mxu0 0.0
    %2983 = vmatprep.subr.mxu0 0.0
    %2984 = vmatpush1.xpose.msra.mxu0 0.0
    %2985 = vmatprep.subr.mxu0 0.0
    %2986 = vmatpush1.xpose.msra.mxu0 0.0
    %2987 = vmatprep.subr.mxu0 0.0
    %2988 = vmatpush1.xpose.msra.mxu0 0.0
    %2989 = vmatprep.subr.mxu0 0.0
    %2990 = vmatpush1.xpose.msra.mxu0 0.0
    %2991 = vmatprep.subr.mxu0 0.0
    %2992 = vmatpush1.xpose.msra.mxu0 0.0
    %2993 = vmatprep.subr.mxu0 0.0
    %2994 = vmatpush1.xpose.msra.mxu0 0.0
    %2995 = vmatprep.subr.mxu0 0.0
    %2996 = vmatpush1.xpose.msra.mxu0 0.0
    %2997 = vmatprep.subr.mxu0 0.0
    %2998 = vmatpush1.xpose.msra.mxu0 0.0
    %2999 = vmatprep.mubr.f32.mxu0 0.0
    %3000 = vmatmul.mubr.f32.gmra.mrb[0].mxu0 %v2931
    %v3001 = vpop.f32.mrb[0].mxu0
    %v3002 = vadd.f32 0.0, %v3001
    %v3003 = vpop.f32.mrb[0].mxu0
    %3004 = vdwg.mxu0
    %3005 = vrot.lane.b32.xlu0 %v2112, 112
    %v3006 = vpop.permute.xlu0 %3005
    %3007 = vrot.lane.b32.xlu0 %v2192, 112
    %v3008 = vpop.permute.xlu0 %3007
    %v3009 = vsel %vm307, %v3006, 0
    %v3011 = vsel %vm307, %v3008, 0
    %3013 = vmatprep.subr.mxu0 0.0
    %3014 = vmatpush1.xpose.msra.mxu0 %v3011
    %3015 = vmatprep.subr.mxu0 0.0
    %3016 = vmatpush1.xpose.msra.mxu0 0.0
    %3017 = vmatprep.subr.mxu0 0.0
    %3018 = vmatpush1.xpose.msra.mxu0 0.0
    %3019 = vmatprep.subr.mxu0 0.0
    %3020 = vmatpush1.xpose.msra.mxu0 0.0
    %3021 = vmatprep.subr.mxu0 0.0
    %3022 = vmatpush1.xpose.msra.mxu0 0.0
    %3023 = vmatprep.subr.mxu0 0.0
    %3024 = vmatpush1.xpose.msra.mxu0 0.0
    %3025 = vmatprep.subr.mxu0 0.0
    %3026 = vmatpush1.xpose.msra.mxu0 0.0
    %3027 = vmatprep.subr.mxu0 0.0
    %3028 = vmatpush1.xpose.msra.mxu0 0.0
    %3029 = vmatprep.subr.mxu0 0.0
    %3030 = vmatpush1.xpose.msra.mxu0 0.0
    %3031 = vmatprep.subr.mxu0 0.0
    %3032 = vmatpush1.xpose.msra.mxu0 0.0
    %3033 = vmatprep.subr.mxu0 0.0
    %3034 = vmatpush1.xpose.msra.mxu0 0.0
    %3035 = vmatprep.subr.mxu0 0.0
    %3036 = vmatpush1.xpose.msra.mxu0 0.0
    %3037 = vmatprep.subr.mxu0 0.0
    %3038 = vmatpush1.xpose.msra.mxu0 0.0
    %3039 = vmatprep.subr.mxu0 0.0
    %3040 = vmatpush1.xpose.msra.mxu0 0.0
    %3041 = vmatprep.subr.mxu0 0.0
    %3042 = vmatpush1.xpose.msra.mxu0 0.0
    %3043 = vmatprep.subr.mxu0 0.0
    %3044 = vmatpush1.xpose.msra.mxu0 0.0
    %3045 = vmatprep.subr.mxu0 0.0
    %3046 = vmatpush1.xpose.msra.mxu0 0.0
    %3047 = vmatprep.subr.mxu0 0.0
    %3048 = vmatpush1.xpose.msra.mxu0 0.0
    %3049 = vmatprep.subr.mxu0 0.0
    %3050 = vmatpush1.xpose.msra.mxu0 0.0
    %3051 = vmatprep.subr.mxu0 0.0
    %3052 = vmatpush1.xpose.msra.mxu0 0.0
    %3053 = vmatprep.subr.mxu0 0.0
    %3054 = vmatpush1.xpose.msra.mxu0 0.0
    %3055 = vmatprep.subr.mxu0 0.0
    %3056 = vmatpush1.xpose.msra.mxu0 0.0
    %3057 = vmatprep.subr.mxu0 0.0
    %3058 = vmatpush1.xpose.msra.mxu0 0.0
    %3059 = vmatprep.subr.mxu0 0.0
    %3060 = vmatpush1.xpose.msra.mxu0 0.0
    %3061 = vmatprep.subr.mxu0 0.0
    %3062 = vmatpush1.xpose.msra.mxu0 0.0
    %3063 = vmatprep.subr.mxu0 0.0
    %3064 = vmatpush1.xpose.msra.mxu0 0.0
    %3065 = vmatprep.subr.mxu0 0.0
    %3066 = vmatpush1.xpose.msra.mxu0 0.0
    %3067 = vmatprep.subr.mxu0 0.0
    %3068 = vmatpush1.xpose.msra.mxu0 0.0
    %3069 = vmatprep.subr.mxu0 0.0
    %3070 = vmatpush1.xpose.msra.mxu0 0.0
    %3071 = vmatprep.subr.mxu0 0.0
    %3072 = vmatpush1.xpose.msra.mxu0 0.0
    %3073 = vmatprep.subr.mxu0 0.0
    %3074 = vmatpush1.xpose.msra.mxu0 0.0
    %3075 = vmatprep.subr.mxu0 0.0
    %3076 = vmatpush1.xpose.msra.mxu0 0.0
    %3077 = vmatprep.mubr.f32.mxu0 0.0
    %3078 = vmatmul.mubr.f32.gmra.mrb[0].mxu0 %v3009
    %v3079 = vpop.f32.mrb[0].mxu0
    %v3080 = vadd.f32 0.0, %v3079
    %v3081 = vpop.f32.mrb[0].mxu0
    %3082 = vdwg.mxu0
    %v3083 = vsel %vm307, %v3002, -inf
    %3084 = vmax.xlane.f32.xlu0 %v3083
    %v3085 = vpop.xlane.xlu0 %3084
    %v3086 = vsel %vm307, %v3080, -inf
    %3087 = vmax.xlane.f32.xlu0 %v3086
    %v3088 = vpop.xlane.xlu0 %3087
    %v3089 = vsub.f32 %v3002, %v3085
    %v3090 = vsub.f32 %v3080, %v3088
    %v3091 = vmul.f32 %v3089, 1.442695
    %v3092 = vpow.pop %v3091
    %v3093 = vmul.f32 %v3090, 1.442695
    %v3094 = vpow.pop %v3093
    %v3095 = vsel %vm307, %v3092, 0.0
    %3096 = vadd.xlane.f32.xlu0 %v3095
    %v3097 = vpop.xlane.xlu0 %3096
    %v3098 = vsel %vm307, %v3094, 0.0
    %3099 = vadd.xlane.f32.xlu0 %v3098
    %v3100 = vpop.xlane.xlu0 %3099
    %v3101 = vrcp.pop %v3097
    %v3102 = vrcp.pop %v3100
    %v3103 = vmul.f32 %v3092, %v3101
    %v3104 = vmul.f32 %v3094, %v3102
    %3105 = vrot.lane.b32.xlu0 %v2267, 112
    %v3106 = vpop.permute.xlu0 %3105
    %v3109 = vsel %vm307, %v3103, 0
    %3111 = vmatprep.subr.mxu0 0.0
    %3112 = vmatpush1.msra.mxu0 %v3106
    %3113 = vmatprep.subr.mxu0 0.0
    %3114 = vmatpush1.msra.mxu0 0.0
    %3115 = vmatprep.subr.mxu0 0.0
    %3116 = vmatpush1.msra.mxu0 0.0
    %3117 = vmatprep.subr.mxu0 0.0
    %3118 = vmatpush1.msra.mxu0 0.0
    %3119 = vmatprep.subr.mxu0 0.0
    %3120 = vmatpush1.msra.mxu0 0.0
    %3121 = vmatprep.subr.mxu0 0.0
    %3122 = vmatpush1.msra.mxu0 0.0
    %3123 = vmatprep.subr.mxu0 0.0
    %3124 = vmatpush1.msra.mxu0 0.0
    %3125 = vmatprep.subr.mxu0 0.0
    %3126 = vmatpush1.msra.mxu0 0.0
    %3127 = vmatprep.subr.mxu0 0.0
    %3128 = vmatpush1.msra.mxu0 0.0
    %3129 = vmatprep.subr.mxu0 0.0
    %3130 = vmatpush1.msra.mxu0 0.0
    %3131 = vmatprep.subr.mxu0 0.0
    %3132 = vmatpush1.msra.mxu0 0.0
    %3133 = vmatprep.subr.mxu0 0.0
    %3134 = vmatpush1.msra.mxu0 0.0
    %3135 = vmatprep.subr.mxu0 0.0
    %3136 = vmatpush1.msra.mxu0 0.0
    %3137 = vmatprep.subr.mxu0 0.0
    %3138 = vmatpush1.msra.mxu0 0.0
    %3139 = vmatprep.subr.mxu0 0.0
    %3140 = vmatpush1.msra.mxu0 0.0
    %3141 = vmatprep.subr.mxu0 0.0
    %3142 = vmatpush1.msra.mxu0 0.0
    %3143 = vmatprep.subr.mxu0 0.0
    %3144 = vmatpush1.msra.mxu0 0.0
    %3145 = vmatprep.subr.mxu0 0.0
    %3146 = vmatpush1.msra.mxu0 0.0
    %3147 = vmatprep.subr.mxu0 0.0
    %3148 = vmatpush1.msra.mxu0 0.0
    %3149 = vmatprep.subr.mxu0 0.0
    %3150 = vmatpush1.msra.mxu0 0.0
    %3151 = vmatprep.subr.mxu0 0.0
    %3152 = vmatpush1.msra.mxu0 0.0
    %3153 = vmatprep.subr.mxu0 0.0
    %3154 = vmatpush1.msra.mxu0 0.0
    %3155 = vmatprep.subr.mxu0 0.0
    %3156 = vmatpush1.msra.mxu0 0.0
    %3157 = vmatprep.subr.mxu0 0.0
    %3158 = vmatpush1.msra.mxu0 0.0
    %3159 = vmatprep.subr.mxu0 0.0
    %3160 = vmatpush1.msra.mxu0 0.0
    %3161 = vmatprep.subr.mxu0 0.0
    %3162 = vmatpush1.msra.mxu0 0.0
    %3163 = vmatprep.subr.mxu0 0.0
    %3164 = vmatpush1.msra.mxu0 0.0
    %3165 = vmatprep.subr.mxu0 0.0
    %3166 = vmatpush1.msra.mxu0 0.0
    %3167 = vmatprep.subr.mxu0 0.0
    %3168 = vmatpush1.msra.mxu0 0.0
    %3169 = vmatprep.subr.mxu0 0.0
    %3170 = vmatpush1.msra.mxu0 0.0
    %3171 = vmatprep.subr.mxu0 0.0
    %3172 = vmatpush1.msra.mxu0 0.0
    %3173 = vmatprep.subr.mxu0 0.0
    %3174 = vmatpush1.msra.mxu0 0.0
    %3175 = vmatprep.mubr.f32.mxu0 0.0
    %3176 = vmatmul.mubr.f32.gmra.mrb[0].mxu0 %v3109
    %v3177 = vpop.f32.mrb[0].mxu0
    %v3178 = vadd.f32 0.0, %v3177
    %v3179 = vpop.f32.mrb[0].mxu0
    %3180 = vdwg.mxu0
    %3181 = vrot.lane.b32.xlu0 %v2272, 112
    %v3182 = vpop.permute.xlu0 %3181
    %v3185 = vsel %vm307, %v3104, 0
    %3187 = vmatprep.subr.mxu0 0.0
    %3188 = vmatpush1.msra.mxu0 %v3182
    %3189 = vmatprep.subr.mxu0 0.0
    %3190 = vmatpush1.msra.mxu0 0.0
    %3191 = vmatprep.subr.mxu0 0.0
    %3192 = vmatpush1.msra.mxu0 0.0
    %3193 = vmatprep.subr.mxu0 0.0
    %3194 = vmatpush1.msra.mxu0 0.0
    %3195 = vmatprep.subr.mxu0 0.0
    %3196 = vmatpush1.msra.mxu0 0.0
    %3197 = vmatprep.subr.mxu0 0.0
    %3198 = vmatpush1.msra.mxu0 0.0
    %3199 = vmatprep.subr.mxu0 0.0
    %3200 = vmatpush1.msra.mxu0 0.0
    %3201 = vmatprep.subr.mxu0 0.0
    %3202 = vmatpush1.msra.mxu0 0.0
    %3203 = vmatprep.subr.mxu0 0.0
    %3204 = vmatpush1.msra.mxu0 0.0
    %3205 = vmatprep.subr.mxu0 0.0
    %3206 = vmatpush1.msra.mxu0 0.0
    %3207 = vmatprep.subr.mxu0 0.0
    %3208 = vmatpush1.msra.mxu0 0.0
    %3209 = vmatprep.subr.mxu0 0.0
    %3210 = vmatpush1.msra.mxu0 0.0
    %3211 = vmatprep.subr.mxu0 0.0
    %3212 = vmatpush1.msra.mxu0 0.0
    %3213 = vmatprep.subr.mxu0 0.0
    %3214 = vmatpush1.msra.mxu0 0.0
    %3215 = vmatprep.subr.mxu0 0.0
    %3216 = vmatpush1.msra.mxu0 0.0
    %3217 = vmatprep.subr.mxu0 0.0
    %3218 = vmatpush1.msra.mxu0 0.0
    %3219 = vmatprep.subr.mxu0 0.0
    %3220 = vmatpush1.msra.mxu0 0.0
    %3221 = vmatprep.subr.mxu0 0.0
    %3222 = vmatpush1.msra.mxu0 0.0
    %3223 = vmatprep.subr.mxu0 0.0
    %3224 = vmatpush1.msra.mxu0 0.0
    %3225 = vmatprep.subr.mxu0 0.0
    %3226 = vmatpush1.msra.mxu0 0.0
    %3227 = vmatprep.subr.mxu0 0.0
    %3228 = vmatpush1.msra.mxu0 0.0
    %3229 = vmatprep.subr.mxu0 0.0
    %3230 = vmatpush1.msra.mxu0 0.0
    %3231 = vmatprep.subr.mxu0 0.0
    %3232 = vmatpush1.msra.mxu0 0.0
    %3233 = vmatprep.subr.mxu0 0.0
    %3234 = vmatpush1.msra.mxu0 0.0
    %3235 = vmatprep.subr.mxu0 0.0
    %3236 = vmatpush1.msra.mxu0 0.0
    %3237 = vmatprep.subr.mxu0 0.0
    %3238 = vmatpush1.msra.mxu0 0.0
    %3239 = vmatprep.subr.mxu0 0.0
    %3240 = vmatpush1.msra.mxu0 0.0
    %3241 = vmatprep.subr.mxu0 0.0
    %3242 = vmatpush1.msra.mxu0 0.0
    %3243 = vmatprep.subr.mxu0 0.0
    %3244 = vmatpush1.msra.mxu0 0.0
    %3245 = vmatprep.subr.mxu0 0.0
    %3246 = vmatpush1.msra.mxu0 0.0
    %3247 = vmatprep.subr.mxu0 0.0
    %3248 = vmatpush1.msra.mxu0 0.0
    %3249 = vmatprep.subr.mxu0 0.0
    %3250 = vmatpush1.msra.mxu0 0.0
    %3251 = vmatprep.mubr.f32.mxu0 0.0
    %3252 = vmatmul.mubr.f32.gmra.mrb[0].mxu0 %v3185
    %v3253 = vpop.f32.mrb[0].mxu0
    %v3254 = vadd.f32 0.0, %v3253
    %v3255 = vpop.f32.mrb[0].mxu0
    %3256 = vdwg.mxu0
    %3257 = vrot.lane.b32.xlu0 %v2107, 104
    %v3258 = vpop.permute.xlu0 %3257
    %3259 = vrot.lane.b32.xlu0 %v2187, 104
    %v3260 = vpop.permute.xlu0 %3259
    %v3261 = vsel %vm307, %v3258, 0
    %v3263 = vsel %vm307, %v3260, 0
    %3265 = vmatprep.subr.mxu0 0.0
    %3266 = vmatpush1.xpose.msra.mxu0 %v3263
    %3267 = vmatprep.subr.mxu0 0.0
    %3268 = vmatpush1.xpose.msra.mxu0 0.0
    %3269 = vmatprep.subr.mxu0 0.0
    %3270 = vmatpush1.xpose.msra.mxu0 0.0
    %3271 = vmatprep.subr.mxu0 0.0
    %3272 = vmatpush1.xpose.msra.mxu0 0.0
    %3273 = vmatprep.subr.mxu0 0.0
    %3274 = vmatpush1.xpose.msra.mxu0 0.0
    %3275 = vmatprep.subr.mxu0 0.0
    %3276 = vmatpush1.xpose.msra.mxu0 0.0
    %3277 = vmatprep.subr.mxu0 0.0
    %3278 = vmatpush1.xpose.msra.mxu0 0.0
    %3279 = vmatprep.subr.mxu0 0.0
    %3280 = vmatpush1.xpose.msra.mxu0 0.0
    %3281 = vmatprep.subr.mxu0 0.0
    %3282 = vmatpush1.xpose.msra.mxu0 0.0
    %3283 = vmatprep.subr.mxu0 0.0
    %3284 = vmatpush1.xpose.msra.mxu0 0.0
    %3285 = vmatprep.subr.mxu0 0.0
    %3286 = vmatpush1.xpose.msra.mxu0 0.0
    %3287 = vmatprep.subr.mxu0 0.0
    %3288 = vmatpush1.xpose.msra.mxu0 0.0
    %3289 = vmatprep.subr.mxu0 0.0
    %3290 = vmatpush1.xpose.msra.mxu0 0.0
    %3291 = vmatprep.subr.mxu0 0.0
    %3292 = vmatpush1.xpose.msra.mxu0 0.0
    %3293 = vmatprep.subr.mxu0 0.0
    %3294 = vmatpush1.xpose.msra.mxu0 0.0
    %3295 = vmatprep.subr.mxu0 0.0
    %3296 = vmatpush1.xpose.msra.mxu0 0.0
    %3297 = vmatprep.subr.mxu0 0.0
    %3298 = vmatpush1.xpose.msra.mxu0 0.0
    %3299 = vmatprep.subr.mxu0 0.0
    %3300 = vmatpush1.xpose.msra.mxu0 0.0
    %3301 = vmatprep.subr.mxu0 0.0
    %3302 = vmatpush1.xpose.msra.mxu0 0.0
    %3303 = vmatprep.subr.mxu0 0.0
    %3304 = vmatpush1.xpose.msra.mxu0 0.0
    %3305 = vmatprep.subr.mxu0 0.0
    %3306 = vmatpush1.xpose.msra.mxu0 0.0
    %3307 = vmatprep.subr.mxu0 0.0
    %3308 = vmatpush1.xpose.msra.mxu0 0.0
    %3309 = vmatprep.subr.mxu0 0.0
    %3310 = vmatpush1.xpose.msra.mxu0 0.0
    %3311 = vmatprep.subr.mxu0 0.0
    %3312 = vmatpush1.xpose.msra.mxu0 0.0
    %3313 = vmatprep.subr.mxu0 0.0
    %3314 = vmatpush1.xpose.msra.mxu0 0.0
    %3315 = vmatprep.subr.mxu0 0.0
    %3316 = vmatpush1.xpose.msra.mxu0 0.0
    %3317 = vmatprep.subr.mxu0 0.0
    %3318 = vmatpush1.xpose.msra.mxu0 0.0
    %3319 = vmatprep.subr.mxu0 0.0
    %3320 = vmatpush1.xpose.msra.mxu0 0.0
    %3321 = vmatprep.subr.mxu0 0.0
    %3322 = vmatpush1.xpose.msra.mxu0 0.0
    %3323 = vmatprep.subr.mxu0 0.0
    %3324 = vmatpush1.xpose.msra.mxu0 0.0
    %3325 = vmatprep.subr.mxu0 0.0
    %3326 = vmatpush1.xpose.msra.mxu0 0.0
    %3327 = vmatprep.subr.mxu0 0.0
    %3328 = vmatpush1.xpose.msra.mxu0 0.0
    %3329 = vmatprep.mubr.f32.mxu0 0.0
    %3330 = vmatmul.mubr.f32.gmra.mrb[0].mxu0 %v3261
    %v3331 = vpop.f32.mrb[0].mxu0
    %v3332 = vadd.f32 0.0, %v3331
    %v3333 = vpop.f32.mrb[0].mxu0
    %3334 = vdwg.mxu0
    %3335 = vrot.lane.b32.xlu0 %v2112, 104
    %v3336 = vpop.permute.xlu0 %3335
    %3337 = vrot.lane.b32.xlu0 %v2192, 104
    %v3338 = vpop.permute.xlu0 %3337
    %v3339 = vsel %vm307, %v3336, 0
    %v3341 = vsel %vm307, %v3338, 0
    %3343 = vmatprep.subr.mxu0 0.0
    %3344 = vmatpush1.xpose.msra.mxu0 %v3341
    %3345 = vmatprep.subr.mxu0 0.0
    %3346 = vmatpush1.xpose.msra.mxu0 0.0
    %3347 = vmatprep.subr.mxu0 0.0
    %3348 = vmatpush1.xpose.msra.mxu0 0.0
    %3349 = vmatprep.subr.mxu0 0.0
    %3350 = vmatpush1.xpose.msra.mxu0 0.0
    %3351 = vmatprep.subr.mxu0 0.0
    %3352 = vmatpush1.xpose.msra.mxu0 0.0
    %3353 = vmatprep.subr.mxu0 0.0
    %3354 = vmatpush1.xpose.msra.mxu0 0.0
    %3355 = vmatprep.subr.mxu0 0.0
    %3356 = vmatpush1.xpose.msra.mxu0 0.0
    %3357 = vmatprep.subr.mxu0 0.0
    %3358 = vmatpush1.xpose.msra.mxu0 0.0
    %3359 = vmatprep.subr.mxu0 0.0
    %3360 = vmatpush1.xpose.msra.mxu0 0.0
    %3361 = vmatprep.subr.mxu0 0.0
    %3362 = vmatpush1.xpose.msra.mxu0 0.0
    %3363 = vmatprep.subr.mxu0 0.0
    %3364 = vmatpush1.xpose.msra.mxu0 0.0
    %3365 = vmatprep.subr.mxu0 0.0
    %3366 = vmatpush1.xpose.msra.mxu0 0.0
    %3367 = vmatprep.subr.mxu0 0.0
    %3368 = vmatpush1.xpose.msra.mxu0 0.0
    %3369 = vmatprep.subr.mxu0 0.0
    %3370 = vmatpush1.xpose.msra.mxu0 0.0
    %3371 = vmatprep.subr.mxu0 0.0
    %3372 = vmatpush1.xpose.msra.mxu0 0.0
    %3373 = vmatprep.subr.mxu0 0.0
    %3374 = vmatpush1.xpose.msra.mxu0 0.0
    %3375 = vmatprep.subr.mxu0 0.0
    %3376 = vmatpush1.xpose.msra.mxu0 0.0
    %3377 = vmatprep.subr.mxu0 0.0
    %3378 = vmatpush1.xpose.msra.mxu0 0.0
    %3379 = vmatprep.subr.mxu0 0.0
    %3380 = vmatpush1.xpose.msra.mxu0 0.0
    %3381 = vmatprep.subr.mxu0 0.0
    %3382 = vmatpush1.xpose.msra.mxu0 0.0
    %3383 = vmatprep.subr.mxu0 0.0
    %3384 = vmatpush1.xpose.msra.mxu0 0.0
    %3385 = vmatprep.subr.mxu0 0.0
    %3386 = vmatpush1.xpose.msra.mxu0 0.0
    %3387 = vmatprep.subr.mxu0 0.0
    %3388 = vmatpush1.xpose.msra.mxu0 0.0
    %3389 = vmatprep.subr.mxu0 0.0
    %3390 = vmatpush1.xpose.msra.mxu0 0.0
    %3391 = vmatprep.subr.mxu0 0.0
    %3392 = vmatpush1.xpose.msra.mxu0 0.0
    %3393 = vmatprep.subr.mxu0 0.0
    %3394 = vmatpush1.xpose.msra.mxu0 0.0
    %3395 = vmatprep.subr.mxu0 0.0
    %3396 = vmatpush1.xpose.msra.mxu0 0.0
    %3397 = vmatprep.subr.mxu0 0.0
    %3398 = vmatpush1.xpose.msra.mxu0 0.0
    %3399 = vmatprep.subr.mxu0 0.0
    %3400 = vmatpush1.xpose.msra.mxu0 0.0
    %3401 = vmatprep.subr.mxu0 0.0
    %3402 = vmatpush1.xpose.msra.mxu0 0.0
    %3403 = vmatprep.subr.mxu0 0.0
    %3404 = vmatpush1.xpose.msra.mxu0 0.0
    %3405 = vmatprep.subr.mxu0 0.0
    %3406 = vmatpush1.xpose.msra.mxu0 0.0
    %3407 = vmatprep.mubr.f32.mxu0 0.0
    %3408 = vmatmul.mubr.f32.gmra.mrb[0].mxu0 %v3339
    %v3409 = vpop.f32.mrb[0].mxu0
    %v3410 = vadd.f32 0.0, %v3409
    %v3411 = vpop.f32.mrb[0].mxu0
    %3412 = vdwg.mxu0
    %v3413 = vsel %vm307, %v3332, -inf
    %3414 = vmax.xlane.f32.xlu0 %v3413
    %v3415 = vpop.xlane.xlu0 %3414
    %v3416 = vsel %vm307, %v3410, -inf
    %3417 = vmax.xlane.f32.xlu0 %v3416
    %v3418 = vpop.xlane.xlu0 %3417
    %v3419 = vsub.f32 %v3332, %v3415
    %v3420 = vsub.f32 %v3410, %v3418
    %v3421 = vmul.f32 %v3419, 1.442695
    %v3422 = vpow.pop %v3421
    %v3423 = vmul.f32 %v3420, 1.442695
    %v3424 = vpow.pop %v3423
    %v3425 = vsel %vm307, %v3422, 0.0
    %3426 = vadd.xlane.f32.xlu0 %v3425
    %v3427 = vpop.xlane.xlu0 %3426
    %v3428 = vsel %vm307, %v3424, 0.0
    %3429 = vadd.xlane.f32.xlu0 %v3428
    %v3430 = vpop.xlane.xlu0 %3429
    %v3431 = vrcp.pop %v3427
    %v3432 = vrcp.pop %v3430
    %v3433 = vmul.f32 %v3422, %v3431
    %v3434 = vmul.f32 %v3424, %v3432
    %3435 = vrot.lane.b32.xlu0 %v2267, 104
    %v3436 = vpop.permute.xlu0 %3435
    %v3439 = vsel %vm307, %v3433, 0
    %3441 = vmatprep.subr.mxu0 0.0
    %3442 = vmatpush1.msra.mxu0 %v3436
    %3443 = vmatprep.subr.mxu0 0.0
    %3444 = vmatpush1.msra.mxu0 0.0
    %3445 = vmatprep.subr.mxu0 0.0
    %3446 = vmatpush1.msra.mxu0 0.0
    %3447 = vmatprep.subr.mxu0 0.0
    %3448 = vmatpush1.msra.mxu0 0.0
    %3449 = vmatprep.subr.mxu0 0.0
    %3450 = vmatpush1.msra.mxu0 0.0
    %3451 = vmatprep.subr.mxu0 0.0
    %3452 = vmatpush1.msra.mxu0 0.0
    %3453 = vmatprep.subr.mxu0 0.0
    %3454 = vmatpush1.msra.mxu0 0.0
    %3455 = vmatprep.subr.mxu0 0.0
    %3456 = vmatpush1.msra.mxu0 0.0
    %3457 = vmatprep.subr.mxu0 0.0
    %3458 = vmatpush1.msra.mxu0 0.0
    %3459 = vmatprep.subr.mxu0 0.0
    %3460 = vmatpush1.msra.mxu0 0.0
    %3461 = vmatprep.subr.mxu0 0.0
    %3462 = vmatpush1.msra.mxu0 0.0
    %3463 = vmatprep.subr.mxu0 0.0
    %3464 = vmatpush1.msra.mxu0 0.0
    %3465 = vmatprep.subr.mxu0 0.0
    %3466 = vmatpush1.msra.mxu0 0.0
    %3467 = vmatprep.subr.mxu0 0.0
    %3468 = vmatpush1.msra.mxu0 0.0
    %3469 = vmatprep.subr.mxu0 0.0
    %3470 = vmatpush1.msra.mxu0 0.0
    %3471 = vmatprep.subr.mxu0 0.0
    %3472 = vmatpush1.msra.mxu0 0.0
    %3473 = vmatprep.subr.mxu0 0.0
    %3474 = vmatpush1.msra.mxu0 0.0
    %3475 = vmatprep.subr.mxu0 0.0
    %3476 = vmatpush1.msra.mxu0 0.0
    %3477 = vmatprep.subr.mxu0 0.0
    %3478 = vmatpush1.msra.mxu0 0.0
    %3479 = vmatprep.subr.mxu0 0.0
    %3480 = vmatpush1.msra.mxu0 0.0
    %3481 = vmatprep.subr.mxu0 0.0
    %3482 = vmatpush1.msra.mxu0 0.0
    %3483 = vmatprep.subr.mxu0 0.0
    %3484 = vmatpush1.msra.mxu0 0.0
    %3485 = vmatprep.subr.mxu0 0.0
    %3486 = vmatpush1.msra.mxu0 0.0
    %3487 = vmatprep.subr.mxu0 0.0
    %3488 = vmatpush1.msra.mxu0 0.0
    %3489 = vmatprep.subr.mxu0 0.0
    %3490 = vmatpush1.msra.mxu0 0.0
    %3491 = vmatprep.subr.mxu0 0.0
    %3492 = vmatpush1.msra.mxu0 0.0
    %3493 = vmatprep.subr.mxu0 0.0
    %3494 = vmatpush1.msra.mxu0 0.0
    %3495 = vmatprep.subr.mxu0 0.0
    %3496 = vmatpush1.msra.mxu0 0.0
    %3497 = vmatprep.subr.mxu0 0.0
    %3498 = vmatpush1.msra.mxu0 0.0
    %3499 = vmatprep.subr.mxu0 0.0
    %3500 = vmatpush1.msra.mxu0 0.0
    %3501 = vmatprep.subr.mxu0 0.0
    %3502 = vmatpush1.msra.mxu0 0.0
    %3503 = vmatprep.subr.mxu0 0.0
    %3504 = vmatpush1.msra.mxu0 0.0
    %3505 = vmatprep.mubr.f32.mxu0 0.0
    %3506 = vmatmul.mubr.f32.gmra.mrb[0].mxu0 %v3439
    %v3507 = vpop.f32.mrb[0].mxu0
    %v3508 = vadd.f32 0.0, %v3507
    %v3509 = vpop.f32.mrb[0].mxu0
    %3510 = vdwg.mxu0
    %3511 = vrot.lane.b32.xlu0 %v2272, 104
    %v3512 = vpop.permute.xlu0 %3511
    %v3515 = vsel %vm307, %v3434, 0
    %3517 = vmatprep.subr.mxu0 0.0
    %3518 = vmatpush1.msra.mxu0 %v3512
    %3519 = vmatprep.subr.mxu0 0.0
    %3520 = vmatpush1.msra.mxu0 0.0
    %3521 = vmatprep.subr.mxu0 0.0
    %3522 = vmatpush1.msra.mxu0 0.0
    %3523 = vmatprep.subr.mxu0 0.0
    %3524 = vmatpush1.msra.mxu0 0.0
    %3525 = vmatprep.subr.mxu0 0.0
    %3526 = vmatpush1.msra.mxu0 0.0
    %3527 = vmatprep.subr.mxu0 0.0
    %3528 = vmatpush1.msra.mxu0 0.0
    %3529 = vmatprep.subr.mxu0 0.0
    %3530 = vmatpush1.msra.mxu0 0.0
    %3531 = vmatprep.subr.mxu0 0.0
    %3532 = vmatpush1.msra.mxu0 0.0
    %3533 = vmatprep.subr.mxu0 0.0
    %3534 = vmatpush1.msra.mxu0 0.0
    %3535 = vmatprep.subr.mxu0 0.0
    %3536 = vmatpush1.msra.mxu0 0.0
    %3537 = vmatprep.subr.mxu0 0.0
    %3538 = vmatpush1.msra.mxu0 0.0
    %3539 = vmatprep.subr.mxu0 0.0
    %3540 = vmatpush1.msra.mxu0 0.0
    %3541 = vmatprep.subr.mxu0 0.0
    %3542 = vmatpush1.msra.mxu0 0.0
    %3543 = vmatprep.subr.mxu0 0.0
    %3544 = vmatpush1.msra.mxu0 0.0
    %3545 = vmatprep.subr.mxu0 0.0
    %3546 = vmatpush1.msra.mxu0 0.0
    %3547 = vmatprep.subr.mxu0 0.0
    %3548 = vmatpush1.msra.mxu0 0.0
    %3549 = vmatprep.subr.mxu0 0.0
    %3550 = vmatpush1.msra.mxu0 0.0
    %3551 = vmatprep.subr.mxu0 0.0
    %3552 = vmatpush1.msra.mxu0 0.0
    %3553 = vmatprep.subr.mxu0 0.0
    %3554 = vmatpush1.msra.mxu0 0.0
    %3555 = vmatprep.subr.mxu0 0.0
    %3556 = vmatpush1.msra.mxu0 0.0
    %3557 = vmatprep.subr.mxu0 0.0
    %3558 = vmatpush1.msra.mxu0 0.0
    %3559 = vmatprep.subr.mxu0 0.0
    %3560 = vmatpush1.msra.mxu0 0.0
    %3561 = vmatprep.subr.mxu0 0.0
    %3562 = vmatpush1.msra.mxu0 0.0
    %3563 = vmatprep.subr.mxu0 0.0
    %3564 = vmatpush1.msra.mxu0 0.0
    %3565 = vmatprep.subr.mxu0 0.0
    %3566 = vmatpush1.msra.mxu0 0.0
    %3567 = vmatprep.subr.mxu0 0.0
    %3568 = vmatpush1.msra.mxu0 0.0
    %3569 = vmatprep.subr.mxu0 0.0
    %3570 = vmatpush1.msra.mxu0 0.0
    %3571 = vmatprep.subr.mxu0 0.0
    %3572 = vmatpush1.msra.mxu0 0.0
    %3573 = vmatprep.subr.mxu0 0.0
    %3574 = vmatpush1.msra.mxu0 0.0
    %3575 = vmatprep.subr.mxu0 0.0
    %3576 = vmatpush1.msra.mxu0 0.0
    %3577 = vmatprep.subr.mxu0 0.0
    %3578 = vmatpush1.msra.mxu0 0.0
    %3579 = vmatprep.subr.mxu0 0.0
    %3580 = vmatpush1.msra.mxu0 0.0
    %3581 = vmatprep.mubr.f32.mxu0 0.0
    %3582 = vmatmul.mubr.f32.gmra.mrb[0].mxu0 %v3515
    %v3583 = vpop.f32.mrb[0].mxu0
    %v3584 = vadd.f32 0.0, %v3583
    %v3585 = vpop.f32.mrb[0].mxu0
    %3586 = vdwg.mxu0
    %3589 = vrot.lane.b32.xlu0 %v2847, 8
    %v3590 = vpop.permute.xlu0 %3589
    %3591 = vrot.lane.b32.xlu0 %v2924, 8
    %v3592 = vpop.permute.xlu0 %3591
    %3597 = vrot.lane.b32.xlu0 %v3178, 16
    %v3598 = vpop.permute.xlu0 %3597
    %3599 = vrot.lane.b32.xlu0 %v3254, 16
    %v3600 = vpop.permute.xlu0 %3599
    %3605 = vrot.lane.b32.xlu0 %v3508, 24
    %v3606 = vpop.permute.xlu0 %3605
    %3607 = vrot.lane.b32.xlu0 %v3584, 24
    %v3608 = vpop.permute.xlu0 %3607
    %v3611 = vsel %vm307, %v2519, %v3590
    %v3612 = vsel %vm307, %v2592, %v3592
    %v3613 = vsel %vm1646, %v3611, %v3598
    %v3614 = vsel %vm1646, %v3612, %v3600
    %v3615 = vsel %vm1649, %v3613, %v3606
    %v3616 = vsel %vm1649, %v3614, %v3608
    %s3617 = scalar_lea.vmem %s4, 32
    %v3618 = vld [vmem:[%s3617] sm:$0xff]
    %v3619 = vld [vmem:[%s3617 + $0x8] sm:$0xff]
    %v3620 = vld [vmem:[%s3617 + $0x10] sm:$0xff]
    %v3621 = vld [vmem:[%s3617 + $0x18] sm:$0xff]
    %s3622 = scalar_lea.vmem %s5, 1
    %v3623 = vld [vmem:[%s3622] sm:$0x1]
    %v3625 = vlaneseq
    %v3626 = vshrl.u32 %v3625, 7
    %v3627 = vsub.s32 0, %v3626
    %v3628 = vrot.slane %v3623, %v3627
    %v3631 = vsel %vm67, %v3615, 0
    %v3634 = vsel %vm67, %v3616, 0
    %3636 = vmatprep.subr.mxu0 0.0
    %3637 = vmatpush1.msra.mxu0 %v3618
    %3638 = vmatprep.subr.mxu0 0.0
    %3639 = vmatpush1.msra.mxu0 %v3619
    %3640 = vmatprep.subr.mxu0 0.0
    %3641 = vmatpush1.msra.mxu0 %v3620
    %3642 = vmatprep.subr.mxu0 0.0
    %3643 = vmatpush1.msra.mxu0 %v3621
    %3644 = vmatprep.subr.mxu0 0.0
    %3645 = vmatpush1.msra.mxu0 0.0
    %3646 = vmatprep.subr.mxu0 0.0
    %3647 = vmatpush1.msra.mxu0 0.0
    %3648 = vmatprep.subr.mxu0 0.0
    %3649 = vmatpush1.msra.mxu0 0.0
    %3650 = vmatprep.subr.mxu0 0.0
    %3651 = vmatpush1.msra.mxu0 0.0
    %3652 = vmatprep.subr.mxu0 0.0
    %3653 = vmatpush1.msra.mxu0 0.0
    %3654 = vmatprep.subr.mxu0 0.0
    %3655 = vmatpush1.msra.mxu0 0.0
    %3656 = vmatprep.subr.mxu0 0.0
    %3657 = vmatpush1.msra.mxu0 0.0
    %3658 = vmatprep.subr.mxu0 0.0
    %3659 = vmatpush1.msra.mxu0 0.0
    %3660 = vmatprep.subr.mxu0 0.0
    %3661 = vmatpush1.msra.mxu0 0.0
    %3662 = vmatprep.subr.mxu0 0.0
    %3663 = vmatpush1.msra.mxu0 0.0
    %3664 = vmatprep.subr.mxu0 0.0
    %3665 = vmatpush1.msra.mxu0 0.0
    %3666 = vmatprep.subr.mxu0 0.0
    %3667 = vmatpush1.msra.mxu0 0.0
    %3668 = vmatprep.subr.mxu0 0.0
    %3669 = vmatpush1.msra.mxu0 0.0
    %3670 = vmatprep.subr.mxu0 0.0
    %3671 = vmatpush1.msra.mxu0 0.0
    %3672 = vmatprep.subr.mxu0 0.0
    %3673 = vmatpush1.msra.mxu0 0.0
    %3674 = vmatprep.subr.mxu0 0.0
    %3675 = vmatpush1.msra.mxu0 0.0
    %3676 = vmatprep.subr.mxu0 0.0
    %3677 = vmatpush1.msra.mxu0 0.0
    %3678 = vmatprep.subr.mxu0 0.0
    %3679 = vmatpush1.msra.mxu0 0.0
    %3680 = vmatprep.subr.mxu0 0.0
    %3681 = vmatpush1.msra.mxu0 0.0
    %3682 = vmatprep.subr.mxu0 0.0
    %3683 = vmatpush1.msra.mxu0 0.0
    %3684 = vmatprep.subr.mxu0 0.0
    %3685 = vmatpush1.msra.mxu0 0.0
    %3686 = vmatprep.subr.mxu0 0.0
    %3687 = vmatpush1.msra.mxu0 0.0
    %3688 = vmatprep.subr.mxu0 0.0
    %3689 = vmatpush1.msra.mxu0 0.0
    %3690 = vmatprep.subr.mxu0 0.0
    %3691 = vmatpush1.msra.mxu0 0.0
    %3692 = vmatprep.subr.mxu0 0.0
    %3693 = vmatpush1.msra.mxu0 0.0
    %3694 = vmatprep.subr.mxu0 0.0
    %3695 = vmatpush1.msra.mxu0 0.0
    %3696 = vmatprep.subr.mxu0 0.0
    %3697 = vmatpush1.msra.mxu0 0.0
    %3698 = vmatprep.subr.mxu0 0.0
    %3699 = vmatpush1.msra.mxu0 0.0
    %3700 = vmatprep.mubr.f32.mxu0 0.0
    %3701 = vmatmul.mubr.f32.gmra.mrb[0].mxu0 %v3631
    %v3702 = vpop.f32.mrb[0].mxu0
    %v3703 = vadd.f32 %v3628, %v3702
    %v3704 = vpop.f32.mrb[0].mxu0
    %3705 = vmatprep.mubr.f32.mxu0 0.0
    %3706 = vmatmul.mubr.f32.gmra.mrb[0].mxu0 %v3634
    %v3707 = vpop.f32.mrb[0].mxu0
    %v3708 = vadd.f32 %v3628, %v3707
    %v3709 = vpop.f32.mrb[0].mxu0
    %3710 = vdwg.mxu0
    %v3711 = vadd.f32 %v3703, %v2027
    %v3712 = vadd.f32 %v3708, %v2028
    %s3713 = scalar_lea.vmem %s6, 1
    %v3714 = vld [vmem:[%s3713] sm:$0x1]
    %s3715 = scalar_lea.vmem %s7, 1
    %v3716 = vld [vmem:[%s3715] sm:$0x1]
    %v3717 = vsel %vm67, %v3711, 0.0
    %3718 = vadd.xlane.f32.xlu0 %v3717
    %v3719 = vpop.xlane.xlu0 %3718
    %v3720 = vsel %vm67, %v3712, 0.0
    %3721 = vadd.xlane.f32.xlu0 %v3720
    %v3722 = vpop.xlane.xlu0 %3721
    %v3723 = vmul.f32 %v3719, %v1754
    %v3724 = vmul.f32 %v3722, %v1754
    %v3725 = vsub.f32 %v3711, %v3723
    %v3726 = vsub.f32 %v3712, %v3724
    %v3727 = vmul.f32 %v3725, %v3725
    %v3728 = vmul.f32 %v3726, %v3726
    %v3729 = vsel %vm67, %v3727, 0.0
    %3730 = vadd.xlane.f32.xlu0 %v3729
    %v3731 = vpop.xlane.xlu0 %3730
    %v3732 = vsel %vm67, %v3728, 0.0
    %3733 = vadd.xlane.f32.xlu0 %v3732
    %v3734 = vpop.xlane.xlu0 %3733
    %v3735 = vmul.f32 %v3731, %v1754
    %v3736 = vmul.f32 %v3734, %v1754
    %v3737 = vadd.f32 %v3735, 1e-05
    %v3738 = vadd.f32 %v3736, 1e-05
    %v3739 = vrsqrt.pop %v3737
    %v3740 = vrsqrt.pop %v3738
    %v3741 = vmul.f32 %v3725, %v3739
    %v3742 = vmul.f32 %v3726, %v3740
    %v3744 = vlaneseq
    %v3745 = vshrl.u32 %v3744, 7
    %v3746 = vsub.s32 0, %v3745
    %v3747 = vrot.slane %v3714, %v3746
    %v3749 = vmul.f32 %v3741, %v3747
    %v3750 = vmul.f32 %v3742, %v3747
    %v3752 = vlaneseq
    %v3753 = vshrl.u32 %v3752, 7
    %v3754 = vsub.s32 0, %v3753
    %v3755 = vrot.slane %v3716, %v3754
    %v3757 = vadd.f32 %v3749, %v3755
    %v3758 = vadd.f32 %v3750, %v3755
    %s3759 = scalar_lea.vmem %s10, 32
    %v3760 = vld [vmem:[%s3759] sm:$0xff]
    %v3761 = vld [vmem:[%s3759 + $0x8] sm:$0xff]
    %v3762 = vld [vmem:[%s3759 + $0x10] sm:$0xff]
    %v3763 = vld [vmem:[%s3759 + $0x18] sm:$0xff]
    %s3764 = scalar_lea.vmem %s11, 1
    %v3765 = vld [vmem:[%s3764] sm:$0x1]
    %v3767 = vlaneseq
    %v3768 = vshrl.u32 %v3767, 7
    %v3769 = vsub.s32 0, %v3768
    %v3770 = vrot.slane %v3765, %v3769
    %v3773 = vsel %vm67, %v3757, 0
    %v3776 = vsel %vm67, %v3758, 0
    %3778 = vmatprep.subr.mxu0 0.0
    %3779 = vmatpush1.msra.mxu0 %v3760
    %3780 = vmatprep.subr.mxu0 0.0
    %3781 = vmatpush1.msra.mxu0 %v3761
    %3782 = vmatprep.subr.mxu0 0.0
    %3783 = vmatpush1.msra.mxu0 %v3762
    %3784 = vmatprep.subr.mxu0 0.0
    %3785 = vmatpush1.msra.mxu0 %v3763
    %3786 = vmatprep.subr.mxu0 0.0
    %3787 = vmatpush1.msra.mxu0 0.0
    %3788 = vmatprep.subr.mxu0 0.0
    %3789 = vmatpush1.msra.mxu0 0.0
    %3790 = vmatprep.subr.mxu0 0.0
    %3791 = vmatpush1.msra.mxu0 0.0
    %3792 = vmatprep.subr.mxu0 0.0
    %3793 = vmatpush1.msra.mxu0 0.0
    %3794 = vmatprep.subr.mxu0 0.0
    %3795 = vmatpush1.msra.mxu0 0.0
    %3796 = vmatprep.subr.mxu0 0.0
    %3797 = vmatpush1.msra.mxu0 0.0
    %3798 = vmatprep.subr.mxu0 0.0
    %3799 = vmatpush1.msra.mxu0 0.0
    %3800 = vmatprep.subr.mxu0 0.0
    %3801 = vmatpush1.msra.mxu0 0.0
    %3802 = vmatprep.subr.mxu0 0.0
    %3803 = vmatpush1.msra.mxu0 0.0
    %3804 = vmatprep.subr.mxu0 0.0
    %3805 = vmatpush1.msra.mxu0 0.0
    %3806 = vmatprep.subr.mxu0 0.0
    %3807 = vmatpush1.msra.mxu0 0.0
    %3808 = vmatprep.subr.mxu0 0.0
    %3809 = vmatpush1.msra.mxu0 0.0
    %3810 = vmatprep.subr.mxu0 0.0
    %3811 = vmatpush1.msra.mxu0 0.0
    %3812 = vmatprep.subr.mxu0 0.0
    %3813 = vmatpush1.msra.mxu0 0.0
    %3814 = vmatprep.subr.mxu0 0.0
    %3815 = vmatpush1.msra.mxu0 0.0
    %3816 = vmatprep.subr.mxu0 0.0
    %3817 = vmatpush1.msra.mxu0 0.0
    %3818 = vmatprep.subr.mxu0 0.0
    %3819 = vmatpush1.msra.mxu0 0.0
    %3820 = vmatprep.subr.mxu0 0.0
    %3821 = vmatpush1.msra.mxu0 0.0
    %3822 = vmatprep.subr.mxu0 0.0
    %3823 = vmatpush1.msra.mxu0 0.0
    %3824 = vmatprep.subr.mxu0 0.0
    %3825 = vmatpush1.msra.mxu0 0.0
    %3826 = vmatprep.subr.mxu0 0.0
    %3827 = vmatpush1.msra.mxu0 0.0
    %3828 = vmatprep.subr.mxu0 0.0
    %3829 = vmatpush1.msra.mxu0 0.0
    %3830 = vmatprep.subr.mxu0 0.0
    %3831 = vmatpush1.msra.mxu0 0.0
    %3832 = vmatprep.subr.mxu0 0.0
    %3833 = vmatpush1.msra.mxu0 0.0
    %3834 = vmatprep.subr.mxu0 0.0
    %3835 = vmatpush1.msra.mxu0 0.0
    %3836 = vmatprep.subr.mxu0 0.0
    %3837 = vmatpush1.msra.mxu0 0.0
    %3838 = vmatprep.subr.mxu0 0.0
    %3839 = vmatpush1.msra.mxu0 0.0
    %3840 = vmatprep.subr.mxu0 0.0
    %3841 = vmatpush1.msra.mxu0 0.0
    %3842 = vmatprep.mubr.f32.mxu0 0.0
    %3843 = vmatmul.mubr.f32.gmra.mrb[0].mxu0 %v3773
    %v3844 = vpop.f32.mrb[0].mxu0
    %v3845 = vadd.f32 %v3770, %v3844
    %v3846 = vpop.f32.mrb[0].mxu0
    %3847 = vmatprep.mubr.f32.mxu0 0.0
    %3848 = vmatmul.mubr.f32.gmra.mrb[0].mxu0 %v3776
    %v3849 = vpop.f32.mrb[0].mxu0
    %v3850 = vadd.f32 %v3770, %v3849
    %v3851 = vpop.f32.mrb[0].mxu0
    %3852 = vdwg.mxu0
    %v3853 = vmax.f32 %v3845, 0.0
    %v3854 = vmax.f32 %v3850, 0.0
    %s3855 = scalar_lea.vmem %s12, 128
    %v3856 = vld [vmem:[%s3855] sm:$0xff]
    %v3857 = vld [vmem:[%s3855 + $0x8] sm:$0xff]
    %v3858 = vld [vmem:[%s3855 + $0x10] sm:$0xff]
    %v3859 = vld [vmem:[%s3855 + $0x18] sm:$0xff]
    %v3860 = vld [vmem:[%s3855 + $0x20] sm:$0xff]
    %v3861 = vld [vmem:[%s3855 + $0x28] sm:$0xff]
    %v3862 = vld [vmem:[%s3855 + $0x30] sm:$0xff]
    %v3863 = vld [vmem:[%s3855 + $0x38] sm:$0xff]
    %v3864 = vld [vmem:[%s3855 + $0x40] sm:$0xff]
    %v3865 = vld [vmem:[%s3855 + $0x48] sm:$0xff]
    %v3866 = vld [vmem:[%s3855 + $0x50] sm:$0xff]
    %v3867 = vld [vmem:[%s3855 + $0x58] sm:$0xff]
    %v3868 = vld [vmem:[%s3855 + $0x60] sm:$0xff]
    %v3869 = vld [vmem:[%s3855 + $0x68] sm:$0xff]
    %v3870 = vld [vmem:[%s3855 + $0x70] sm:$0xff]
    %v3871 = vld [vmem:[%s3855 + $0x78] sm:$0xff]
    %s3872 = scalar_lea.vmem %s13, 1
    %v3873 = vld [vmem:[%s3872] sm:$0x1]
    %v3875 = vlaneseq
    %v3876 = vshrl.u32 %v3875, 7
    %v3877 = vsub.s32 0, %v3876
    %v3878 = vrot.slane %v3873, %v3877
    %3880 = vmatprep.subr.mxu0 0.0
    %3881 = vmatpush1.msra.mxu0 %v3856
    %3882 = vmatprep.subr.mxu0 0.0
    %3883 = vmatpush1.msra.mxu0 %v3857
    %3884 = vmatprep.subr.mxu0 0.0
    %3885 = vmatpush1.msra.mxu0 %v3858
    %3886 = vmatprep.subr.mxu0 0.0
    %3887 = vmatpush1.msra.mxu0 %v3859
    %3888 = vmatprep.subr.mxu0 0.0
    %3889 = vmatpush1.msra.mxu0 %v3860
    %3890 = vmatprep.subr.mxu0 0.0
    %3891 = vmatpush1.msra.mxu0 %v3861
    %3892 = vmatprep.subr.mxu0 0.0
    %3893 = vmatpush1.msra.mxu0 %v3862
    %3894 = vmatprep.subr.mxu0 0.0
    %3895 = vmatpush1.msra.mxu0 %v3863
    %3896 = vmatprep.subr.mxu0 0.0
    %3897 = vmatpush1.msra.mxu0 %v3864
    %3898 = vmatprep.subr.mxu0 0.0
    %3899 = vmatpush1.msra.mxu0 %v3865
    %3900 = vmatprep.subr.mxu0 0.0
    %3901 = vmatpush1.msra.mxu0 %v3866
    %3902 = vmatprep.subr.mxu0 0.0
    %3903 = vmatpush1.msra.mxu0 %v3867
    %3904 = vmatprep.subr.mxu0 0.0
    %3905 = vmatpush1.msra.mxu0 %v3868
    %3906 = vmatprep.subr.mxu0 0.0
    %3907 = vmatpush1.msra.mxu0 %v3869
    %3908 = vmatprep.subr.mxu0 0.0
    %3909 = vmatpush1.msra.mxu0 %v3870
    %3910 = vmatprep.subr.mxu0 0.0
    %3911 = vmatpush1.msra.mxu0 %v3871
    %3912 = vmatprep.subr.mxu0 0.0
    %3913 = vmatpush1.msra.mxu0 0.0
    %3914 = vmatprep.subr.mxu0 0.0
    %3915 = vmatpush1.msra.mxu0 0.0
    %3916 = vmatprep.subr.mxu0 0.0
    %3917 = vmatpush1.msra.mxu0 0.0
    %3918 = vmatprep.subr.mxu0 0.0
    %3919 = vmatpush1.msra.mxu0 0.0
    %3920 = vmatprep.subr.mxu0 0.0
    %3921 = vmatpush1.msra.mxu0 0.0
    %3922 = vmatprep.subr.mxu0 0.0
    %3923 = vmatpush1.msra.mxu0 0.0
    %3924 = vmatprep.subr.mxu0 0.0
    %3925 = vmatpush1.msra.mxu0 0.0
    %3926 = vmatprep.subr.mxu0 0.0
    %3927 = vmatpush1.msra.mxu0 0.0
    %3928 = vmatprep.subr.mxu0 0.0
    %3929 = vmatpush1.msra.mxu0 0.0
    %3930 = vmatprep.subr.mxu0 0.0
    %3931 = vmatpush1.msra.mxu0 0.0
    %3932 = vmatprep.subr.mxu0 0.0
    %3933 = vmatpush1.msra.mxu0 0.0
    %3934 = vmatprep.subr.mxu0 0.0
    %3935 = vmatpush1.msra.mxu0 0.0
    %3936 = vmatprep.subr.mxu0 0.0
    %3937 = vmatpush1.msra.mxu0 0.0
    %3938 = vmatprep.subr.mxu0 0.0
    %3939 = vmatpush1.msra.mxu0 0.0
    %3940 = vmatprep.subr.mxu0 0.0
    %3941 = vmatpush1.msra.mxu0 0.0
    %3942 = vmatprep.subr.mxu0 0.0
    %3943 = vmatpush1.msra.mxu0 0.0
    %3944 = vmatprep.mubr.f32.mxu0 0.0
    %3945 = vmatmul.mubr.f32.gmra.mrb[0].mxu0 %v3853
    %v3946 = vpop.f32.mrb[0].mxu0
    %v3947 = vadd.f32 %v3878, %v3946
    %v3948 = vpop.f32.mrb[0].mxu0
    %3949 = vmatprep.mubr.f32.mxu0 0.0
    %3950 = vmatmul.mubr.f32.gmra.mrb[0].mxu0 %v3854
    %v3951 = vpop.f32.mrb[0].mxu0
    %v3952 = vadd.f32 %v3878, %v3951
    %v3953 = vpop.f32.mrb[0].mxu0
    %3954 = vdwg.mxu0
    %v3955 = vadd.f32 %v3947, %v3757
    %v3956 = vadd.f32 %v3952, %v3758
    %s3957 = scalar_lea.vmem %s8, 1
    %v3958 = vld [vmem:[%s3957] sm:$0x1]
    %s3959 = scalar_lea.vmem %s9, 1
    %v3960 = vld [vmem:[%s3959] sm:$0x1]
    %v3961 = vsel %vm67, %v3955, 0.0
    %3962 = vadd.xlane.f32.xlu0 %v3961
    %v3963 = vpop.xlane.xlu0 %3962
    %v3964 = vsel %vm67, %v3956, 0.0
    %3965 = vadd.xlane.f32.xlu0 %v3964
    %v3966 = vpop.xlane.xlu0 %3965
    %v3967 = vmul.f32 %v3963, %v1754
    %v3968 = vmul.f32 %v3966, %v1754
    %v3969 = vsub.f32 %v3955, %v3967
    %v3970 = vsub.f32 %v3956, %v3968
    %v3971 = vmul.f32 %v3969, %v3969
    %v3972 = vmul.f32 %v3970, %v3970
    %v3973 = vsel %vm67, %v3971, 0.0
    %3974 = vadd.xlane.f32.xlu0 %v3973
    %v3975 = vpop.xlane.xlu0 %3974
    %v3976 = vsel %vm67, %v3972, 0.0
    %3977 = vadd.xlane.f32.xlu0 %v3976
    %v3978 = vpop.xlane.xlu0 %3977
    %v3979 = vmul.f32 %v3975, %v1754
    %v3980 = vmul.f32 %v3978, %v1754
    %v3981 = vadd.f32 %v3979, 1e-05
    %v3982 = vadd.f32 %v3980, 1e-05
    %v3983 = vrsqrt.pop %v3981
    %v3984 = vrsqrt.pop %v3982
    %v3985 = vmul.f32 %v3969, %v3983
    %v3986 = vmul.f32 %v3970, %v3984
    %v3988 = vlaneseq
    %v3989 = vshrl.u32 %v3988, 7
    %v3990 = vsub.s32 0, %v3989
    %v3991 = vrot.slane %v3958, %v3990
    %v3993 = vmul.f32 %v3985, %v3991
    %v3994 = vmul.f32 %v3986, %v3991
    %v3996 = vlaneseq
    %v3997 = vshrl.u32 %v3996, 7
    %v3998 = vsub.s32 0, %v3997
    %v3999 = vrot.slane %v3960, %v3998
    %v4001 = vadd.f32 %v3993, %v3999
    %v4002 = vadd.f32 %v3994, %v3999
    %v4004 = vrot.slane %v4001, 4
    %4005 = vrot.lane.b32.xlu0 %v4004, 32
    %v4006 = vpop.permute.xlu0 %4005
    %4009 = vrot.lane.b32.xlu0 %v4002, 64
    %v4010 = vpop.permute.xlu0 %4009
    %v4012 = vrot.slane %v4002, 4
    %4013 = vrot.lane.b32.xlu0 %v4012, 96
    %v4014 = vpop.permute.xlu0 %4013
    %v4016 = vsel %vm67, %v4001, %v4006
    %vm4017 = vcmask 523264
    %v4018 = vsel %vm4017, %v4016, %v4010
    %vm4019 = vcmask 785408
    %v4020 = vsel %vm4019, %v4018, %v4014
    %4021 = vst [vmem:[%s14] sm:$0xf] %v4020
    // Predicated region
    $region62: #{encoder_forward.1} parent=1 // pred_check
      _
    $region63: #{encoder_forward.1} parent=1 // pred_check_branch
      %4023 = sbr.rel (0) target = $region65
    $region64: #{encoder_forward.1} parent=1 // pred_region
      _
    $region65: #{encoder_forward.1} parent=1 // pred_fallthru
      _
    // Predicated region
    $region66: #{encoder_forward.1} parent=1 // pred_check
      _
    $region67: #{encoder_forward.1} parent=1 // pred_check_branch
      %4025 = sbr.rel (0) target = $region69
    $region68: #{encoder_forward.1} parent=1 // pred_region
      _
    $region69: #{encoder_forward.1} parent=1 // pred_fallthru
      _
    %4026 = vsyncpa [#allocation3], 1

</llo_original>
